<compile_context>
chip_gen: v7x
topology: tpu7x:2x2x1
jax: 0.10.0
libtpu: 0.0.40
codegen_flags: <defaults>
</compile_context>

<pallas_src>
import jax
import jax.numpy as jnp
from jax.experimental import pallas as pl
from jax.experimental.pallas import tpu as pltpu


# ---------------- fused LeNet kernel (one image per grid step) ----------------

def _lenet_kernel(x_ref,                 # (1, 32, 32)  image
                  b1w_ref, b1b_ref,      # (5, 32, 168), (1, 168)   conv1 banded W / bias row
                  r1_ref, c1_ref,        # (2, 14, 28), (2, 168, 84) pool1 selectors
                  b2w_ref, b2b_ref,      # (5, 84, 160), (1, 160)   conv2 banded W / bias row
                  r2_ref, c2_ref,        # (2, 5, 10), (2, 160, 80)  pool2 selectors
                  f1w_ref, f1b_ref,      # (5, 80, 120), (1, 120)
                  f2w_ref, f2b_ref,      # (120, 84), (1, 84)
                  f3w_ref, f3b_ref,      # (84, 10), (1, 10)
                  out_ref):              # (1, 1, 10)
    f32 = jnp.float32
    x = x_ref[0]                                        # (32, 32)

    # ---- conv1 (1->6, 5x5 valid) as 5 banded MXU matmuls + bias + ReLU ----
    # acc1[h, co*28+w] = sum_{kh,kw} W1[co,0,kh,kw] * x[h+kh, w+kw]
    acc1 = jnp.zeros((28, 6 * 28), f32)
    for kh in range(5):
        acc1 = acc1 + jnp.dot(x[kh:kh + 28, :], b1w_ref[kh],
                              preferred_element_type=f32)
    h1 = jnp.maximum(acc1 + b1b_ref[...], 0.0)          # (28, 168)

    # ---- max-pool 2x2 / stride 2 via exact 0/1 selection matmuls ----
    rmax1 = jnp.maximum(jnp.dot(r1_ref[0], h1, preferred_element_type=f32),
                        jnp.dot(r1_ref[1], h1, preferred_element_type=f32))
    p1 = jnp.maximum(jnp.dot(rmax1, c1_ref[0], preferred_element_type=f32),
                     jnp.dot(rmax1, c1_ref[1], preferred_element_type=f32))
    # p1: (14, 6*14), column = ci*14 + w

    # ---- conv2 (6->16, 5x5 valid) as 5 banded MXU matmuls + bias + ReLU ----
    acc2 = jnp.zeros((10, 16 * 10), f32)
    for kh in range(5):
        acc2 = acc2 + jnp.dot(p1[kh:kh + 10, :], b2w_ref[kh],
                              preferred_element_type=f32)
    h2 = jnp.maximum(acc2 + b2b_ref[...], 0.0)          # (10, 160)

    # ---- max-pool 2x2 / stride 2 ----
    rmax2 = jnp.maximum(jnp.dot(r2_ref[0], h2, preferred_element_type=f32),
                        jnp.dot(r2_ref[1], h2, preferred_element_type=f32))
    p2 = jnp.maximum(jnp.dot(rmax2, c2_ref[0], preferred_element_type=f32),
                     jnp.dot(rmax2, c2_ref[1], preferred_element_type=f32))
    # p2: (5, 16*5), row = h2, column = co*5 + w2

    # ---- fc1 (400 -> 120): contract row-by-row (no flatten / relayout) ----
    y1 = f1b_ref[...]                                   # (1, 120)
    for h in range(5):
        y1 = y1 + jnp.dot(p2[h:h + 1, :], f1w_ref[h],
                          preferred_element_type=f32)
    y1 = jnp.maximum(y1, 0.0)

    # ---- fc2 + ReLU, fc3 ----
    y2 = jnp.maximum(jnp.dot(y1, f2w_ref[...], preferred_element_type=f32)
                     + f2b_ref[...], 0.0)               # (1, 84)
    y3 = jnp.dot(y2, f3w_ref[...], preferred_element_type=f32) + f3b_ref[...]
    out_ref[0] = y3                                     # (1, 10)


# ---------------- host-side weight plumbing (one-time, outside kernel) ----------------

def _banded_conv_weights(w, in_w, out_w):
    """w: (Cout, Cin, 5, 5) -> B: (5, Cin*in_w, Cout*out_w) with
    B[kh, ci*in_w + wi, co*out_w + wo] = w[co, ci, kh, wi - wo] for 0 <= wi-wo < 5."""
    co_n, ci_n = w.shape[0], w.shape[1]
    wi = jnp.arange(in_w)[:, None]
    wo = jnp.arange(out_w)[None, :]
    kw = wi - wo
    valid = (kw >= 0) & (kw < 5)
    kw_c = jnp.clip(kw, 0, 4)
    b = jnp.where(valid[None, None, None], w[:, :, :, kw_c], 0.0)   # (co,ci,kh,wi,wo)
    b = b.transpose(2, 1, 3, 0, 4)                                   # (kh,ci,wi,co,wo)
    return b.reshape(5, ci_n * in_w, co_n * out_w).astype(jnp.float32)


def _row_pool_selectors(n_in):
    m = n_in // 2
    r = jnp.arange(m)[:, None]
    c = jnp.arange(n_in)[None, :]
    s0 = (c == 2 * r).astype(jnp.float32)
    s1 = (c == 2 * r + 1).astype(jnp.float32)
    return jnp.stack([s0, s1])                # (2, n_in//2, n_in)


def _col_pool_selectors(n_ch, w_in):
    w_out = w_in // 2
    r = jnp.arange(n_ch * w_in)[:, None]      # input column (ch*w_in + w)
    c = jnp.arange(n_ch * w_out)[None, :]     # output column (ch*w_out + j)
    ch, j = c // w_out, c % w_out
    s0 = (r == ch * w_in + 2 * j).astype(jnp.float32)
    s1 = (r == ch * w_in + 2 * j + 1).astype(jnp.float32)
    return jnp.stack([s0, s1])                # (2, n_ch*w_in, n_ch*w_out)


# ---------------- wrapper ----------------

def net_forward(x, params):
    """x: (B, 1, 32, 32) float32 NCHW -> (B, 10) float32 logits."""
    B = x.shape[0]
    x2 = x.reshape(B, 32, 32).astype(jnp.float32)

    b1w = _banded_conv_weights(params["conv1_w"].astype(jnp.float32), 32, 28)  # (5,32,168)
    b1b = jnp.repeat(params["conv1_b"], 28).reshape(1, 6 * 28).astype(jnp.float32)
    b2w = _banded_conv_weights(params["conv2_w"].astype(jnp.float32), 14, 10)  # (5,84,160)
    b2b = jnp.repeat(params["conv2_b"], 10).reshape(1, 16 * 10).astype(jnp.float32)

    r1 = _row_pool_selectors(28)          # (2, 14, 28)
    c1 = _col_pool_selectors(6, 28)       # (2, 168, 84)
    r2 = _row_pool_selectors(10)          # (2, 5, 10)
    c2 = _col_pool_selectors(16, 10)      # (2, 160, 80)

    # fc1: (120, 400) -> (5, 80, 120) with F1[h2, co*5+w2, n] = fc1_w[n, co*25+h2*5+w2]
    f1w = (params["fc1_w"].reshape(120, 16, 5, 5)
           .transpose(2, 1, 3, 0).reshape(5, 80, 120).astype(jnp.float32))
    f1b = params["fc1_b"].reshape(1, 120).astype(jnp.float32)
    f2w = params["fc2_w"].T.astype(jnp.float32)       # (120, 84)
    f2b = params["fc2_b"].reshape(1, 84).astype(jnp.float32)
    f3w = params["fc3_w"].T.astype(jnp.float32)       # (84, 10)
    f3b = params["fc3_b"].reshape(1, 10).astype(jnp.float32)

    def const2(b):
        return (0, 0)

    def const3(b):
        return (0, 0, 0)

    out = pl.pallas_call(
        _lenet_kernel,
        out_shape=jax.ShapeDtypeStruct((B, 1, 10), jnp.float32),
        grid=(B,),
        in_specs=[
            pl.BlockSpec((1, 32, 32), lambda b: (b, 0, 0)),   # per-image input
            pl.BlockSpec((5, 32, 168), const3),               # conv1 banded W
            pl.BlockSpec((1, 168), const2),                   # conv1 bias row
            pl.BlockSpec((2, 14, 28), const3),                # pool1 row selectors
            pl.BlockSpec((2, 168, 84), const3),               # pool1 col selectors
            pl.BlockSpec((5, 84, 160), const3),               # conv2 banded W
            pl.BlockSpec((1, 160), const2),                   # conv2 bias row
            pl.BlockSpec((2, 5, 10), const3),                 # pool2 row selectors
            pl.BlockSpec((2, 160, 80), const3),               # pool2 col selectors
            pl.BlockSpec((5, 80, 120), const3),               # fc1 W
            pl.BlockSpec((1, 120), const2),                   # fc1 b
            pl.BlockSpec((120, 84), const2),                  # fc2 W
            pl.BlockSpec((1, 84), const2),                    # fc2 b
            pl.BlockSpec((84, 10), const2),                   # fc3 W
            pl.BlockSpec((1, 10), const2),                    # fc3 b
        ],
        out_specs=pl.BlockSpec((1, 1, 10), lambda b: (b, 0, 0)),
        compiler_params=pltpu.CompilerParams(
            dimension_semantics=("parallel",),
            vmem_limit_bytes=32 * 1024 * 1024),
    )(x2, b1w, b1b, r1, c1, b2w, b2b, r2, c2,
      f1w, f1b, f2w, f2b, f3w, f3b)
    return out.reshape(B, 10)


# ---------------- pure-JAX reference (for correctness check) ----------------

def net_forward_ref(x, params):
    hi = jax.lax.Precision.HIGHEST
    dn = ("NCHW", "OIHW", "NCHW")
    h = jax.lax.conv_general_dilated(x, params["conv1_w"], (1, 1), "VALID",
                                     dimension_numbers=dn, precision=hi)
    h = jnp.maximum(h + params["conv1_b"][None, :, None, None], 0.0)
    h = jax.lax.reduce_window(h, -jnp.inf, jax.lax.max,
                              (1, 1, 2, 2), (1, 1, 2, 2), "VALID")
    h = jax.lax.conv_general_dilated(h, params["conv2_w"], (1, 1), "VALID",
                                     dimension_numbers=dn, precision=hi)
    h = jnp.maximum(h + params["conv2_b"][None, :, None, None], 0.0)
    h = jax.lax.reduce_window(h, -jnp.inf, jax.lax.max,
                              (1, 1, 2, 2), (1, 1, 2, 2), "VALID")
    h = h.reshape(h.shape[0], -1)
    h = jnp.maximum(jnp.dot(h, params["fc1_w"].T, precision=hi) + params["fc1_b"], 0.0)
    h = jnp.maximum(jnp.dot(h, params["fc2_w"].T, precision=hi) + params["fc2_b"], 0.0)
    return jnp.dot(h, params["fc3_w"].T, precision=hi) + params["fc3_b"]


# ---------------- deterministic parameter init (PyTorch-style uniform) ----------------

def init_params(key):
    ks = jax.random.split(key, 10)

    def u(k, shape, fan_in):
        bound = 1.0 / (fan_in ** 0.5)
        return jax.random.uniform(k, shape, jnp.float32, -bound, bound)

    return {
        "conv1_w": u(ks[0], (6, 1, 5, 5), 1 * 5 * 5),
        "conv1_b": u(ks[1], (6,), 1 * 5 * 5),
        "conv2_w": u(ks[2], (16, 6, 5, 5), 6 * 5 * 5),
        "conv2_b": u(ks[3], (16,), 6 * 5 * 5),
        "fc1_w": u(ks[4], (120, 400), 400),
        "fc1_b": u(ks[5], (120,), 400),
        "fc2_w": u(ks[6], (84, 120), 120),
        "fc2_b": u(ks[7], (84,), 120),
        "fc3_w": u(ks[8], (10, 84), 84),
        "fc3_b": u(ks[9], (10,), 84),
    }


if __name__ == "__main__":
    key = jax.random.PRNGKey(0)
    pkey, xkey = jax.random.split(key)
    params = init_params(pkey)
    # LeNet requires 32x32 single-channel input (the 16*5*5 flatten implies it).
    x = jax.random.normal(xkey, (2, 1, 32, 32), dtype=jnp.float32)

    out = jax.jit(net_forward)(x, params)
    jax.block_until_ready(out)
    assert out.shape == (2, 10) and out.dtype == jnp.float32

    ref = net_forward_ref(x, params)
    max_err = float(jnp.max(jnp.abs(out - ref)))
    assert max_err < 1e-3, f"max abs error vs reference: {max_err}"
    print("KERNEL_OK")
</pallas_src>

<mosaic_0001>
module attributes {stable_mosaic.version = 11 : i64} {
  func.func @_lenet_kernel(%arg0: i32, %arg1: memref<1x32x32xf32, #tpu.memory_space<vmem>>, %arg2: memref<5x32x168xf32, #tpu.memory_space<vmem>>, %arg3: memref<1x168xf32, #tpu.memory_space<vmem>>, %arg4: memref<2x14x28xf32, #tpu.memory_space<vmem>>, %arg5: memref<2x168x84xf32, #tpu.memory_space<vmem>>, %arg6: memref<5x84x160xf32, #tpu.memory_space<vmem>>, %arg7: memref<1x160xf32, #tpu.memory_space<vmem>>, %arg8: memref<2x5x10xf32, #tpu.memory_space<vmem>>, %arg9: memref<2x160x80xf32, #tpu.memory_space<vmem>>, %arg10: memref<5x80x120xf32, #tpu.memory_space<vmem>>, %arg11: memref<1x120xf32, #tpu.memory_space<vmem>>, %arg12: memref<120x84xf32, #tpu.memory_space<vmem>>, %arg13: memref<1x84xf32, #tpu.memory_space<vmem>>, %arg14: memref<84x10xf32, #tpu.memory_space<vmem>>, %arg15: memref<1x10xf32, #tpu.memory_space<vmem>>, %arg16: memref<1x1x10xf32, #tpu.memory_space<vmem>>) attributes {dimension_semantics = [#tpu.dimension_semantics<parallel>], iteration_bounds = array<i64: 2>, scalar_prefetch = 0 : i64, scratch_operands = 0 : i64, tpu.core_type = #tpu.core_type<tc>, window_params = [{transform_indices = @transform_0, window_bounds = array<i64: 1, 32, 32>}, {pipeline_mode = #tpu.pipeline_mode<synchronous>, transform_indices = @transform_1, window_bounds = array<i64: 5, 32, 168>}, {pipeline_mode = #tpu.pipeline_mode<synchronous>, transform_indices = @transform_2, window_bounds = array<i64: 1, 168>}, {pipeline_mode = #tpu.pipeline_mode<synchronous>, transform_indices = @transform_3, window_bounds = array<i64: 2, 14, 28>}, {pipeline_mode = #tpu.pipeline_mode<synchronous>, transform_indices = @transform_4, window_bounds = array<i64: 2, 168, 84>}, {pipeline_mode = #tpu.pipeline_mode<synchronous>, transform_indices = @transform_5, window_bounds = array<i64: 5, 84, 160>}, {pipeline_mode = #tpu.pipeline_mode<synchronous>, transform_indices = @transform_6, window_bounds = array<i64: 1, 160>}, {pipeline_mode = #tpu.pipeline_mode<synchronous>, transform_indices = @transform_7, window_bounds = array<i64: 2, 5, 10>}, {pipeline_mode = #tpu.pipeline_mode<synchronous>, transform_indices = @transform_8, window_bounds = array<i64: 2, 160, 80>}, {pipeline_mode = #tpu.pipeline_mode<synchronous>, transform_indices = @transform_9, window_bounds = array<i64: 5, 80, 120>}, {pipeline_mode = #tpu.pipeline_mode<synchronous>, transform_indices = @transform_10, window_bounds = array<i64: 1, 120>}, {pipeline_mode = #tpu.pipeline_mode<synchronous>, transform_indices = @transform_11, window_bounds = array<i64: 120, 84>}, {pipeline_mode = #tpu.pipeline_mode<synchronous>, transform_indices = @transform_12, window_bounds = array<i64: 1, 84>}, {pipeline_mode = #tpu.pipeline_mode<synchronous>, transform_indices = @transform_13, window_bounds = array<i64: 84, 10>}, {pipeline_mode = #tpu.pipeline_mode<synchronous>, transform_indices = @transform_14, window_bounds = array<i64: 1, 10>}, {transform_indices = @transform_15, window_bounds = array<i64: 1, 1, 10>}]} {
    %c0 = arith.constant 0 : index
    %c0_0 = arith.constant 0 : index
    %c0_1 = arith.constant 0 : index
    %0 = vector.load %arg1[%c0, %c0_0, %c0_1] : memref<1x32x32xf32, #tpu.memory_space<vmem>>, vector<1x32x32xf32>
    %1 = vector.shape_cast %0 : vector<1x32x32xf32> to vector<32x32xf32>
    %cst = arith.constant 0.000000e+00 : f32
    %2 = vector.broadcast %cst : f32 to vector<28x168xf32>
    %3 = vector.extract_strided_slice %1 {offsets = [0, 0], sizes = [28, 32], strides = [1, 1]} : vector<32x32xf32> to vector<28x32xf32>
    %c0_2 = arith.constant 0 : index
    %c0_3 = arith.constant 0 : index
    %c0_4 = arith.constant 0 : index
    %4 = vector.load %arg2[%c0_2, %c0_3, %c0_4] : memref<5x32x168xf32, #tpu.memory_space<vmem>>, vector<1x32x168xf32>
    %5 = vector.shape_cast %4 : vector<1x32x168xf32> to vector<32x168xf32>
    %cst_5 = arith.constant dense<0.000000e+00> : vector<28x168xf32>
    %6 = tpu.matmul %3, %5, %cst_5 {dimension_numbers = #tpu.dot_dimension_numbers<[1], [0], [0], [1], [0, 0, 1, 1], [], []>} : vector<28x32xf32>, vector<32x168xf32>, vector<28x168xf32> -> vector<28x168xf32>
    %7 = arith.addf %2, %6 : vector<28x168xf32>
    %8 = vector.extract_strided_slice %1 {offsets = [1, 0], sizes = [28, 32], strides = [1, 1]} : vector<32x32xf32> to vector<28x32xf32>
    %c1 = arith.constant 1 : index
    %c0_6 = arith.constant 0 : index
    %c0_7 = arith.constant 0 : index
    %9 = vector.load %arg2[%c1, %c0_6, %c0_7] : memref<5x32x168xf32, #tpu.memory_space<vmem>>, vector<1x32x168xf32>
    %10 = vector.shape_cast %9 : vector<1x32x168xf32> to vector<32x168xf32>
    %cst_8 = arith.constant dense<0.000000e+00> : vector<28x168xf32>
    %11 = tpu.matmul %8, %10, %cst_8 {dimension_numbers = #tpu.dot_dimension_numbers<[1], [0], [0], [1], [0, 0, 1, 1], [], []>} : vector<28x32xf32>, vector<32x168xf32>, vector<28x168xf32> -> vector<28x168xf32>
    %12 = arith.addf %7, %11 : vector<28x168xf32>
    %13 = vector.extract_strided_slice %1 {offsets = [2, 0], sizes = [28, 32], strides = [1, 1]} : vector<32x32xf32> to vector<28x32xf32>
    %c2 = arith.constant 2 : index
    %c0_9 = arith.constant 0 : index
    %c0_10 = arith.constant 0 : index
    %14 = vector.load %arg2[%c2, %c0_9, %c0_10] : memref<5x32x168xf32, #tpu.memory_space<vmem>>, vector<1x32x168xf32>
    %15 = vector.shape_cast %14 : vector<1x32x168xf32> to vector<32x168xf32>
    %cst_11 = arith.constant dense<0.000000e+00> : vector<28x168xf32>
    %16 = tpu.matmul %13, %15, %cst_11 {dimension_numbers = #tpu.dot_dimension_numbers<[1], [0], [0], [1], [0, 0, 1, 1], [], []>} : vector<28x32xf32>, vector<32x168xf32>, vector<28x168xf32> -> vector<28x168xf32>
    %17 = arith.addf %12, %16 : vector<28x168xf32>
    %18 = vector.extract_strided_slice %1 {offsets = [3, 0], sizes = [28, 32], strides = [1, 1]} : vector<32x32xf32> to vector<28x32xf32>
    %c3 = arith.constant 3 : index
    %c0_12 = arith.constant 0 : index
    %c0_13 = arith.constant 0 : index
    %19 = vector.load %arg2[%c3, %c0_12, %c0_13] : memref<5x32x168xf32, #tpu.memory_space<vmem>>, vector<1x32x168xf32>
    %20 = vector.shape_cast %19 : vector<1x32x168xf32> to vector<32x168xf32>
    %cst_14 = arith.constant dense<0.000000e+00> : vector<28x168xf32>
    %21 = tpu.matmul %18, %20, %cst_14 {dimension_numbers = #tpu.dot_dimension_numbers<[1], [0], [0], [1], [0, 0, 1, 1], [], []>} : vector<28x32xf32>, vector<32x168xf32>, vector<28x168xf32> -> vector<28x168xf32>
    %22 = arith.addf %17, %21 : vector<28x168xf32>
    %23 = vector.extract_strided_slice %1 {offsets = [4, 0], sizes = [28, 32], strides = [1, 1]} : vector<32x32xf32> to vector<28x32xf32>
    %c4 = arith.constant 4 : index
    %c0_15 = arith.constant 0 : index
    %c0_16 = arith.constant 0 : index
    %24 = vector.load %arg2[%c4, %c0_15, %c0_16] : memref<5x32x168xf32, #tpu.memory_space<vmem>>, vector<1x32x168xf32>
    %25 = vector.shape_cast %24 : vector<1x32x168xf32> to vector<32x168xf32>
    %cst_17 = arith.constant dense<0.000000e+00> : vector<28x168xf32>
    %26 = tpu.matmul %23, %25, %cst_17 {dimension_numbers = #tpu.dot_dimension_numbers<[1], [0], [0], [1], [0, 0, 1, 1], [], []>} : vector<28x32xf32>, vector<32x168xf32>, vector<28x168xf32> -> vector<28x168xf32>
    %27 = arith.addf %22, %26 : vector<28x168xf32>
    %c0_18 = arith.constant 0 : index
    %c0_19 = arith.constant 0 : index
    %28 = vector.load %arg3[%c0_18, %c0_19] : memref<1x168xf32, #tpu.memory_space<vmem>>, vector<1x168xf32>
    %29 = vector.broadcast %28 : vector<1x168xf32> to vector<28x168xf32>
    %30 = arith.addf %27, %29 : vector<28x168xf32>
    %cst_20 = arith.constant 0.000000e+00 : f32
    %31 = vector.broadcast %cst_20 : f32 to vector<28x168xf32>
    %32 = arith.maximumf %30, %31 : vector<28x168xf32>
    %c0_21 = arith.constant 0 : index
    %c0_22 = arith.constant 0 : index
    %c0_23 = arith.constant 0 : index
    %33 = vector.load %arg4[%c0_21, %c0_22, %c0_23] : memref<2x14x28xf32, #tpu.memory_space<vmem>>, vector<1x14x28xf32>
    %34 = vector.shape_cast %33 : vector<1x14x28xf32> to vector<14x28xf32>
    %cst_24 = arith.constant dense<0.000000e+00> : vector<14x168xf32>
    %35 = tpu.matmul %34, %32, %cst_24 {dimension_numbers = #tpu.dot_dimension_numbers<[1], [0], [0], [1], [0, 0, 1, 1], [], []>} : vector<14x28xf32>, vector<28x168xf32>, vector<14x168xf32> -> vector<14x168xf32>
    %c1_25 = arith.constant 1 : index
    %c0_26 = arith.constant 0 : index
    %c0_27 = arith.constant 0 : index
    %36 = vector.load %arg4[%c1_25, %c0_26, %c0_27] : memref<2x14x28xf32, #tpu.memory_space<vmem>>, vector<1x14x28xf32>
    %37 = vector.shape_cast %36 : vector<1x14x28xf32> to vector<14x28xf32>
    %cst_28 = arith.constant dense<0.000000e+00> : vector<14x168xf32>
    %38 = tpu.matmul %37, %32, %cst_28 {dimension_numbers = #tpu.dot_dimension_numbers<[1], [0], [0], [1], [0, 0, 1, 1], [], []>} : vector<14x28xf32>, vector<28x168xf32>, vector<14x168xf32> -> vector<14x168xf32>
    %39 = arith.maximumf %35, %38 : vector<14x168xf32>
    %c0_29 = arith.constant 0 : index
    %c0_30 = arith.constant 0 : index
    %c0_31 = arith.constant 0 : index
    %40 = vector.load %arg5[%c0_29, %c0_30, %c0_31] : memref<2x168x84xf32, #tpu.memory_space<vmem>>, vector<1x168x84xf32>
    %41 = vector.shape_cast %40 : vector<1x168x84xf32> to vector<168x84xf32>
    %cst_32 = arith.constant dense<0.000000e+00> : vector<14x84xf32>
    %42 = tpu.matmul %39, %41, %cst_32 {dimension_numbers = #tpu.dot_dimension_numbers<[1], [0], [0], [1], [0, 0, 1, 1], [], []>} : vector<14x168xf32>, vector<168x84xf32>, vector<14x84xf32> -> vector<14x84xf32>
    %c1_33 = arith.constant 1 : index
    %c0_34 = arith.constant 0 : index
    %c0_35 = arith.constant 0 : index
    %43 = vector.load %arg5[%c1_33, %c0_34, %c0_35] : memref<2x168x84xf32, #tpu.memory_space<vmem>>, vector<1x168x84xf32>
    %44 = vector.shape_cast %43 : vector<1x168x84xf32> to vector<168x84xf32>
    %cst_36 = arith.constant dense<0.000000e+00> : vector<14x84xf32>
    %45 = tpu.matmul %39, %44, %cst_36 {dimension_numbers = #tpu.dot_dimension_numbers<[1], [0], [0], [1], [0, 0, 1, 1], [], []>} : vector<14x168xf32>, vector<168x84xf32>, vector<14x84xf32> -> vector<14x84xf32>
    %46 = arith.maximumf %42, %45 : vector<14x84xf32>
    %cst_37 = arith.constant 0.000000e+00 : f32
    %47 = vector.broadcast %cst_37 : f32 to vector<10x160xf32>
    %48 = vector.extract_strided_slice %46 {offsets = [0, 0], sizes = [10, 84], strides = [1, 1]} : vector<14x84xf32> to vector<10x84xf32>
    %c0_38 = arith.constant 0 : index
    %c0_39 = arith.constant 0 : index
    %c0_40 = arith.constant 0 : index
    %49 = vector.load %arg6[%c0_38, %c0_39, %c0_40] : memref<5x84x160xf32, #tpu.memory_space<vmem>>, vector<1x84x160xf32>
    %50 = vector.shape_cast %49 : vector<1x84x160xf32> to vector<84x160xf32>
    %cst_41 = arith.constant dense<0.000000e+00> : vector<10x160xf32>
    %51 = tpu.matmul %48, %50, %cst_41 {dimension_numbers = #tpu.dot_dimension_numbers<[1], [0], [0], [1], [0, 0, 1, 1], [], []>} : vector<10x84xf32>, vector<84x160xf32>, vector<10x160xf32> -> vector<10x160xf32>
    %52 = arith.addf %47, %51 : vector<10x160xf32>
    %53 = vector.extract_strided_slice %46 {offsets = [1, 0], sizes = [10, 84], strides = [1, 1]} : vector<14x84xf32> to vector<10x84xf32>
    %c1_42 = arith.constant 1 : index
    %c0_43 = arith.constant 0 : index
    %c0_44 = arith.constant 0 : index
    %54 = vector.load %arg6[%c1_42, %c0_43, %c0_44] : memref<5x84x160xf32, #tpu.memory_space<vmem>>, vector<1x84x160xf32>
    %55 = vector.shape_cast %54 : vector<1x84x160xf32> to vector<84x160xf32>
    %cst_45 = arith.constant dense<0.000000e+00> : vector<10x160xf32>
    %56 = tpu.matmul %53, %55, %cst_45 {dimension_numbers = #tpu.dot_dimension_numbers<[1], [0], [0], [1], [0, 0, 1, 1], [], []>} : vector<10x84xf32>, vector<84x160xf32>, vector<10x160xf32> -> vector<10x160xf32>
    %57 = arith.addf %52, %56 : vector<10x160xf32>
    %58 = vector.extract_strided_slice %46 {offsets = [2, 0], sizes = [10, 84], strides = [1, 1]} : vector<14x84xf32> to vector<10x84xf32>
    %c2_46 = arith.constant 2 : index
    %c0_47 = arith.constant 0 : index
    %c0_48 = arith.constant 0 : index
    %59 = vector.load %arg6[%c2_46, %c0_47, %c0_48] : memref<5x84x160xf32, #tpu.memory_space<vmem>>, vector<1x84x160xf32>
    %60 = vector.shape_cast %59 : vector<1x84x160xf32> to vector<84x160xf32>
    %cst_49 = arith.constant dense<0.000000e+00> : vector<10x160xf32>
    %61 = tpu.matmul %58, %60, %cst_49 {dimension_numbers = #tpu.dot_dimension_numbers<[1], [0], [0], [1], [0, 0, 1, 1], [], []>} : vector<10x84xf32>, vector<84x160xf32>, vector<10x160xf32> -> vector<10x160xf32>
    %62 = arith.addf %57, %61 : vector<10x160xf32>
    %63 = vector.extract_strided_slice %46 {offsets = [3, 0], sizes = [10, 84], strides = [1, 1]} : vector<14x84xf32> to vector<10x84xf32>
    %c3_50 = arith.constant 3 : index
    %c0_51 = arith.constant 0 : index
    %c0_52 = arith.constant 0 : index
    %64 = vector.load %arg6[%c3_50, %c0_51, %c0_52] : memref<5x84x160xf32, #tpu.memory_space<vmem>>, vector<1x84x160xf32>
    %65 = vector.shape_cast %64 : vector<1x84x160xf32> to vector<84x160xf32>
    %cst_53 = arith.constant dense<0.000000e+00> : vector<10x160xf32>
    %66 = tpu.matmul %63, %65, %cst_53 {dimension_numbers = #tpu.dot_dimension_numbers<[1], [0], [0], [1], [0, 0, 1, 1], [], []>} : vector<10x84xf32>, vector<84x160xf32>, vector<10x160xf32> -> vector<10x160xf32>
    %67 = arith.addf %62, %66 : vector<10x160xf32>
    %68 = vector.extract_strided_slice %46 {offsets = [4, 0], sizes = [10, 84], strides = [1, 1]} : vector<14x84xf32> to vector<10x84xf32>
    %c4_54 = arith.constant 4 : index
    %c0_55 = arith.constant 0 : index
    %c0_56 = arith.constant 0 : index
    %69 = vector.load %arg6[%c4_54, %c0_55, %c0_56] : memref<5x84x160xf32, #tpu.memory_space<vmem>>, vector<1x84x160xf32>
    %70 = vector.shape_cast %69 : vector<1x84x160xf32> to vector<84x160xf32>
    %cst_57 = arith.constant dense<0.000000e+00> : vector<10x160xf32>
    %71 = tpu.matmul %68, %70, %cst_57 {dimension_numbers = #tpu.dot_dimension_numbers<[1], [0], [0], [1], [0, 0, 1, 1], [], []>} : vector<10x84xf32>, vector<84x160xf32>, vector<10x160xf32> -> vector<10x160xf32>
    %72 = arith.addf %67, %71 : vector<10x160xf32>
    %c0_58 = arith.constant 0 : index
    %c0_59 = arith.constant 0 : index
    %73 = vector.load %arg7[%c0_58, %c0_59] : memref<1x160xf32, #tpu.memory_space<vmem>>, vector<1x160xf32>
    %74 = vector.broadcast %73 : vector<1x160xf32> to vector<10x160xf32>
    %75 = arith.addf %72, %74 : vector<10x160xf32>
    %cst_60 = arith.constant 0.000000e+00 : f32
    %76 = vector.broadcast %cst_60 : f32 to vector<10x160xf32>
    %77 = arith.maximumf %75, %76 : vector<10x160xf32>
    %c0_61 = arith.constant 0 : index
    %c0_62 = arith.constant 0 : index
    %c0_63 = arith.constant 0 : index
    %78 = vector.load %arg8[%c0_61, %c0_62, %c0_63] : memref<2x5x10xf32, #tpu.memory_space<vmem>>, vector<1x5x10xf32>
    %79 = vector.shape_cast %78 : vector<1x5x10xf32> to vector<5x10xf32>
    %cst_64 = arith.constant dense<0.000000e+00> : vector<5x160xf32>
    %80 = tpu.matmul %79, %77, %cst_64 {dimension_numbers = #tpu.dot_dimension_numbers<[1], [0], [0], [1], [0, 0, 1, 1], [], []>} : vector<5x10xf32>, vector<10x160xf32>, vector<5x160xf32> -> vector<5x160xf32>
    %c1_65 = arith.constant 1 : index
    %c0_66 = arith.constant 0 : index
    %c0_67 = arith.constant 0 : index
    %81 = vector.load %arg8[%c1_65, %c0_66, %c0_67] : memref<2x5x10xf32, #tpu.memory_space<vmem>>, vector<1x5x10xf32>
    %82 = vector.shape_cast %81 : vector<1x5x10xf32> to vector<5x10xf32>
    %cst_68 = arith.constant dense<0.000000e+00> : vector<5x160xf32>
    %83 = tpu.matmul %82, %77, %cst_68 {dimension_numbers = #tpu.dot_dimension_numbers<[1], [0], [0], [1], [0, 0, 1, 1], [], []>} : vector<5x10xf32>, vector<10x160xf32>, vector<5x160xf32> -> vector<5x160xf32>
    %84 = arith.maximumf %80, %83 : vector<5x160xf32>
    %c0_69 = arith.constant 0 : index
    %c0_70 = arith.constant 0 : index
    %c0_71 = arith.constant 0 : index
    %85 = vector.load %arg9[%c0_69, %c0_70, %c0_71] : memref<2x160x80xf32, #tpu.memory_space<vmem>>, vector<1x160x80xf32>
    %86 = vector.shape_cast %85 : vector<1x160x80xf32> to vector<160x80xf32>
    %cst_72 = arith.constant dense<0.000000e+00> : vector<5x80xf32>
    %87 = tpu.matmul %84, %86, %cst_72 {dimension_numbers = #tpu.dot_dimension_numbers<[1], [0], [0], [1], [0, 0, 1, 1], [], []>} : vector<5x160xf32>, vector<160x80xf32>, vector<5x80xf32> -> vector<5x80xf32>
    %c1_73 = arith.constant 1 : index
    %c0_74 = arith.constant 0 : index
    %c0_75 = arith.constant 0 : index
    %88 = vector.load %arg9[%c1_73, %c0_74, %c0_75] : memref<2x160x80xf32, #tpu.memory_space<vmem>>, vector<1x160x80xf32>
    %89 = vector.shape_cast %88 : vector<1x160x80xf32> to vector<160x80xf32>
    %cst_76 = arith.constant dense<0.000000e+00> : vector<5x80xf32>
    %90 = tpu.matmul %84, %89, %cst_76 {dimension_numbers = #tpu.dot_dimension_numbers<[1], [0], [0], [1], [0, 0, 1, 1], [], []>} : vector<5x160xf32>, vector<160x80xf32>, vector<5x80xf32> -> vector<5x80xf32>
    %91 = arith.maximumf %87, %90 : vector<5x80xf32>
    %c0_77 = arith.constant 0 : index
    %c0_78 = arith.constant 0 : index
    %92 = vector.load %arg11[%c0_77, %c0_78] : memref<1x120xf32, #tpu.memory_space<vmem>>, vector<1x120xf32>
    %93 = vector.extract_strided_slice %91 {offsets = [0, 0], sizes = [1, 80], strides = [1, 1]} : vector<5x80xf32> to vector<1x80xf32>
    %c0_79 = arith.constant 0 : index
    %c0_80 = arith.constant 0 : index
    %c0_81 = arith.constant 0 : index
    %94 = vector.load %arg10[%c0_79, %c0_80, %c0_81] : memref<5x80x120xf32, #tpu.memory_space<vmem>>, vector<1x80x120xf32>
    %95 = vector.shape_cast %94 : vector<1x80x120xf32> to vector<80x120xf32>
    %cst_82 = arith.constant dense<0.000000e+00> : vector<1x120xf32>
    %96 = tpu.matmul %93, %95, %cst_82 {dimension_numbers = #tpu.dot_dimension_numbers<[1], [0], [0], [1], [0, 0, 1, 1], [], []>} : vector<1x80xf32>, vector<80x120xf32>, vector<1x120xf32> -> vector<1x120xf32>
    %97 = arith.addf %92, %96 : vector<1x120xf32>
    %98 = vector.extract_strided_slice %91 {offsets = [1, 0], sizes = [1, 80], strides = [1, 1]} : vector<5x80xf32> to vector<1x80xf32>
    %c1_83 = arith.constant 1 : index
    %c0_84 = arith.constant 0 : index
    %c0_85 = arith.constant 0 : index
    %99 = vector.load %arg10[%c1_83, %c0_84, %c0_85] : memref<5x80x120xf32, #tpu.memory_space<vmem>>, vector<1x80x120xf32>
    %100 = vector.shape_cast %99 : vector<1x80x120xf32> to vector<80x120xf32>
    %cst_86 = arith.constant dense<0.000000e+00> : vector<1x120xf32>
    %101 = tpu.matmul %98, %100, %cst_86 {dimension_numbers = #tpu.dot_dimension_numbers<[1], [0], [0], [1], [0, 0, 1, 1], [], []>} : vector<1x80xf32>, vector<80x120xf32>, vector<1x120xf32> -> vector<1x120xf32>
    %102 = arith.addf %97, %101 : vector<1x120xf32>
    %103 = vector.extract_strided_slice %91 {offsets = [2, 0], sizes = [1, 80], strides = [1, 1]} : vector<5x80xf32> to vector<1x80xf32>
    %c2_87 = arith.constant 2 : index
    %c0_88 = arith.constant 0 : index
    %c0_89 = arith.constant 0 : index
    %104 = vector.load %arg10[%c2_87, %c0_88, %c0_89] : memref<5x80x120xf32, #tpu.memory_space<vmem>>, vector<1x80x120xf32>
    %105 = vector.shape_cast %104 : vector<1x80x120xf32> to vector<80x120xf32>
    %cst_90 = arith.constant dense<0.000000e+00> : vector<1x120xf32>
    %106 = tpu.matmul %103, %105, %cst_90 {dimension_numbers = #tpu.dot_dimension_numbers<[1], [0], [0], [1], [0, 0, 1, 1], [], []>} : vector<1x80xf32>, vector<80x120xf32>, vector<1x120xf32> -> vector<1x120xf32>
    %107 = arith.addf %102, %106 : vector<1x120xf32>
    %108 = vector.extract_strided_slice %91 {offsets = [3, 0], sizes = [1, 80], strides = [1, 1]} : vector<5x80xf32> to vector<1x80xf32>
    %c3_91 = arith.constant 3 : index
    %c0_92 = arith.constant 0 : index
    %c0_93 = arith.constant 0 : index
    %109 = vector.load %arg10[%c3_91, %c0_92, %c0_93] : memref<5x80x120xf32, #tpu.memory_space<vmem>>, vector<1x80x120xf32>
    %110 = vector.shape_cast %109 : vector<1x80x120xf32> to vector<80x120xf32>
    %cst_94 = arith.constant dense<0.000000e+00> : vector<1x120xf32>
    %111 = tpu.matmul %108, %110, %cst_94 {dimension_numbers = #tpu.dot_dimension_numbers<[1], [0], [0], [1], [0, 0, 1, 1], [], []>} : vector<1x80xf32>, vector<80x120xf32>, vector<1x120xf32> -> vector<1x120xf32>
    %112 = arith.addf %107, %111 : vector<1x120xf32>
    %113 = vector.extract_strided_slice %91 {offsets = [4, 0], sizes = [1, 80], strides = [1, 1]} : vector<5x80xf32> to vector<1x80xf32>
    %c4_95 = arith.constant 4 : index
    %c0_96 = arith.constant 0 : index
    %c0_97 = arith.constant 0 : index
    %114 = vector.load %arg10[%c4_95, %c0_96, %c0_97] : memref<5x80x120xf32, #tpu.memory_space<vmem>>, vector<1x80x120xf32>
    %115 = vector.shape_cast %114 : vector<1x80x120xf32> to vector<80x120xf32>
    %cst_98 = arith.constant dense<0.000000e+00> : vector<1x120xf32>
    %116 = tpu.matmul %113, %115, %cst_98 {dimension_numbers = #tpu.dot_dimension_numbers<[1], [0], [0], [1], [0, 0, 1, 1], [], []>} : vector<1x80xf32>, vector<80x120xf32>, vector<1x120xf32> -> vector<1x120xf32>
    %117 = arith.addf %112, %116 : vector<1x120xf32>
    %cst_99 = arith.constant 0.000000e+00 : f32
    %118 = vector.broadcast %cst_99 : f32 to vector<1x120xf32>
    %119 = arith.maximumf %117, %118 : vector<1x120xf32>
    %c0_100 = arith.constant 0 : index
    %c0_101 = arith.constant 0 : index
    %120 = vector.load %arg12[%c0_100, %c0_101] : memref<120x84xf32, #tpu.memory_space<vmem>>, vector<120x84xf32>
    %cst_102 = arith.constant dense<0.000000e+00> : vector<1x84xf32>
    %121 = tpu.matmul %119, %120, %cst_102 {dimension_numbers = #tpu.dot_dimension_numbers<[1], [0], [0], [1], [0, 0, 1, 1], [], []>} : vector<1x120xf32>, vector<120x84xf32>, vector<1x84xf32> -> vector<1x84xf32>
    %c0_103 = arith.constant 0 : index
    %c0_104 = arith.constant 0 : index
    %122 = vector.load %arg13[%c0_103, %c0_104] : memref<1x84xf32, #tpu.memory_space<vmem>>, vector<1x84xf32>
    %123 = arith.addf %121, %122 : vector<1x84xf32>
    %cst_105 = arith.constant 0.000000e+00 : f32
    %124 = vector.broadcast %cst_105 : f32 to vector<1x84xf32>
    %125 = arith.maximumf %123, %124 : vector<1x84xf32>
    %c0_106 = arith.constant 0 : index
    %c0_107 = arith.constant 0 : index
    %126 = vector.load %arg14[%c0_106, %c0_107] : memref<84x10xf32, #tpu.memory_space<vmem>>, vector<84x10xf32>
    %cst_108 = arith.constant dense<0.000000e+00> : vector<1x10xf32>
    %127 = tpu.matmul %125, %126, %cst_108 {dimension_numbers = #tpu.dot_dimension_numbers<[1], [0], [0], [1], [0, 0, 1, 1], [], []>} : vector<1x84xf32>, vector<84x10xf32>, vector<1x10xf32> -> vector<1x10xf32>
    %c0_109 = arith.constant 0 : index
    %c0_110 = arith.constant 0 : index
    %128 = vector.load %arg15[%c0_109, %c0_110] : memref<1x10xf32, #tpu.memory_space<vmem>>, vector<1x10xf32>
    %129 = arith.addf %127, %128 : vector<1x10xf32>
    %c0_111 = arith.constant 0 : index
    %c0_112 = arith.constant 0 : index
    %c0_113 = arith.constant 0 : index
    %130 = vector.load %arg16[%c0_111, %c0_112, %c0_113] : memref<1x1x10xf32, #tpu.memory_space<vmem>>, vector<1x1x10xf32>
    %131 = vector.shape_cast %130 : vector<1x1x10xf32> to vector<1x10xf32>
    %132 = vector.shape_cast %129 : vector<1x10xf32> to vector<1x1x10xf32>
    tpu.vector_store %arg16[%c0_111, %c0_112, %c0_113], %132 {strides = array<i32>} : memref<1x1x10xf32, #tpu.memory_space<vmem>>, vector<1x1x10xf32>,
    return
  }
  func.func @transform_0(%arg0: i32) -> (i32, i32, i32) {
    %c0_i32 = arith.constant 0 : i32
    %c0_i32_0 = arith.constant 0 : i32
    %c0_i32_1 = arith.constant 0 : i32
    return %arg0, %c0_i32, %c0_i32_0 : i32, i32, i32
  }
  func.func @transform_1(%arg0: i32) -> (i32, i32, i32) {
    %c0_i32 = arith.constant 0 : i32
    %c0_i32_0 = arith.constant 0 : i32
    %c0_i32_1 = arith.constant 0 : i32
    %c0_i32_2 = arith.constant 0 : i32
    return %c0_i32, %c0_i32_0, %c0_i32_1 : i32, i32, i32
  }
  func.func @transform_2(%arg0: i32) -> (i32, i32) {
    %c0_i32 = arith.constant 0 : i32
    %c0_i32_0 = arith.constant 0 : i32
    %c0_i32_1 = arith.constant 0 : i32
    return %c0_i32, %c0_i32_0 : i32, i32
  }
  func.func @transform_3(%arg0: i32) -> (i32, i32, i32) {
    %c0_i32 = arith.constant 0 : i32
    %c0_i32_0 = arith.constant 0 : i32
    %c0_i32_1 = arith.constant 0 : i32
    %c0_i32_2 = arith.constant 0 : i32
    return %c0_i32, %c0_i32_0, %c0_i32_1 : i32, i32, i32
  }
  func.func @transform_4(%arg0: i32) -> (i32, i32, i32) {
    %c0_i32 = arith.constant 0 : i32
    %c0_i32_0 = arith.constant 0 : i32
    %c0_i32_1 = arith.constant 0 : i32
    %c0_i32_2 = arith.constant 0 : i32
    return %c0_i32, %c0_i32_0, %c0_i32_1 : i32, i32, i32
  }
  func.func @transform_5(%arg0: i32) -> (i32, i32, i32) {
    %c0_i32 = arith.constant 0 : i32
    %c0_i32_0 = arith.constant 0 : i32
    %c0_i32_1 = arith.constant 0 : i32
    %c0_i32_2 = arith.constant 0 : i32
    return %c0_i32, %c0_i32_0, %c0_i32_1 : i32, i32, i32
  }
  func.func @transform_6(%arg0: i32) -> (i32, i32) {
    %c0_i32 = arith.constant 0 : i32
    %c0_i32_0 = arith.constant 0 : i32
    %c0_i32_1 = arith.constant 0 : i32
    return %c0_i32, %c0_i32_0 : i32, i32
  }
  func.func @transform_7(%arg0: i32) -> (i32, i32, i32) {
    %c0_i32 = arith.constant 0 : i32
    %c0_i32_0 = arith.constant 0 : i32
    %c0_i32_1 = arith.constant 0 : i32
    %c0_i32_2 = arith.constant 0 : i32
    return %c0_i32, %c0_i32_0, %c0_i32_1 : i32, i32, i32
  }
  func.func @transform_8(%arg0: i32) -> (i32, i32, i32) {
    %c0_i32 = arith.constant 0 : i32
    %c0_i32_0 = arith.constant 0 : i32
    %c0_i32_1 = arith.constant 0 : i32
    %c0_i32_2 = arith.constant 0 : i32
    return %c0_i32, %c0_i32_0, %c0_i32_1 : i32, i32, i32
  }
  func.func @transform_9(%arg0: i32) -> (i32, i32, i32) {
    %c0_i32 = arith.constant 0 : i32
    %c0_i32_0 = arith.constant 0 : i32
    %c0_i32_1 = arith.constant 0 : i32
    %c0_i32_2 = arith.constant 0 : i32
    return %c0_i32, %c0_i32_0, %c0_i32_1 : i32, i32, i32
  }
  func.func @transform_10(%arg0: i32) -> (i32, i32) {
    %c0_i32 = arith.constant 0 : i32
    %c0_i32_0 = arith.constant 0 : i32
    %c0_i32_1 = arith.constant 0 : i32
    return %c0_i32, %c0_i32_0 : i32, i32
  }
  func.func @transform_11(%arg0: i32) -> (i32, i32) {
    %c0_i32 = arith.constant 0 : i32
    %c0_i32_0 = arith.constant 0 : i32
    %c0_i32_1 = arith.constant 0 : i32
    return %c0_i32, %c0_i32_0 : i32, i32
  }
  func.func @transform_12(%arg0: i32) -> (i32, i32) {
    %c0_i32 = arith.constant 0 : i32
    %c0_i32_0 = arith.constant 0 : i32
    %c0_i32_1 = arith.constant 0 : i32
    return %c0_i32, %c0_i32_0 : i32, i32
  }
  func.func @transform_13(%arg0: i32) -> (i32, i32) {
    %c0_i32 = arith.constant 0 : i32
    %c0_i32_0 = arith.constant 0 : i32
    %c0_i32_1 = arith.constant 0 : i32
    return %c0_i32, %c0_i32_0 : i32, i32
  }
  func.func @transform_14(%arg0: i32) -> (i32, i32) {
    %c0_i32 = arith.constant 0 : i32
    %c0_i32_0 = arith.constant 0 : i32
    %c0_i32_1 = arith.constant 0 : i32
    return %c0_i32, %c0_i32_0 : i32, i32
  }
  func.func @transform_15(%arg0: i32) -> (i32, i32, i32) {
    %c0_i32 = arith.constant 0 : i32
    %c0_i32_0 = arith.constant 0 : i32
    %c0_i32_1 = arith.constant 0 : i32
    return %arg0, %c0_i32, %c0_i32_0 : i32, i32, i32
  }
}

</mosaic_0001>

<llo_original>
// kernel: net_forward.1
$region0: #{net_forward.1}
  #allocation0 [shape = 'u32[]', space=smem, size = 0x4, offset = 0x4, fixed_abs, tag = 'smem constant byte address 0x4 - core index']
  #allocation1 [shape = 'u32[144,128]{1,0:T(1,128)}', space=vmem, size = 0x12000, scoped, tag = 'internal scratch']
  %s0 = inlined_call_operand.vmem [shape: f32[2,32,32], index: 0, kind: input, shape index: {}]
  %s1 = inlined_call_operand.vmem [shape: f32[5,32,168], index: 1, kind: input, shape index: {}]
  %s2 = inlined_call_operand.vmem [shape: f32[1,168], index: 2, kind: input, shape index: {}]
  %s3 = inlined_call_operand.vmem [shape: f32[2,14,28], index: 3, kind: input, shape index: {}]
  %s4 = inlined_call_operand.vmem [shape: f32[2,168,84], index: 4, kind: input, shape index: {}]
  %s5 = inlined_call_operand.vmem [shape: f32[5,84,160], index: 5, kind: input, shape index: {}]
  %s6 = inlined_call_operand.vmem [shape: f32[1,160], index: 6, kind: input, shape index: {}]
  %s7 = inlined_call_operand.vmem [shape: f32[2,5,10], index: 7, kind: input, shape index: {}]
  %s8 = inlined_call_operand.vmem [shape: f32[2,160,80], index: 8, kind: input, shape index: {}]
  %s9 = inlined_call_operand.vmem [shape: f32[5,80,120], index: 9, kind: input, shape index: {}]
  %s10 = inlined_call_operand.vmem [shape: f32[1,120], index: 10, kind: input, shape index: {}]
  %s11 = inlined_call_operand.vmem [shape: f32[120,84], index: 11, kind: input, shape index: {}]
  %s12 = inlined_call_operand.vmem [shape: f32[1,84], index: 12, kind: input, shape index: {}]
  %s13 = inlined_call_operand.vmem [shape: f32[84,10], index: 13, kind: input, shape index: {}]
  %s14 = inlined_call_operand.vmem [shape: f32[1,10], index: 14, kind: input, shape index: {}]
  %s15 = inlined_call_operand.hbm [shape: f32[2,1,10], index: 15, kind: output, shape index: {}]
  %s16 = sld [smem:[#allocation0]]
  $region93: #{net_forward.1} parent=0
    _
  %s18 = ssub.s32 1, %s16
  %s19 = scalar_select 0, %s18, %s16
  $region1: #{net_forward.1} parent=0
    #allocation2 [shape = 'u8[1024]{0}', space=vmem, size = 0x400, scoped, tag = 'output window, operand 0']
    #allocation3 [shape = 's32[2]{0}', space=sflag, size = 0x8, scoped, tag = 'scoped memory for net_forward.1']
    %20 = vsyncpa [#allocation3], 0
    %s21 = scalar_lea.sflag [#allocation3], 1
    %22 = vsyncpa %s21, 0
    loop: start=0, step=1, limit=4
    $region2: #{net_forward.1} parent=1 // loop_pre_header
      _
    $region3: #{net_forward.1} parent=1 // loop_header
      %s24 = sphi 0, %s28
      %p25 = scmp.ge.s32.totalorder %s24, 4
      %s34 = sphi 0, %s36
      %s37 = sphi 0, %s34
      %s38 = sphi 0, %s37
      %s54 = sphi 0, %s38
      %s58 = sphi 0, %s58
      %s60 = sphi 0, %s58
      %s61 = sphi 0, %s60
      %s75 = sphi 0, %s61
      %s79 = sphi 0, %s79
      %s81 = sphi 0, %s79
      %s82 = sphi 0, %s81
      %s96 = sphi 0, %s82
      %s100 = sphi 0, %s100
      %s102 = sphi 0, %s100
      %s103 = sphi 0, %s102
      %s117 = sphi 0, %s103
      %s121 = sphi 0, %s121
      %s123 = sphi 0, %s121
      %s124 = sphi 0, %s123
      %s138 = sphi 0, %s124
      %s142 = sphi 0, %s142
      %s144 = sphi 0, %s142
      %s145 = sphi 0, %s144
      %s159 = sphi 0, %s145
      %s163 = sphi 0, %s163
      %s165 = sphi 0, %s163
      %s166 = sphi 0, %s165
      %s180 = sphi 0, %s166
      %s184 = sphi 0, %s184
      %s186 = sphi 0, %s184
      %s187 = sphi 0, %s186
      %s201 = sphi 0, %s187
      %s205 = sphi 0, %s205
      %s207 = sphi 0, %s205
      %s208 = sphi 0, %s207
      %s222 = sphi 0, %s208
      %s226 = sphi 0, %s226
      %s228 = sphi 0, %s226
      %s229 = sphi 0, %s228
      %s243 = sphi 0, %s229
      %s247 = sphi 0, %s247
      %s249 = sphi 0, %s247
      %s250 = sphi 0, %s249
      %s264 = sphi 0, %s250
      %s268 = sphi 0, %s268
      %s270 = sphi 0, %s268
      %s271 = sphi 0, %s270
      %s285 = sphi 0, %s271
      %s289 = sphi 0, %s289
      %s291 = sphi 0, %s289
      %s292 = sphi 0, %s291
      %s306 = sphi 0, %s292
      %s310 = sphi 0, %s310
      %s312 = sphi 0, %s310
      %s313 = sphi 0, %s312
      %s327 = sphi 0, %s313
      %s331 = sphi 0, %s331
      %s333 = sphi 0, %s331
      %s334 = sphi 0, %s333
      %s348 = sphi 0, %s334
      %s354 = sphi 0, %s356
      %s357 = sphi 0, %s354
      %s358 = sphi 0, %s357
      %s374 = sphi 0, %s358
    $region4: #{net_forward.1} parent=1 // loop_header_branch
      %27 = sbr.rel (%p25) target = $region8
    $region5: #{net_forward.1} parent=1 // loop_body
      %s29 = ssub.s32 %s24, 1
      %s30 = ssub.s32 %s24, 2
      %s31 = sadd.s32 %s24, 1
      %s32 = ssub.s32 %s24, %s31
      %p33 = scmp.eq.s32.totalorder %s32, 0
      %s35 = sadd.s32 %s34, 1
      %s36 = scalar_select %p33, %s34, %s35
      %p39 = pneg %p33
      %p40 = scmp.eq.s32.totalorder %s24, 1
      %p41 = por %p39, %p40
      %p42 = scmp.ne.s32.totalorder %s34, %s37
      %p43 = scmp.eq.s32.totalorder %s24, 0
      %p44 = por %p42, %p43
      %p45 = scmp.ne.s32.totalorder %s34, %s37
      %p46 = scmp.eq.s32.totalorder %s29, 1
      %p47 = por %p45, %p46
      %p48 = scmp.ne.s32.totalorder %s37, %s38
      %p49 = scmp.eq.s32.totalorder %s29, 0
      %p50 = por %p48, %p49
      %p51 = scmp.ne.s32.totalorder %s37, %s38
      %p52 = scmp.eq.s32.totalorder %s30, 1
      %p53 = por %p51, %p52
      %p55 = scmp.ne.s32.totalorder %s38, %s54
      %p56 = scmp.eq.s32.totalorder %s30, 0
      %p57 = por %p55, %p56
      %s59 = sadd.s32 %s58, 1
      %p62 = scmp.eq.s32.totalorder %s24, 1
      %p63 = scmp.ne.s32.totalorder %s58, %s60
      %p64 = scmp.eq.s32.totalorder %s24, 0
      %p65 = por %p63, %p64
      %p66 = scmp.ne.s32.totalorder %s58, %s60
      %p67 = scmp.eq.s32.totalorder %s29, 1
      %p68 = por %p66, %p67
      %p69 = scmp.ne.s32.totalorder %s60, %s61
      %p70 = scmp.eq.s32.totalorder %s29, 0
      %p71 = por %p69, %p70
      %p72 = scmp.ne.s32.totalorder %s60, %s61
      %p73 = scmp.eq.s32.totalorder %s30, 1
      %p74 = por %p72, %p73
      %p76 = scmp.ne.s32.totalorder %s61, %s75
      %p77 = scmp.eq.s32.totalorder %s30, 0
      %p78 = por %p76, %p77
      %s80 = sadd.s32 %s79, 1
      %p83 = scmp.eq.s32.totalorder %s24, 1
      %p84 = scmp.ne.s32.totalorder %s79, %s81
      %p85 = scmp.eq.s32.totalorder %s24, 0
      %p86 = por %p84, %p85
      %p87 = scmp.ne.s32.totalorder %s79, %s81
      %p88 = scmp.eq.s32.totalorder %s29, 1
      %p89 = por %p87, %p88
      %p90 = scmp.ne.s32.totalorder %s81, %s82
      %p91 = scmp.eq.s32.totalorder %s29, 0
      %p92 = por %p90, %p91
      %p93 = scmp.ne.s32.totalorder %s81, %s82
      %p94 = scmp.eq.s32.totalorder %s30, 1
      %p95 = por %p93, %p94
      %p97 = scmp.ne.s32.totalorder %s82, %s96
      %p98 = scmp.eq.s32.totalorder %s30, 0
      %p99 = por %p97, %p98
      %s101 = sadd.s32 %s100, 1
      %p104 = scmp.eq.s32.totalorder %s24, 1
      %p105 = scmp.ne.s32.totalorder %s100, %s102
      %p106 = scmp.eq.s32.totalorder %s24, 0
      %p107 = por %p105, %p106
      %p108 = scmp.ne.s32.totalorder %s100, %s102
      %p109 = scmp.eq.s32.totalorder %s29, 1
      %p110 = por %p108, %p109
      %p111 = scmp.ne.s32.totalorder %s102, %s103
      %p112 = scmp.eq.s32.totalorder %s29, 0
      %p113 = por %p111, %p112
      %p114 = scmp.ne.s32.totalorder %s102, %s103
      %p115 = scmp.eq.s32.totalorder %s30, 1
      %p116 = por %p114, %p115
      %p118 = scmp.ne.s32.totalorder %s103, %s117
      %p119 = scmp.eq.s32.totalorder %s30, 0
      %p120 = por %p118, %p119
      %s122 = sadd.s32 %s121, 1
      %p125 = scmp.eq.s32.totalorder %s24, 1
      %p126 = scmp.ne.s32.totalorder %s121, %s123
      %p127 = scmp.eq.s32.totalorder %s24, 0
      %p128 = por %p126, %p127
      %p129 = scmp.ne.s32.totalorder %s121, %s123
      %p130 = scmp.eq.s32.totalorder %s29, 1
      %p131 = por %p129, %p130
      %p132 = scmp.ne.s32.totalorder %s123, %s124
      %p133 = scmp.eq.s32.totalorder %s29, 0
      %p134 = por %p132, %p133
      %p135 = scmp.ne.s32.totalorder %s123, %s124
      %p136 = scmp.eq.s32.totalorder %s30, 1
      %p137 = por %p135, %p136
      %p139 = scmp.ne.s32.totalorder %s124, %s138
      %p140 = scmp.eq.s32.totalorder %s30, 0
      %p141 = por %p139, %p140
      %s143 = sadd.s32 %s142, 1
      %p146 = scmp.eq.s32.totalorder %s24, 1
      %p147 = scmp.ne.s32.totalorder %s142, %s144
      %p148 = scmp.eq.s32.totalorder %s24, 0
      %p149 = por %p147, %p148
      %p150 = scmp.ne.s32.totalorder %s142, %s144
      %p151 = scmp.eq.s32.totalorder %s29, 1
      %p152 = por %p150, %p151
      %p153 = scmp.ne.s32.totalorder %s144, %s145
      %p154 = scmp.eq.s32.totalorder %s29, 0
      %p155 = por %p153, %p154
      %p156 = scmp.ne.s32.totalorder %s144, %s145
      %p157 = scmp.eq.s32.totalorder %s30, 1
      %p158 = por %p156, %p157
      %p160 = scmp.ne.s32.totalorder %s145, %s159
      %p161 = scmp.eq.s32.totalorder %s30, 0
      %p162 = por %p160, %p161
      %s164 = sadd.s32 %s163, 1
      %p167 = scmp.eq.s32.totalorder %s24, 1
      %p168 = scmp.ne.s32.totalorder %s163, %s165
      %p169 = scmp.eq.s32.totalorder %s24, 0
      %p170 = por %p168, %p169
      %p171 = scmp.ne.s32.totalorder %s163, %s165
      %p172 = scmp.eq.s32.totalorder %s29, 1
      %p173 = por %p171, %p172
      %p174 = scmp.ne.s32.totalorder %s165, %s166
      %p175 = scmp.eq.s32.totalorder %s29, 0
      %p176 = por %p174, %p175
      %p177 = scmp.ne.s32.totalorder %s165, %s166
      %p178 = scmp.eq.s32.totalorder %s30, 1
      %p179 = por %p177, %p178
      %p181 = scmp.ne.s32.totalorder %s166, %s180
      %p182 = scmp.eq.s32.totalorder %s30, 0
      %p183 = por %p181, %p182
      %s185 = sadd.s32 %s184, 1
      %p188 = scmp.eq.s32.totalorder %s24, 1
      %p189 = scmp.ne.s32.totalorder %s184, %s186
      %p190 = scmp.eq.s32.totalorder %s24, 0
      %p191 = por %p189, %p190
      %p192 = scmp.ne.s32.totalorder %s184, %s186
      %p193 = scmp.eq.s32.totalorder %s29, 1
      %p194 = por %p192, %p193
      %p195 = scmp.ne.s32.totalorder %s186, %s187
      %p196 = scmp.eq.s32.totalorder %s29, 0
      %p197 = por %p195, %p196
      %p198 = scmp.ne.s32.totalorder %s186, %s187
      %p199 = scmp.eq.s32.totalorder %s30, 1
      %p200 = por %p198, %p199
      %p202 = scmp.ne.s32.totalorder %s187, %s201
      %p203 = scmp.eq.s32.totalorder %s30, 0
      %p204 = por %p202, %p203
      %s206 = sadd.s32 %s205, 1
      %p209 = scmp.eq.s32.totalorder %s24, 1
      %p210 = scmp.ne.s32.totalorder %s205, %s207
      %p211 = scmp.eq.s32.totalorder %s24, 0
      %p212 = por %p210, %p211
      %p213 = scmp.ne.s32.totalorder %s205, %s207
      %p214 = scmp.eq.s32.totalorder %s29, 1
      %p215 = por %p213, %p214
      %p216 = scmp.ne.s32.totalorder %s207, %s208
      %p217 = scmp.eq.s32.totalorder %s29, 0
      %p218 = por %p216, %p217
      %p219 = scmp.ne.s32.totalorder %s207, %s208
      %p220 = scmp.eq.s32.totalorder %s30, 1
      %p221 = por %p219, %p220
      %p223 = scmp.ne.s32.totalorder %s208, %s222
      %p224 = scmp.eq.s32.totalorder %s30, 0
      %p225 = por %p223, %p224
      %s227 = sadd.s32 %s226, 1
      %p230 = scmp.eq.s32.totalorder %s24, 1
      %p231 = scmp.ne.s32.totalorder %s226, %s228
      %p232 = scmp.eq.s32.totalorder %s24, 0
      %p233 = por %p231, %p232
      %p234 = scmp.ne.s32.totalorder %s226, %s228
      %p235 = scmp.eq.s32.totalorder %s29, 1
      %p236 = por %p234, %p235
      %p237 = scmp.ne.s32.totalorder %s228, %s229
      %p238 = scmp.eq.s32.totalorder %s29, 0
      %p239 = por %p237, %p238
      %p240 = scmp.ne.s32.totalorder %s228, %s229
      %p241 = scmp.eq.s32.totalorder %s30, 1
      %p242 = por %p240, %p241
      %p244 = scmp.ne.s32.totalorder %s229, %s243
      %p245 = scmp.eq.s32.totalorder %s30, 0
      %p246 = por %p244, %p245
      %s248 = sadd.s32 %s247, 1
      %p251 = scmp.eq.s32.totalorder %s24, 1
      %p252 = scmp.ne.s32.totalorder %s247, %s249
      %p253 = scmp.eq.s32.totalorder %s24, 0
      %p254 = por %p252, %p253
      %p255 = scmp.ne.s32.totalorder %s247, %s249
      %p256 = scmp.eq.s32.totalorder %s29, 1
      %p257 = por %p255, %p256
      %p258 = scmp.ne.s32.totalorder %s249, %s250
      %p259 = scmp.eq.s32.totalorder %s29, 0
      %p260 = por %p258, %p259
      %p261 = scmp.ne.s32.totalorder %s249, %s250
      %p262 = scmp.eq.s32.totalorder %s30, 1
      %p263 = por %p261, %p262
      %p265 = scmp.ne.s32.totalorder %s250, %s264
      %p266 = scmp.eq.s32.totalorder %s30, 0
      %p267 = por %p265, %p266
      %s269 = sadd.s32 %s268, 1
      %p272 = scmp.eq.s32.totalorder %s24, 1
      %p273 = scmp.ne.s32.totalorder %s268, %s270
      %p274 = scmp.eq.s32.totalorder %s24, 0
      %p275 = por %p273, %p274
      %p276 = scmp.ne.s32.totalorder %s268, %s270
      %p277 = scmp.eq.s32.totalorder %s29, 1
      %p278 = por %p276, %p277
      %p279 = scmp.ne.s32.totalorder %s270, %s271
      %p280 = scmp.eq.s32.totalorder %s29, 0
      %p281 = por %p279, %p280
      %p282 = scmp.ne.s32.totalorder %s270, %s271
      %p283 = scmp.eq.s32.totalorder %s30, 1
      %p284 = por %p282, %p283
      %p286 = scmp.ne.s32.totalorder %s271, %s285
      %p287 = scmp.eq.s32.totalorder %s30, 0
      %p288 = por %p286, %p287
      %s290 = sadd.s32 %s289, 1
      %p293 = scmp.eq.s32.totalorder %s24, 1
      %p294 = scmp.ne.s32.totalorder %s289, %s291
      %p295 = scmp.eq.s32.totalorder %s24, 0
      %p296 = por %p294, %p295
      %p297 = scmp.ne.s32.totalorder %s289, %s291
      %p298 = scmp.eq.s32.totalorder %s29, 1
      %p299 = por %p297, %p298
      %p300 = scmp.ne.s32.totalorder %s291, %s292
      %p301 = scmp.eq.s32.totalorder %s29, 0
      %p302 = por %p300, %p301
      %p303 = scmp.ne.s32.totalorder %s291, %s292
      %p304 = scmp.eq.s32.totalorder %s30, 1
      %p305 = por %p303, %p304
      %p307 = scmp.ne.s32.totalorder %s292, %s306
      %p308 = scmp.eq.s32.totalorder %s30, 0
      %p309 = por %p307, %p308
      %s311 = sadd.s32 %s310, 1
      %p314 = scmp.eq.s32.totalorder %s24, 1
      %p315 = scmp.ne.s32.totalorder %s310, %s312
      %p316 = scmp.eq.s32.totalorder %s24, 0
      %p317 = por %p315, %p316
      %p318 = scmp.ne.s32.totalorder %s310, %s312
      %p319 = scmp.eq.s32.totalorder %s29, 1
      %p320 = por %p318, %p319
      %p321 = scmp.ne.s32.totalorder %s312, %s313
      %p322 = scmp.eq.s32.totalorder %s29, 0
      %p323 = por %p321, %p322
      %p324 = scmp.ne.s32.totalorder %s312, %s313
      %p325 = scmp.eq.s32.totalorder %s30, 1
      %p326 = por %p324, %p325
      %p328 = scmp.ne.s32.totalorder %s313, %s327
      %p329 = scmp.eq.s32.totalorder %s30, 0
      %p330 = por %p328, %p329
      %s332 = sadd.s32 %s331, 1
      %p335 = scmp.eq.s32.totalorder %s24, 1
      %p336 = scmp.ne.s32.totalorder %s331, %s333
      %p337 = scmp.eq.s32.totalorder %s24, 0
      %p338 = por %p336, %p337
      %p339 = scmp.ne.s32.totalorder %s331, %s333
      %p340 = scmp.eq.s32.totalorder %s29, 1
      %p341 = por %p339, %p340
      %p342 = scmp.ne.s32.totalorder %s333, %s334
      %p343 = scmp.eq.s32.totalorder %s29, 0
      %p344 = por %p342, %p343
      %p345 = scmp.ne.s32.totalorder %s333, %s334
      %p346 = scmp.eq.s32.totalorder %s30, 1
      %p347 = por %p345, %p346
      %p349 = scmp.ne.s32.totalorder %s334, %s348
      %p350 = scmp.eq.s32.totalorder %s30, 0
      %p351 = por %p349, %p350
      %s352 = ssub.s32 %s24, %s31
      %p353 = scmp.eq.s32.totalorder %s352, 0
      %s355 = sadd.s32 %s354, 1
      %s356 = scalar_select %p353, %s354, %s355
      %p359 = pneg %p353
      %p360 = scmp.eq.s32.totalorder %s24, 1
      %p361 = por %p359, %p360
      %p362 = scmp.ne.s32.totalorder %s354, %s357
      %p363 = scmp.eq.s32.totalorder %s24, 0
      %p364 = por %p362, %p363
      %p365 = scmp.ne.s32.totalorder %s354, %s357
      %p366 = scmp.eq.s32.totalorder %s29, 1
      %p367 = por %p365, %p366
      %p368 = scmp.ne.s32.totalorder %s357, %s358
      %p369 = scmp.eq.s32.totalorder %s29, 0
      %p370 = por %p368, %p369
      %p371 = scmp.ne.s32.totalorder %s357, %s358
      %p372 = scmp.eq.s32.totalorder %s30, 1
      %p373 = por %p371, %p372
      %p375 = scmp.ne.s32.totalorder %s358, %s374
      %p376 = scmp.eq.s32.totalorder %s30, 0
      %p377 = por %p375, %p376
      %p378 = scmp.le.s32.totalorder 1, %s24
      %p379 = scmp.lt.s32.totalorder %s24, 3
      %p380 = pnand %p378, %p379
      %p381 = pneg %p380
      // Predicated region
      $region9: #{net_forward.1} parent=5 // pred_check
        _
      $region10: #{net_forward.1} parent=5 // pred_check_branch
        %383 = sbr.rel (%p380) target = $region12
      $region11: #{net_forward.1} parent=5 // pred_region
        %s384 = ssub.s32 %s24, 1
        // Predicated region
        $region13: #{net_forward.1} parent=11 // pred_check
          %p385 = pneg %p71
        $region14: #{net_forward.1} parent=11 // pred_check_branch
          %387 = sbr.rel (%p385) target = $region16
        $region15: #{net_forward.1} parent=11 // pred_region
          _
        $region16: #{net_forward.1} parent=11 // pred_fallthru
          _
        // Predicated region
        $region17: #{net_forward.1} parent=11 // pred_check
          %p388 = pneg %p92
        $region18: #{net_forward.1} parent=11 // pred_check_branch
          %390 = sbr.rel (%p388) target = $region20
        $region19: #{net_forward.1} parent=11 // pred_region
          _
        $region20: #{net_forward.1} parent=11 // pred_fallthru
          _
        // Predicated region
        $region21: #{net_forward.1} parent=11 // pred_check
          %p391 = pneg %p113
        $region22: #{net_forward.1} parent=11 // pred_check_branch
          %393 = sbr.rel (%p391) target = $region24
        $region23: #{net_forward.1} parent=11 // pred_region
          _
        $region24: #{net_forward.1} parent=11 // pred_fallthru
          _
        // Predicated region
        $region25: #{net_forward.1} parent=11 // pred_check
          %p394 = pneg %p134
        $region26: #{net_forward.1} parent=11 // pred_check_branch
          %396 = sbr.rel (%p394) target = $region28
        $region27: #{net_forward.1} parent=11 // pred_region
          _
        $region28: #{net_forward.1} parent=11 // pred_fallthru
          _
        // Predicated region
        $region29: #{net_forward.1} parent=11 // pred_check
          %p397 = pneg %p155
        $region30: #{net_forward.1} parent=11 // pred_check_branch
          %399 = sbr.rel (%p397) target = $region32
        $region31: #{net_forward.1} parent=11 // pred_region
          _
        $region32: #{net_forward.1} parent=11 // pred_fallthru
          _
        // Predicated region
        $region33: #{net_forward.1} parent=11 // pred_check
          %p400 = pneg %p176
        $region34: #{net_forward.1} parent=11 // pred_check_branch
          %402 = sbr.rel (%p400) target = $region36
        $region35: #{net_forward.1} parent=11 // pred_region
          _
        $region36: #{net_forward.1} parent=11 // pred_fallthru
          _
        // Predicated region
        $region37: #{net_forward.1} parent=11 // pred_check
          %p403 = pneg %p197
        $region38: #{net_forward.1} parent=11 // pred_check_branch
          %405 = sbr.rel (%p403) target = $region40
        $region39: #{net_forward.1} parent=11 // pred_region
          _
        $region40: #{net_forward.1} parent=11 // pred_fallthru
          _
        // Predicated region
        $region41: #{net_forward.1} parent=11 // pred_check
          %p406 = pneg %p218
        $region42: #{net_forward.1} parent=11 // pred_check_branch
          %408 = sbr.rel (%p406) target = $region44
        $region43: #{net_forward.1} parent=11 // pred_region
          _
        $region44: #{net_forward.1} parent=11 // pred_fallthru
          _
        // Predicated region
        $region45: #{net_forward.1} parent=11 // pred_check
          %p409 = pneg %p239
        $region46: #{net_forward.1} parent=11 // pred_check_branch
          %411 = sbr.rel (%p409) target = $region48
        $region47: #{net_forward.1} parent=11 // pred_region
          _
        $region48: #{net_forward.1} parent=11 // pred_fallthru
          _
        // Predicated region
        $region49: #{net_forward.1} parent=11 // pred_check
          %p412 = pneg %p260
        $region50: #{net_forward.1} parent=11 // pred_check_branch
          %414 = sbr.rel (%p412) target = $region52
        $region51: #{net_forward.1} parent=11 // pred_region
          _
        $region52: #{net_forward.1} parent=11 // pred_fallthru
          _
        // Predicated region
        $region53: #{net_forward.1} parent=11 // pred_check
          %p415 = pneg %p281
        $region54: #{net_forward.1} parent=11 // pred_check_branch
          %417 = sbr.rel (%p415) target = $region56
        $region55: #{net_forward.1} parent=11 // pred_region
          _
        $region56: #{net_forward.1} parent=11 // pred_fallthru
          _
        // Predicated region
        $region57: #{net_forward.1} parent=11 // pred_check
          %p418 = pneg %p302
        $region58: #{net_forward.1} parent=11 // pred_check_branch
          %420 = sbr.rel (%p418) target = $region60
        $region59: #{net_forward.1} parent=11 // pred_region
          _
        $region60: #{net_forward.1} parent=11 // pred_fallthru
          _
        // Predicated region
        $region61: #{net_forward.1} parent=11 // pred_check
          %p421 = pneg %p323
        $region62: #{net_forward.1} parent=11 // pred_check_branch
          %423 = sbr.rel (%p421) target = $region64
        $region63: #{net_forward.1} parent=11 // pred_region
          _
        $region64: #{net_forward.1} parent=11 // pred_fallthru
          _
        // Predicated region
        $region65: #{net_forward.1} parent=11 // pred_check
          %p424 = pneg %p344
        $region66: #{net_forward.1} parent=11 // pred_check_branch
          %426 = sbr.rel (%p424) target = $region68
        $region67: #{net_forward.1} parent=11 // pred_region
          _
        $region68: #{net_forward.1} parent=11 // pred_fallthru
          _
      $region12: #{net_forward.1} parent=5 // pred_fallthru
        _
      %p427 = scmp.lt.s32.totalorder %s24, 2
      // Predicated region
      $region69: #{net_forward.1} parent=5 // pred_check
        %p428 = pneg %p427
      $region70: #{net_forward.1} parent=5 // pred_check_branch
        %430 = sbr.rel (%p428) target = $region72
      $region71: #{net_forward.1} parent=5 // pred_region
        // Predicated region
        $region73: #{net_forward.1} parent=71 // pred_check
          %p431 = pneg %p44
        $region74: #{net_forward.1} parent=71 // pred_check_branch
          %433 = sbr.rel (%p431) target = $region76
        $region75: #{net_forward.1} parent=71 // pred_region
          %p434 = scmp.lt.s32.totalorder %s24, 1
          %s435 = scalar_select %p434, %s24, 1
          %s436 = smul.addr %s435, 4
          %s437 = smul.addr %s436, 8
          %s438 = scalar_lea.vmem %s0, %s437
        $region76: #{net_forward.1} parent=71 // pred_fallthru
          _
      $region72: #{net_forward.1} parent=5 // pred_fallthru
        _
      %p439 = scmp.le.s32.totalorder 1, %s24
      %p440 = scmp.lt.s32.totalorder %s24, 3
      %p441 = pnand %p439, %p440
      %p442 = pneg %p441
      // Predicated region
      $region77: #{net_forward.1} parent=5 // pred_check
        _
      $region78: #{net_forward.1} parent=5 // pred_check_branch
        %444 = sbr.rel (%p441) target = $region80
      $region79: #{net_forward.1} parent=5 // pred_region
        %s445 = ssub.s32 %s24, 1
        %p446 = scmp.lt.s32.totalorder %s29, 1
        %s447 = scalar_select %p446, %s29, 1
        %s448 = smul.addr %s447, 4
        %s449 = smul.addr %s448, 8
        %s450 = scalar_lea.vmem %s0, %s449
        %p451 = pneg %p50
        %p452 = pneg %p47
        %p453 = pneg %p71
        %p454 = pneg %p68
        %p455 = pneg %p92
        %p456 = pneg %p89
        %p457 = pneg %p113
        %p458 = pneg %p110
        %p459 = pneg %p134
        %p460 = pneg %p131
        %p461 = pneg %p155
        %p462 = pneg %p152
        %p463 = pneg %p176
        %p464 = pneg %p173
        %p465 = pneg %p197
        %p466 = pneg %p194
        %p467 = pneg %p218
        %p468 = pneg %p215
        %p469 = pneg %p239
        %p470 = pneg %p236
        %p471 = pneg %p260
        %p472 = pneg %p257
        %p473 = pneg %p281
        %p474 = pneg %p278
        %p475 = pneg %p302
        %p476 = pneg %p299
        %p477 = pneg %p323
        %p478 = pneg %p320
        %p479 = pneg %p344
        %p480 = pneg %p341
        %p481 = pneg %p370
        %p482 = pneg %p367
        %s483 = sand.u32 %s357, 1
        %s484 = scalar_lea.sflag [#allocation3], %s483
        %s485 = sand.u32 %s357, 1
        %s486 = scalar_lea.vmem [#allocation2], %s485
        %p487 = scmp.lt.s32.totalorder %s29, 1
        %s488 = scalar_select %p487, %s29, 1
        %s489 = smul.addr %s488, 4
        %s490 = smul.addr %s489, 8
        %s491 = scalar_lea.vmem %s0, %s490
        %v492 = vld [vmem:[%s491] sm:$0xff]
        %v493 = vld [vmem:[%s491 + $0x8] sm:$0xff]
        %v494 = vld [vmem:[%s491 + $0x10] sm:$0xff]
        %v495 = vld [vmem:[%s491 + $0x18] sm:$0xff]
        %v496 = vld [vmem:[%s1] sm:$0xff]
        %v497 = vld [vmem:[%s1 + $0x8] sm:$0xff]
        %v498 = vld [vmem:[%s1 + $0x10] sm:$0xff]
        %v499 = vld [vmem:[%s1 + $0x18] sm:$0xff]
        %v500 = vld [vmem:[%s1 + $0x20] sm:$0xff]
        %v501 = vld [vmem:[%s1 + $0x28] sm:$0xff]
        %v502 = vld [vmem:[%s1 + $0x30] sm:$0xff]
        %v503 = vld [vmem:[%s1 + $0x38] sm:$0xff]
        %s504 = scalar_lea.vmem %s1, 64
        %v505 = vld [vmem:[%s504] sm:$0xff]
        %v506 = vld [vmem:[%s504 + $0x8] sm:$0xff]
        %v507 = vld [vmem:[%s504 + $0x10] sm:$0xff]
        %v508 = vld [vmem:[%s504 + $0x18] sm:$0xff]
        %v509 = vld [vmem:[%s504 + $0x20] sm:$0xff]
        %v510 = vld [vmem:[%s504 + $0x28] sm:$0xff]
        %v511 = vld [vmem:[%s504 + $0x30] sm:$0xff]
        %v512 = vld [vmem:[%s504 + $0x38] sm:$0xff]
        %vm517 = vcmask 1046528
        %v518 = vrot.slane %v492, 1
        %v519 = vrot.slane %v493, 1
        %v520 = vsel %vm517, %v518, %v519
        %v521 = vrot.slane %v494, 1
        %v522 = vsel %vm517, %v519, %v521
        %v523 = vrot.slane %v495, 1
        %v524 = vsel %vm517, %v521, %v523
        %vm525 = vcmask 261120
        %v526 = vsel %vm525, %v520, 0
        %v528 = vsel %vm525, %v522, 0
        %v530 = vsel %vm525, %v524, 0
        %v532 = vsel %vm525, %v523, 0
        %534 = vmatprep.subr.mxu0 %v506
        %535 = vmatpush1.msra.mxu0 %v505
        %536 = vmatprep.subr.mxu0 %v508
        %537 = vmatpush1.msra.mxu0 %v507
        %538 = vmatprep.subr.mxu0 %v510
        %539 = vmatpush1.msra.mxu0 %v509
        %540 = vmatprep.subr.mxu0 %v512
        %541 = vmatpush1.msra.mxu0 %v511
        %542 = vmatprep.subr.mxu0 0.0
        %543 = vmatpush1.msra.mxu0 0.0
        %544 = vmatprep.subr.mxu0 0.0
        %545 = vmatpush1.msra.mxu0 0.0
        %546 = vmatprep.subr.mxu0 0.0
        %547 = vmatpush1.msra.mxu0 0.0
        %548 = vmatprep.subr.mxu0 0.0
        %549 = vmatpush1.msra.mxu0 0.0
        %550 = vmatprep.subr.mxu0 0.0
        %551 = vmatpush1.msra.mxu0 0.0
        %552 = vmatprep.subr.mxu0 0.0
        %553 = vmatpush1.msra.mxu0 0.0
        %554 = vmatprep.subr.mxu0 0.0
        %555 = vmatpush1.msra.mxu0 0.0
        %556 = vmatprep.subr.mxu0 0.0
        %557 = vmatpush1.msra.mxu0 0.0
        %558 = vmatprep.subr.mxu0 0.0
        %559 = vmatpush1.msra.mxu0 0.0
        %560 = vmatprep.subr.mxu0 0.0
        %561 = vmatpush1.msra.mxu0 0.0
        %562 = vmatprep.subr.mxu0 0.0
        %563 = vmatpush1.msra.mxu0 0.0
        %564 = vmatprep.subr.mxu0 0.0
        %565 = vmatpush1.msra.mxu0 0.0
        %566 = vmatprep.subr.mxu0 0.0
        %567 = vmatpush1.msra.mxu0 0.0
        %568 = vmatprep.subr.mxu0 0.0
        %569 = vmatpush1.msra.mxu0 0.0
        %570 = vmatprep.subr.mxu0 0.0
        %571 = vmatpush1.msra.mxu0 0.0
        %572 = vmatprep.subr.mxu0 0.0
        %573 = vmatpush1.msra.mxu0 0.0
        %574 = vmatprep.subr.mxu0 0.0
        %575 = vmatpush1.msra.mxu0 0.0
        %576 = vmatprep.subr.mxu0 0.0
        %577 = vmatpush1.msra.mxu0 0.0
        %578 = vmatprep.subr.mxu0 0.0
        %579 = vmatpush1.msra.mxu0 0.0
        %580 = vmatprep.subr.mxu0 0.0
        %581 = vmatpush1.msra.mxu0 0.0
        %582 = vmatprep.subr.mxu0 0.0
        %583 = vmatpush1.msra.mxu0 0.0
        %584 = vmatprep.subr.mxu0 0.0
        %585 = vmatpush1.msra.mxu0 0.0
        %586 = vmatprep.subr.mxu0 0.0
        %587 = vmatpush1.msra.mxu0 0.0
        %588 = vmatprep.subr.mxu0 0.0
        %589 = vmatpush1.msra.mxu0 0.0
        %590 = vmatprep.subr.mxu0 0.0
        %591 = vmatpush1.msra.mxu0 0.0
        %592 = vmatprep.subr.mxu0 0.0
        %593 = vmatpush1.msra.mxu0 0.0
        %594 = vmatprep.subr.mxu0 0.0
        %595 = vmatpush1.msra.mxu0 0.0
        %596 = vmatprep.subr.mxu0 0.0
        %597 = vmatpush1.msra.mxu0 0.0
        %598 = vmatprep.mubr.f32.mxu0 0.0
        %599 = vmatmul.mubr.f32.gmra.mrb[0].mxu0 %v526
        %v600 = vpop.f32.mrb[0].mxu0
        %v601 = vadd.f32 0.0, %v600
        %v602 = vpop.f32.mrb[0].mxu0
        %v603 = vadd.f32 0.0, %v602
        %604 = vmatprep.mubr.f32.mxu0 0.0
        %605 = vmatmul.mubr.f32.gmra.mrb[0].mxu0 %v528
        %v606 = vpop.f32.mrb[0].mxu0
        %v607 = vadd.f32 0.0, %v606
        %v608 = vpop.f32.mrb[0].mxu0
        %v609 = vadd.f32 0.0, %v608
        %610 = vmatprep.mubr.f32.mxu0 0.0
        %611 = vmatmul.mubr.f32.gmra.mrb[0].mxu0 %v530
        %v612 = vpop.f32.mrb[0].mxu0
        %v613 = vadd.f32 0.0, %v612
        %v614 = vpop.f32.mrb[0].mxu0
        %v615 = vadd.f32 0.0, %v614
        %616 = vmatprep.mubr.f32.mxu0 0.0
        %617 = vmatmul.mubr.f32.gmra.mrb[0].mxu0 %v532
        %v618 = vpop.f32.mrb[0].mxu0
        %v619 = vadd.f32 0.0, %v618
        %v620 = vpop.f32.mrb[0].mxu0
        %v621 = vadd.f32 0.0, %v620
        %622 = vdwg.mxu0
        %v623 = vsel %vm525, %v492, 0
        %v625 = vsel %vm525, %v493, 0
        %v627 = vsel %vm525, %v494, 0
        %v629 = vsel %vm525, %v495, 0
        %631 = vmatprep.subr.mxu0 %v497
        %632 = vmatpush1.msra.mxu0 %v496
        %633 = vmatprep.subr.mxu0 %v499
        %634 = vmatpush1.msra.mxu0 %v498
        %635 = vmatprep.subr.mxu0 %v501
        %636 = vmatpush1.msra.mxu0 %v500
        %637 = vmatprep.subr.mxu0 %v503
        %638 = vmatpush1.msra.mxu0 %v502
        %639 = vmatprep.subr.mxu0 0.0
        %640 = vmatpush1.msra.mxu0 0.0
        %641 = vmatprep.subr.mxu0 0.0
        %642 = vmatpush1.msra.mxu0 0.0
        %643 = vmatprep.subr.mxu0 0.0
        %644 = vmatpush1.msra.mxu0 0.0
        %645 = vmatprep.subr.mxu0 0.0
        %646 = vmatpush1.msra.mxu0 0.0
        %647 = vmatprep.subr.mxu0 0.0
        %648 = vmatpush1.msra.mxu0 0.0
        %649 = vmatprep.subr.mxu0 0.0
        %650 = vmatpush1.msra.mxu0 0.0
        %651 = vmatprep.subr.mxu0 0.0
        %652 = vmatpush1.msra.mxu0 0.0
        %653 = vmatprep.subr.mxu0 0.0
        %654 = vmatpush1.msra.mxu0 0.0
        %655 = vmatprep.subr.mxu0 0.0
        %656 = vmatpush1.msra.mxu0 0.0
        %657 = vmatprep.subr.mxu0 0.0
        %658 = vmatpush1.msra.mxu0 0.0
        %659 = vmatprep.subr.mxu0 0.0
        %660 = vmatpush1.msra.mxu0 0.0
        %661 = vmatprep.subr.mxu0 0.0
        %662 = vmatpush1.msra.mxu0 0.0
        %663 = vmatprep.subr.mxu0 0.0
        %664 = vmatpush1.msra.mxu0 0.0
        %665 = vmatprep.subr.mxu0 0.0
        %666 = vmatpush1.msra.mxu0 0.0
        %667 = vmatprep.subr.mxu0 0.0
        %668 = vmatpush1.msra.mxu0 0.0
        %669 = vmatprep.subr.mxu0 0.0
        %670 = vmatpush1.msra.mxu0 0.0
        %671 = vmatprep.subr.mxu0 0.0
        %672 = vmatpush1.msra.mxu0 0.0
        %673 = vmatprep.subr.mxu0 0.0
        %674 = vmatpush1.msra.mxu0 0.0
        %675 = vmatprep.subr.mxu0 0.0
        %676 = vmatpush1.msra.mxu0 0.0
        %677 = vmatprep.subr.mxu0 0.0
        %678 = vmatpush1.msra.mxu0 0.0
        %679 = vmatprep.subr.mxu0 0.0
        %680 = vmatpush1.msra.mxu0 0.0
        %681 = vmatprep.subr.mxu0 0.0
        %682 = vmatpush1.msra.mxu0 0.0
        %683 = vmatprep.subr.mxu0 0.0
        %684 = vmatpush1.msra.mxu0 0.0
        %685 = vmatprep.subr.mxu0 0.0
        %686 = vmatpush1.msra.mxu0 0.0
        %687 = vmatprep.subr.mxu0 0.0
        %688 = vmatpush1.msra.mxu0 0.0
        %689 = vmatprep.subr.mxu0 0.0
        %690 = vmatpush1.msra.mxu0 0.0
        %691 = vmatprep.subr.mxu0 0.0
        %692 = vmatpush1.msra.mxu0 0.0
        %693 = vmatprep.subr.mxu0 0.0
        %694 = vmatpush1.msra.mxu0 0.0
        %695 = vmatprep.mubr.f32.mxu0 0.0
        %696 = vmatmul.mubr.f32.gmra.mrb[0].mxu0 %v623
        %v697 = vpop.f32.mrb[0].mxu0
        %v698 = vadd.f32 %v601, %v697
        %v699 = vpop.f32.mrb[0].mxu0
        %v700 = vadd.f32 %v603, %v699
        %701 = vmatprep.mubr.f32.mxu0 0.0
        %702 = vmatmul.mubr.f32.gmra.mrb[0].mxu0 %v625
        %v703 = vpop.f32.mrb[0].mxu0
        %v704 = vadd.f32 %v607, %v703
        %v705 = vpop.f32.mrb[0].mxu0
        %v706 = vadd.f32 %v609, %v705
        %707 = vmatprep.mubr.f32.mxu0 0.0
        %708 = vmatmul.mubr.f32.gmra.mrb[0].mxu0 %v627
        %v709 = vpop.f32.mrb[0].mxu0
        %v710 = vadd.f32 %v613, %v709
        %v711 = vpop.f32.mrb[0].mxu0
        %v712 = vadd.f32 %v615, %v711
        %713 = vmatprep.mubr.f32.mxu0 0.0
        %714 = vmatmul.mubr.f32.gmra.mrb[0].mxu0 %v629
        %v715 = vpop.f32.mrb[0].mxu0
        %v716 = vadd.f32 %v619, %v715
        %v717 = vpop.f32.mrb[0].mxu0
        %v718 = vadd.f32 %v621, %v717
        %719 = vdwg.mxu0
        %s720 = scalar_lea.vmem %s1, 128
        %v721 = vld [vmem:[%s720] sm:$0xff]
        %v722 = vld [vmem:[%s720 + $0x8] sm:$0xff]
        %v723 = vld [vmem:[%s720 + $0x10] sm:$0xff]
        %v724 = vld [vmem:[%s720 + $0x18] sm:$0xff]
        %v725 = vld [vmem:[%s720 + $0x20] sm:$0xff]
        %v726 = vld [vmem:[%s720 + $0x28] sm:$0xff]
        %v727 = vld [vmem:[%s720 + $0x30] sm:$0xff]
        %v728 = vld [vmem:[%s720 + $0x38] sm:$0xff]
        %vm729 = vcmask 1045504
        %v730 = vrot.slane %v492, 2
        %v731 = vrot.slane %v493, 2
        %v732 = vsel %vm729, %v730, %v731
        %v733 = vrot.slane %v494, 2
        %v734 = vsel %vm729, %v731, %v733
        %v735 = vrot.slane %v495, 2
        %v736 = vsel %vm729, %v733, %v735
        %v737 = vsel %vm525, %v732, 0
        %v739 = vsel %vm525, %v734, 0
        %v741 = vsel %vm525, %v736, 0
        %v743 = vsel %vm525, %v735, 0
        %745 = vmatprep.subr.mxu0 %v722
        %746 = vmatpush1.msra.mxu0 %v721
        %747 = vmatprep.subr.mxu0 %v724
        %748 = vmatpush1.msra.mxu0 %v723
        %749 = vmatprep.subr.mxu0 %v726
        %750 = vmatpush1.msra.mxu0 %v725
        %751 = vmatprep.subr.mxu0 %v728
        %752 = vmatpush1.msra.mxu0 %v727
        %753 = vmatprep.subr.mxu0 0.0
        %754 = vmatpush1.msra.mxu0 0.0
        %755 = vmatprep.subr.mxu0 0.0
        %756 = vmatpush1.msra.mxu0 0.0
        %757 = vmatprep.subr.mxu0 0.0
        %758 = vmatpush1.msra.mxu0 0.0
        %759 = vmatprep.subr.mxu0 0.0
        %760 = vmatpush1.msra.mxu0 0.0
        %761 = vmatprep.subr.mxu0 0.0
        %762 = vmatpush1.msra.mxu0 0.0
        %763 = vmatprep.subr.mxu0 0.0
        %764 = vmatpush1.msra.mxu0 0.0
        %765 = vmatprep.subr.mxu0 0.0
        %766 = vmatpush1.msra.mxu0 0.0
        %767 = vmatprep.subr.mxu0 0.0
        %768 = vmatpush1.msra.mxu0 0.0
        %769 = vmatprep.subr.mxu0 0.0
        %770 = vmatpush1.msra.mxu0 0.0
        %771 = vmatprep.subr.mxu0 0.0
        %772 = vmatpush1.msra.mxu0 0.0
        %773 = vmatprep.subr.mxu0 0.0
        %774 = vmatpush1.msra.mxu0 0.0
        %775 = vmatprep.subr.mxu0 0.0
        %776 = vmatpush1.msra.mxu0 0.0
        %777 = vmatprep.subr.mxu0 0.0
        %778 = vmatpush1.msra.mxu0 0.0
        %779 = vmatprep.subr.mxu0 0.0
        %780 = vmatpush1.msra.mxu0 0.0
        %781 = vmatprep.subr.mxu0 0.0
        %782 = vmatpush1.msra.mxu0 0.0
        %783 = vmatprep.subr.mxu0 0.0
        %784 = vmatpush1.msra.mxu0 0.0
        %785 = vmatprep.subr.mxu0 0.0
        %786 = vmatpush1.msra.mxu0 0.0
        %787 = vmatprep.subr.mxu0 0.0
        %788 = vmatpush1.msra.mxu0 0.0
        %789 = vmatprep.subr.mxu0 0.0
        %790 = vmatpush1.msra.mxu0 0.0
        %791 = vmatprep.subr.mxu0 0.0
        %792 = vmatpush1.msra.mxu0 0.0
        %793 = vmatprep.subr.mxu0 0.0
        %794 = vmatpush1.msra.mxu0 0.0
        %795 = vmatprep.subr.mxu0 0.0
        %796 = vmatpush1.msra.mxu0 0.0
        %797 = vmatprep.subr.mxu0 0.0
        %798 = vmatpush1.msra.mxu0 0.0
        %799 = vmatprep.subr.mxu0 0.0
        %800 = vmatpush1.msra.mxu0 0.0
        %801 = vmatprep.subr.mxu0 0.0
        %802 = vmatpush1.msra.mxu0 0.0
        %803 = vmatprep.subr.mxu0 0.0
        %804 = vmatpush1.msra.mxu0 0.0
        %805 = vmatprep.subr.mxu0 0.0
        %806 = vmatpush1.msra.mxu0 0.0
        %807 = vmatprep.subr.mxu0 0.0
        %808 = vmatpush1.msra.mxu0 0.0
        %809 = vmatprep.mubr.f32.mxu0 0.0
        %810 = vmatmul.mubr.f32.gmra.mrb[0].mxu0 %v737
        %v811 = vpop.f32.mrb[0].mxu0
        %v812 = vadd.f32 0.0, %v811
        %v813 = vpop.f32.mrb[0].mxu0
        %v814 = vadd.f32 0.0, %v813
        %815 = vmatprep.mubr.f32.mxu0 0.0
        %816 = vmatmul.mubr.f32.gmra.mrb[0].mxu0 %v739
        %v817 = vpop.f32.mrb[0].mxu0
        %v818 = vadd.f32 0.0, %v817
        %v819 = vpop.f32.mrb[0].mxu0
        %v820 = vadd.f32 0.0, %v819
        %821 = vmatprep.mubr.f32.mxu0 0.0
        %822 = vmatmul.mubr.f32.gmra.mrb[0].mxu0 %v741
        %v823 = vpop.f32.mrb[0].mxu0
        %v824 = vadd.f32 0.0, %v823
        %v825 = vpop.f32.mrb[0].mxu0
        %v826 = vadd.f32 0.0, %v825
        %827 = vmatprep.mubr.f32.mxu0 0.0
        %828 = vmatmul.mubr.f32.gmra.mrb[0].mxu0 %v743
        %v829 = vpop.f32.mrb[0].mxu0
        %v830 = vadd.f32 0.0, %v829
        %v831 = vpop.f32.mrb[0].mxu0
        %v832 = vadd.f32 0.0, %v831
        %833 = vdwg.mxu0
        %v834 = vadd.f32 %v698, %v812
        %v835 = vadd.f32 %v700, %v814
        %v836 = vadd.f32 %v704, %v818
        %v837 = vadd.f32 %v706, %v820
        %v838 = vadd.f32 %v710, %v824
        %v839 = vadd.f32 %v712, %v826
        %v840 = vadd.f32 %v716, %v830
        %v841 = vadd.f32 %v718, %v832
        %s842 = scalar_lea.vmem %s1, 192
        %v843 = vld [vmem:[%s842] sm:$0xff]
        %v844 = vld [vmem:[%s842 + $0x8] sm:$0xff]
        %v845 = vld [vmem:[%s842 + $0x10] sm:$0xff]
        %v846 = vld [vmem:[%s842 + $0x18] sm:$0xff]
        %v847 = vld [vmem:[%s842 + $0x20] sm:$0xff]
        %v848 = vld [vmem:[%s842 + $0x28] sm:$0xff]
        %v849 = vld [vmem:[%s842 + $0x30] sm:$0xff]
        %v850 = vld [vmem:[%s842 + $0x38] sm:$0xff]
        %vm851 = vcmask 1044480
        %v852 = vrot.slane %v492, 3
        %v853 = vrot.slane %v493, 3
        %v854 = vsel %vm851, %v852, %v853
        %v855 = vrot.slane %v494, 3
        %v856 = vsel %vm851, %v853, %v855
        %v857 = vrot.slane %v495, 3
        %v858 = vsel %vm851, %v855, %v857
        %v859 = vsel %vm525, %v854, 0
        %v861 = vsel %vm525, %v856, 0
        %v863 = vsel %vm525, %v858, 0
        %v865 = vsel %vm525, %v857, 0
        %867 = vmatprep.subr.mxu0 %v844
        %868 = vmatpush1.msra.mxu0 %v843
        %869 = vmatprep.subr.mxu0 %v846
        %870 = vmatpush1.msra.mxu0 %v845
        %871 = vmatprep.subr.mxu0 %v848
        %872 = vmatpush1.msra.mxu0 %v847
        %873 = vmatprep.subr.mxu0 %v850
        %874 = vmatpush1.msra.mxu0 %v849
        %875 = vmatprep.subr.mxu0 0.0
        %876 = vmatpush1.msra.mxu0 0.0
        %877 = vmatprep.subr.mxu0 0.0
        %878 = vmatpush1.msra.mxu0 0.0
        %879 = vmatprep.subr.mxu0 0.0
        %880 = vmatpush1.msra.mxu0 0.0
        %881 = vmatprep.subr.mxu0 0.0
        %882 = vmatpush1.msra.mxu0 0.0
        %883 = vmatprep.subr.mxu0 0.0
        %884 = vmatpush1.msra.mxu0 0.0
        %885 = vmatprep.subr.mxu0 0.0
        %886 = vmatpush1.msra.mxu0 0.0
        %887 = vmatprep.subr.mxu0 0.0
        %888 = vmatpush1.msra.mxu0 0.0
        %889 = vmatprep.subr.mxu0 0.0
        %890 = vmatpush1.msra.mxu0 0.0
        %891 = vmatprep.subr.mxu0 0.0
        %892 = vmatpush1.msra.mxu0 0.0
        %893 = vmatprep.subr.mxu0 0.0
        %894 = vmatpush1.msra.mxu0 0.0
        %895 = vmatprep.subr.mxu0 0.0
        %896 = vmatpush1.msra.mxu0 0.0
        %897 = vmatprep.subr.mxu0 0.0
        %898 = vmatpush1.msra.mxu0 0.0
        %899 = vmatprep.subr.mxu0 0.0
        %900 = vmatpush1.msra.mxu0 0.0
        %901 = vmatprep.subr.mxu0 0.0
        %902 = vmatpush1.msra.mxu0 0.0
        %903 = vmatprep.subr.mxu0 0.0
        %904 = vmatpush1.msra.mxu0 0.0
        %905 = vmatprep.subr.mxu0 0.0
        %906 = vmatpush1.msra.mxu0 0.0
        %907 = vmatprep.subr.mxu0 0.0
        %908 = vmatpush1.msra.mxu0 0.0
        %909 = vmatprep.subr.mxu0 0.0
        %910 = vmatpush1.msra.mxu0 0.0
        %911 = vmatprep.subr.mxu0 0.0
        %912 = vmatpush1.msra.mxu0 0.0
        %913 = vmatprep.subr.mxu0 0.0
        %914 = vmatpush1.msra.mxu0 0.0
        %915 = vmatprep.subr.mxu0 0.0
        %916 = vmatpush1.msra.mxu0 0.0
        %917 = vmatprep.subr.mxu0 0.0
        %918 = vmatpush1.msra.mxu0 0.0
        %919 = vmatprep.subr.mxu0 0.0
        %920 = vmatpush1.msra.mxu0 0.0
        %921 = vmatprep.subr.mxu0 0.0
        %922 = vmatpush1.msra.mxu0 0.0
        %923 = vmatprep.subr.mxu0 0.0
        %924 = vmatpush1.msra.mxu0 0.0
        %925 = vmatprep.subr.mxu0 0.0
        %926 = vmatpush1.msra.mxu0 0.0
        %927 = vmatprep.subr.mxu0 0.0
        %928 = vmatpush1.msra.mxu0 0.0
        %929 = vmatprep.subr.mxu0 0.0
        %930 = vmatpush1.msra.mxu0 0.0
        %931 = vmatprep.mubr.f32.mxu0 0.0
        %932 = vmatmul.mubr.f32.gmra.mrb[0].mxu0 %v859
        %v933 = vpop.f32.mrb[0].mxu0
        %v934 = vadd.f32 0.0, %v933
        %v935 = vpop.f32.mrb[0].mxu0
        %v936 = vadd.f32 0.0, %v935
        %937 = vmatprep.mubr.f32.mxu0 0.0
        %938 = vmatmul.mubr.f32.gmra.mrb[0].mxu0 %v861
        %v939 = vpop.f32.mrb[0].mxu0
        %v940 = vadd.f32 0.0, %v939
        %v941 = vpop.f32.mrb[0].mxu0
        %v942 = vadd.f32 0.0, %v941
        %943 = vmatprep.mubr.f32.mxu0 0.0
        %944 = vmatmul.mubr.f32.gmra.mrb[0].mxu0 %v863
        %v945 = vpop.f32.mrb[0].mxu0
        %v946 = vadd.f32 0.0, %v945
        %v947 = vpop.f32.mrb[0].mxu0
        %v948 = vadd.f32 0.0, %v947
        %949 = vmatprep.mubr.f32.mxu0 0.0
        %950 = vmatmul.mubr.f32.gmra.mrb[0].mxu0 %v865
        %v951 = vpop.f32.mrb[0].mxu0
        %v952 = vadd.f32 0.0, %v951
        %v953 = vpop.f32.mrb[0].mxu0
        %v954 = vadd.f32 0.0, %v953
        %955 = vdwg.mxu0
        %v956 = vadd.f32 %v834, %v934
        %v957 = vadd.f32 %v835, %v936
        %v958 = vadd.f32 %v836, %v940
        %v959 = vadd.f32 %v837, %v942
        %v960 = vadd.f32 %v838, %v946
        %v961 = vadd.f32 %v839, %v948
        %v962 = vadd.f32 %v840, %v952
        %v963 = vadd.f32 %v841, %v954
        %s964 = scalar_lea.vmem %s1, 256
        %v965 = vld [vmem:[%s964] sm:$0xff]
        %v966 = vld [vmem:[%s964 + $0x8] sm:$0xff]
        %v967 = vld [vmem:[%s964 + $0x10] sm:$0xff]
        %v968 = vld [vmem:[%s964 + $0x18] sm:$0xff]
        %v969 = vld [vmem:[%s964 + $0x20] sm:$0xff]
        %v970 = vld [vmem:[%s964 + $0x28] sm:$0xff]
        %v971 = vld [vmem:[%s964 + $0x30] sm:$0xff]
        %v972 = vld [vmem:[%s964 + $0x38] sm:$0xff]
        %vm973 = vcmask 1043456
        %v974 = vrot.slane %v492, 4
        %v975 = vrot.slane %v493, 4
        %v976 = vsel %vm973, %v974, %v975
        %v977 = vrot.slane %v494, 4
        %v978 = vsel %vm973, %v975, %v977
        %v979 = vrot.slane %v495, 4
        %v980 = vsel %vm973, %v977, %v979
        %v981 = vsel %vm525, %v976, 0
        %v983 = vsel %vm525, %v978, 0
        %v985 = vsel %vm525, %v980, 0
        %v987 = vsel %vm525, %v979, 0
        %989 = vmatprep.subr.mxu0 %v966
        %990 = vmatpush1.msra.mxu0 %v965
        %991 = vmatprep.subr.mxu0 %v968
        %992 = vmatpush1.msra.mxu0 %v967
        %993 = vmatprep.subr.mxu0 %v970
        %994 = vmatpush1.msra.mxu0 %v969
        %995 = vmatprep.subr.mxu0 %v972
        %996 = vmatpush1.msra.mxu0 %v971
        %997 = vmatprep.subr.mxu0 0.0
        %998 = vmatpush1.msra.mxu0 0.0
        %999 = vmatprep.subr.mxu0 0.0
        %1000 = vmatpush1.msra.mxu0 0.0
        %1001 = vmatprep.subr.mxu0 0.0
        %1002 = vmatpush1.msra.mxu0 0.0
        %1003 = vmatprep.subr.mxu0 0.0
        %1004 = vmatpush1.msra.mxu0 0.0
        %1005 = vmatprep.subr.mxu0 0.0
        %1006 = vmatpush1.msra.mxu0 0.0
        %1007 = vmatprep.subr.mxu0 0.0
        %1008 = vmatpush1.msra.mxu0 0.0
        %1009 = vmatprep.subr.mxu0 0.0
        %1010 = vmatpush1.msra.mxu0 0.0
        %1011 = vmatprep.subr.mxu0 0.0
        %1012 = vmatpush1.msra.mxu0 0.0
        %1013 = vmatprep.subr.mxu0 0.0
        %1014 = vmatpush1.msra.mxu0 0.0
        %1015 = vmatprep.subr.mxu0 0.0
        %1016 = vmatpush1.msra.mxu0 0.0
        %1017 = vmatprep.subr.mxu0 0.0
        %1018 = vmatpush1.msra.mxu0 0.0
        %1019 = vmatprep.subr.mxu0 0.0
        %1020 = vmatpush1.msra.mxu0 0.0
        %1021 = vmatprep.subr.mxu0 0.0
        %1022 = vmatpush1.msra.mxu0 0.0
        %1023 = vmatprep.subr.mxu0 0.0
        %1024 = vmatpush1.msra.mxu0 0.0
        %1025 = vmatprep.subr.mxu0 0.0
        %1026 = vmatpush1.msra.mxu0 0.0
        %1027 = vmatprep.subr.mxu0 0.0
        %1028 = vmatpush1.msra.mxu0 0.0
        %1029 = vmatprep.subr.mxu0 0.0
        %1030 = vmatpush1.msra.mxu0 0.0
        %1031 = vmatprep.subr.mxu0 0.0
        %1032 = vmatpush1.msra.mxu0 0.0
        %1033 = vmatprep.subr.mxu0 0.0
        %1034 = vmatpush1.msra.mxu0 0.0
        %1035 = vmatprep.subr.mxu0 0.0
        %1036 = vmatpush1.msra.mxu0 0.0
        %1037 = vmatprep.subr.mxu0 0.0
        %1038 = vmatpush1.msra.mxu0 0.0
        %1039 = vmatprep.subr.mxu0 0.0
        %1040 = vmatpush1.msra.mxu0 0.0
        %1041 = vmatprep.subr.mxu0 0.0
        %1042 = vmatpush1.msra.mxu0 0.0
        %1043 = vmatprep.subr.mxu0 0.0
        %1044 = vmatpush1.msra.mxu0 0.0
        %1045 = vmatprep.subr.mxu0 0.0
        %1046 = vmatpush1.msra.mxu0 0.0
        %1047 = vmatprep.subr.mxu0 0.0
        %1048 = vmatpush1.msra.mxu0 0.0
        %1049 = vmatprep.subr.mxu0 0.0
        %1050 = vmatpush1.msra.mxu0 0.0
        %1051 = vmatprep.subr.mxu0 0.0
        %1052 = vmatpush1.msra.mxu0 0.0
        %1053 = vmatprep.mubr.f32.mxu0 0.0
        %1054 = vmatmul.mubr.f32.gmra.mrb[0].mxu0 %v981
        %v1055 = vpop.f32.mrb[0].mxu0
        %v1056 = vadd.f32 0.0, %v1055
        %v1057 = vpop.f32.mrb[0].mxu0
        %v1058 = vadd.f32 0.0, %v1057
        %1059 = vmatprep.mubr.f32.mxu0 0.0
        %1060 = vmatmul.mubr.f32.gmra.mrb[0].mxu0 %v983
        %v1061 = vpop.f32.mrb[0].mxu0
        %v1062 = vadd.f32 0.0, %v1061
        %v1063 = vpop.f32.mrb[0].mxu0
        %v1064 = vadd.f32 0.0, %v1063
        %1065 = vmatprep.mubr.f32.mxu0 0.0
        %1066 = vmatmul.mubr.f32.gmra.mrb[0].mxu0 %v985
        %v1067 = vpop.f32.mrb[0].mxu0
        %v1068 = vadd.f32 0.0, %v1067
        %v1069 = vpop.f32.mrb[0].mxu0
        %v1070 = vadd.f32 0.0, %v1069
        %1071 = vmatprep.mubr.f32.mxu0 0.0
        %1072 = vmatmul.mubr.f32.gmra.mrb[0].mxu0 %v987
        %v1073 = vpop.f32.mrb[0].mxu0
        %v1074 = vadd.f32 0.0, %v1073
        %v1075 = vpop.f32.mrb[0].mxu0
        %v1076 = vadd.f32 0.0, %v1075
        %1077 = vdwg.mxu0
        %v1078 = vadd.f32 %v956, %v1056
        %v1079 = vadd.f32 %v957, %v1058
        %v1080 = vadd.f32 %v958, %v1062
        %v1081 = vadd.f32 %v959, %v1064
        %v1082 = vadd.f32 %v960, %v1068
        %v1083 = vadd.f32 %v961, %v1070
        %v1084 = vadd.f32 %v962, %v1074
        %v1085 = vadd.f32 %v963, %v1076
        %v1086 = vld [vmem:[%s2] sm:$0x3]
        %v1088 = vlaneseq
        %v1089 = vshrl.u32 %v1088, 7
        %v1090 = vsub.s32 0, %v1089
        %v1091 = vrot.slane %v1086, %v1090
        %v1092 = vlaneseq
        %v1093 = vshrl.u32 %v1092, 7
        %v1094 = vsub.s32 1, %v1093
        %v1095 = vrot.slane %v1086, %v1094
        %v1098 = vadd.f32 %v1078, %v1091
        %v1099 = vadd.f32 %v1079, %v1095
        %v1100 = vadd.f32 %v1080, %v1091
        %v1101 = vadd.f32 %v1081, %v1095
        %v1102 = vadd.f32 %v1082, %v1091
        %v1103 = vadd.f32 %v1083, %v1095
        %v1104 = vadd.f32 %v1084, %v1091
        %v1105 = vadd.f32 %v1085, %v1095
        %v1106 = vmax.f32 %v1098, 0.0
        %v1107 = vmax.f32 %v1099, 0.0
        %v1108 = vmax.f32 %v1100, 0.0
        %v1109 = vmax.f32 %v1101, 0.0
        %v1110 = vmax.f32 %v1102, 0.0
        %v1111 = vmax.f32 %v1103, 0.0
        %v1112 = vmax.f32 %v1104, 0.0
        %v1113 = vmax.f32 %v1105, 0.0
        %v1114 = vld [vmem:[%s3] sm:$0xff]
        %v1115 = vld [vmem:[%s3 + $0x8] sm:$0x3f]
        %vm1116 = vcmask 228352
        %v1118 = vsel %vm1116, %v1114, 0
        %v1121 = vsel %vm1116, %v1115, 0
        %v1124 = vsel %vm973, %v1112, 0
        %v1127 = vsel %vm973, %v1113, 0
        %1129 = vmatprep.subr.mxu0 %v1107
        %1130 = vmatpush1.msra.mxu0 %v1106
        %1131 = vmatprep.subr.mxu0 %v1109
        %1132 = vmatpush1.msra.mxu0 %v1108
        %1133 = vmatprep.subr.mxu0 %v1111
        %1134 = vmatpush1.msra.mxu0 %v1110
        %1135 = vmatprep.subr.mxu0 %v1127
        %1136 = vmatpush1.msra.mxu0 %v1124
        %1137 = vmatprep.subr.mxu0 0.0
        %1138 = vmatpush1.msra.mxu0 0.0
        %1139 = vmatprep.subr.mxu0 0.0
        %1140 = vmatpush1.msra.mxu0 0.0
        %1141 = vmatprep.subr.mxu0 0.0
        %1142 = vmatpush1.msra.mxu0 0.0
        %1143 = vmatprep.subr.mxu0 0.0
        %1144 = vmatpush1.msra.mxu0 0.0
        %1145 = vmatprep.subr.mxu0 0.0
        %1146 = vmatpush1.msra.mxu0 0.0
        %1147 = vmatprep.subr.mxu0 0.0
        %1148 = vmatpush1.msra.mxu0 0.0
        %1149 = vmatprep.subr.mxu0 0.0
        %1150 = vmatpush1.msra.mxu0 0.0
        %1151 = vmatprep.subr.mxu0 0.0
        %1152 = vmatpush1.msra.mxu0 0.0
        %1153 = vmatprep.subr.mxu0 0.0
        %1154 = vmatpush1.msra.mxu0 0.0
        %1155 = vmatprep.subr.mxu0 0.0
        %1156 = vmatpush1.msra.mxu0 0.0
        %1157 = vmatprep.subr.mxu0 0.0
        %1158 = vmatpush1.msra.mxu0 0.0
        %1159 = vmatprep.subr.mxu0 0.0
        %1160 = vmatpush1.msra.mxu0 0.0
        %1161 = vmatprep.subr.mxu0 0.0
        %1162 = vmatpush1.msra.mxu0 0.0
        %1163 = vmatprep.subr.mxu0 0.0
        %1164 = vmatpush1.msra.mxu0 0.0
        %1165 = vmatprep.subr.mxu0 0.0
        %1166 = vmatpush1.msra.mxu0 0.0
        %1167 = vmatprep.subr.mxu0 0.0
        %1168 = vmatpush1.msra.mxu0 0.0
        %1169 = vmatprep.subr.mxu0 0.0
        %1170 = vmatpush1.msra.mxu0 0.0
        %1171 = vmatprep.subr.mxu0 0.0
        %1172 = vmatpush1.msra.mxu0 0.0
        %1173 = vmatprep.subr.mxu0 0.0
        %1174 = vmatpush1.msra.mxu0 0.0
        %1175 = vmatprep.subr.mxu0 0.0
        %1176 = vmatpush1.msra.mxu0 0.0
        %1177 = vmatprep.subr.mxu0 0.0
        %1178 = vmatpush1.msra.mxu0 0.0
        %1179 = vmatprep.subr.mxu0 0.0
        %1180 = vmatpush1.msra.mxu0 0.0
        %1181 = vmatprep.subr.mxu0 0.0
        %1182 = vmatpush1.msra.mxu0 0.0
        %1183 = vmatprep.subr.mxu0 0.0
        %1184 = vmatpush1.msra.mxu0 0.0
        %1185 = vmatprep.subr.mxu0 0.0
        %1186 = vmatpush1.msra.mxu0 0.0
        %1187 = vmatprep.subr.mxu0 0.0
        %1188 = vmatpush1.msra.mxu0 0.0
        %1189 = vmatprep.subr.mxu0 0.0
        %1190 = vmatpush1.msra.mxu0 0.0
        %1191 = vmatprep.subr.mxu0 0.0
        %1192 = vmatpush1.msra.mxu0 0.0
        %1193 = vmatprep.mubr.f32.mxu0 0.0
        %1194 = vmatmul.mubr.f32.gmra.mrb[0].mxu0 %v1118
        %v1195 = vpop.f32.mrb[0].mxu0
        %v1196 = vadd.f32 0.0, %v1195
        %v1197 = vpop.f32.mrb[0].mxu0
        %v1198 = vadd.f32 0.0, %v1197
        %1199 = vmatprep.mubr.f32.mxu0 0.0
        %1200 = vmatmul.mubr.f32.gmra.mrb[0].mxu0 %v1121
        %v1201 = vpop.f32.mrb[0].mxu0
        %v1202 = vadd.f32 0.0, %v1201
        %v1203 = vpop.f32.mrb[0].mxu0
        %v1204 = vadd.f32 0.0, %v1203
        %1205 = vdwg.mxu0
        %s1206 = scalar_lea.vmem %s3, 16
        %v1207 = vld [vmem:[%s1206] sm:$0xff]
        %v1208 = vld [vmem:[%s1206 + $0x8] sm:$0x3f]
        %v1210 = vsel %vm1116, %v1207, 0
        %v1213 = vsel %vm1116, %v1208, 0
        %1215 = vmatprep.subr.mxu0 %v1107
        %1216 = vmatpush1.msra.mxu0 %v1106
        %1217 = vmatprep.subr.mxu0 %v1109
        %1218 = vmatpush1.msra.mxu0 %v1108
        %1219 = vmatprep.subr.mxu0 %v1111
        %1220 = vmatpush1.msra.mxu0 %v1110
        %1221 = vmatprep.subr.mxu0 %v1127
        %1222 = vmatpush1.msra.mxu0 %v1124
        %1223 = vmatprep.subr.mxu0 0.0
        %1224 = vmatpush1.msra.mxu0 0.0
        %1225 = vmatprep.subr.mxu0 0.0
        %1226 = vmatpush1.msra.mxu0 0.0
        %1227 = vmatprep.subr.mxu0 0.0
        %1228 = vmatpush1.msra.mxu0 0.0
        %1229 = vmatprep.subr.mxu0 0.0
        %1230 = vmatpush1.msra.mxu0 0.0
        %1231 = vmatprep.subr.mxu0 0.0
        %1232 = vmatpush1.msra.mxu0 0.0
        %1233 = vmatprep.subr.mxu0 0.0
        %1234 = vmatpush1.msra.mxu0 0.0
        %1235 = vmatprep.subr.mxu0 0.0
        %1236 = vmatpush1.msra.mxu0 0.0
        %1237 = vmatprep.subr.mxu0 0.0
        %1238 = vmatpush1.msra.mxu0 0.0
        %1239 = vmatprep.subr.mxu0 0.0
        %1240 = vmatpush1.msra.mxu0 0.0
        %1241 = vmatprep.subr.mxu0 0.0
        %1242 = vmatpush1.msra.mxu0 0.0
        %1243 = vmatprep.subr.mxu0 0.0
        %1244 = vmatpush1.msra.mxu0 0.0
        %1245 = vmatprep.subr.mxu0 0.0
        %1246 = vmatpush1.msra.mxu0 0.0
        %1247 = vmatprep.subr.mxu0 0.0
        %1248 = vmatpush1.msra.mxu0 0.0
        %1249 = vmatprep.subr.mxu0 0.0
        %1250 = vmatpush1.msra.mxu0 0.0
        %1251 = vmatprep.subr.mxu0 0.0
        %1252 = vmatpush1.msra.mxu0 0.0
        %1253 = vmatprep.subr.mxu0 0.0
        %1254 = vmatpush1.msra.mxu0 0.0
        %1255 = vmatprep.subr.mxu0 0.0
        %1256 = vmatpush1.msra.mxu0 0.0
        %1257 = vmatprep.subr.mxu0 0.0
        %1258 = vmatpush1.msra.mxu0 0.0
        %1259 = vmatprep.subr.mxu0 0.0
        %1260 = vmatpush1.msra.mxu0 0.0
        %1261 = vmatprep.subr.mxu0 0.0
        %1262 = vmatpush1.msra.mxu0 0.0
        %1263 = vmatprep.subr.mxu0 0.0
        %1264 = vmatpush1.msra.mxu0 0.0
        %1265 = vmatprep.subr.mxu0 0.0
        %1266 = vmatpush1.msra.mxu0 0.0
        %1267 = vmatprep.subr.mxu0 0.0
        %1268 = vmatpush1.msra.mxu0 0.0
        %1269 = vmatprep.subr.mxu0 0.0
        %1270 = vmatpush1.msra.mxu0 0.0
        %1271 = vmatprep.subr.mxu0 0.0
        %1272 = vmatpush1.msra.mxu0 0.0
        %1273 = vmatprep.subr.mxu0 0.0
        %1274 = vmatpush1.msra.mxu0 0.0
        %1275 = vmatprep.subr.mxu0 0.0
        %1276 = vmatpush1.msra.mxu0 0.0
        %1277 = vmatprep.subr.mxu0 0.0
        %1278 = vmatpush1.msra.mxu0 0.0
        %1279 = vmatprep.mubr.f32.mxu0 0.0
        %1280 = vmatmul.mubr.f32.gmra.mrb[0].mxu0 %v1210
        %v1281 = vpop.f32.mrb[0].mxu0
        %v1282 = vadd.f32 0.0, %v1281
        %v1283 = vpop.f32.mrb[0].mxu0
        %v1284 = vadd.f32 0.0, %v1283
        %1285 = vmatprep.mubr.f32.mxu0 0.0
        %1286 = vmatmul.mubr.f32.gmra.mrb[0].mxu0 %v1213
        %v1287 = vpop.f32.mrb[0].mxu0
        %v1288 = vadd.f32 0.0, %v1287
        %v1289 = vpop.f32.mrb[0].mxu0
        %v1290 = vadd.f32 0.0, %v1289
        %1291 = vdwg.mxu0
        %v1292 = vmax.f32 %v1196, %v1282
        %v1293 = vmax.f32 %v1198, %v1284
        %v1294 = vmax.f32 %v1202, %v1288
        %v1295 = vmax.f32 %v1204, %v1290
        %v1296 = vld [vmem:[%s4] sm:$0xff]
        %v1297 = vld [vmem:[%s4 + $0x8] sm:$0xff]
        %v1298 = vld [vmem:[%s4 + $0x10] sm:$0xff]
        %v1299 = vld [vmem:[%s4 + $0x18] sm:$0xff]
        %v1300 = vld [vmem:[%s4 + $0x20] sm:$0xff]
        %v1301 = vld [vmem:[%s4 + $0x28] sm:$0xff]
        %v1302 = vld [vmem:[%s4 + $0x30] sm:$0xff]
        %v1303 = vld [vmem:[%s4 + $0x38] sm:$0xff]
        %v1304 = vld [vmem:[%s4 + $0x40] sm:$0xff]
        %v1305 = vld [vmem:[%s4 + $0x48] sm:$0xff]
        %v1306 = vld [vmem:[%s4 + $0x50] sm:$0xff]
        %v1307 = vld [vmem:[%s4 + $0x58] sm:$0xff]
        %v1308 = vld [vmem:[%s4 + $0x60] sm:$0xff]
        %v1309 = vld [vmem:[%s4 + $0x68] sm:$0xff]
        %v1310 = vld [vmem:[%s4 + $0x70] sm:$0xff]
        %v1311 = vld [vmem:[%s4 + $0x78] sm:$0xff]
        %v1312 = vld [vmem:[%s4 + $0x80] sm:$0xff]
        %v1313 = vld [vmem:[%s4 + $0x88] sm:$0xff]
        %v1314 = vld [vmem:[%s4 + $0x90] sm:$0xff]
        %v1315 = vld [vmem:[%s4 + $0x98] sm:$0xff]
        %v1316 = vld [vmem:[%s4 + $0xa0] sm:$0xff]
        %vm1317 = vcmask 326656
        %v1319 = vsel %vm1317, %v1293, 0
        %v1322 = vsel %vm1317, %v1295, 0
        %1324 = vmatprep.subr.mxu0 0.0
        %1325 = vmatpush1.msra.mxu0 %v1296
        %1326 = vmatprep.subr.mxu0 0.0
        %1327 = vmatpush1.msra.mxu0 %v1297
        %1328 = vmatprep.subr.mxu0 0.0
        %1329 = vmatpush1.msra.mxu0 %v1298
        %1330 = vmatprep.subr.mxu0 0.0
        %1331 = vmatpush1.msra.mxu0 %v1299
        %1332 = vmatprep.subr.mxu0 0.0
        %1333 = vmatpush1.msra.mxu0 %v1300
        %1334 = vmatprep.subr.mxu0 0.0
        %1335 = vmatpush1.msra.mxu0 %v1301
        %1336 = vmatprep.subr.mxu0 0.0
        %1337 = vmatpush1.msra.mxu0 %v1302
        %1338 = vmatprep.subr.mxu0 0.0
        %1339 = vmatpush1.msra.mxu0 %v1303
        %1340 = vmatprep.subr.mxu0 0.0
        %1341 = vmatpush1.msra.mxu0 %v1304
        %1342 = vmatprep.subr.mxu0 0.0
        %1343 = vmatpush1.msra.mxu0 %v1305
        %1344 = vmatprep.subr.mxu0 0.0
        %1345 = vmatpush1.msra.mxu0 %v1306
        %1346 = vmatprep.subr.mxu0 0.0
        %1347 = vmatpush1.msra.mxu0 %v1307
        %1348 = vmatprep.subr.mxu0 0.0
        %1349 = vmatpush1.msra.mxu0 %v1308
        %1350 = vmatprep.subr.mxu0 0.0
        %1351 = vmatpush1.msra.mxu0 %v1309
        %1352 = vmatprep.subr.mxu0 0.0
        %1353 = vmatpush1.msra.mxu0 %v1310
        %1354 = vmatprep.subr.mxu0 0.0
        %1355 = vmatpush1.msra.mxu0 %v1311
        %1356 = vmatprep.subr.mxu0 0.0
        %1357 = vmatpush1.msra.mxu0 %v1312
        %1358 = vmatprep.subr.mxu0 0.0
        %1359 = vmatpush1.msra.mxu0 %v1313
        %1360 = vmatprep.subr.mxu0 0.0
        %1361 = vmatpush1.msra.mxu0 %v1314
        %1362 = vmatprep.subr.mxu0 0.0
        %1363 = vmatpush1.msra.mxu0 %v1315
        %1364 = vmatprep.subr.mxu0 0.0
        %1365 = vmatpush1.msra.mxu0 %v1316
        %1366 = vmatprep.subr.mxu0 0.0
        %1367 = vmatpush1.msra.mxu0 0.0
        %1368 = vmatprep.subr.mxu0 0.0
        %1369 = vmatpush1.msra.mxu0 0.0
        %1370 = vmatprep.subr.mxu0 0.0
        %1371 = vmatpush1.msra.mxu0 0.0
        %1372 = vmatprep.subr.mxu0 0.0
        %1373 = vmatpush1.msra.mxu0 0.0
        %1374 = vmatprep.subr.mxu0 0.0
        %1375 = vmatpush1.msra.mxu0 0.0
        %1376 = vmatprep.subr.mxu0 0.0
        %1377 = vmatpush1.msra.mxu0 0.0
        %1378 = vmatprep.subr.mxu0 0.0
        %1379 = vmatpush1.msra.mxu0 0.0
        %1380 = vmatprep.subr.mxu0 0.0
        %1381 = vmatpush1.msra.mxu0 0.0
        %1382 = vmatprep.subr.mxu0 0.0
        %1383 = vmatpush1.msra.mxu0 0.0
        %1384 = vmatprep.subr.mxu0 0.0
        %1385 = vmatpush1.msra.mxu0 0.0
        %1386 = vmatprep.subr.mxu0 0.0
        %1387 = vmatpush1.msra.mxu0 0.0
        %1388 = vmatprep.mubr.f32.mxu0 %v1319
        %1389 = vmatmul.mubr.f32.gmra.mrb[0].mxu0 %v1292
        %v1390 = vpop.f32.mrb[0].mxu0
        %v1391 = vadd.f32 0.0, %v1390
        %v1392 = vpop.f32.mrb[0].mxu0
        %1393 = vmatprep.mubr.f32.mxu0 %v1322
        %1394 = vmatmul.mubr.f32.gmra.mrb[0].mxu0 %v1294
        %v1395 = vpop.f32.mrb[0].mxu0
        %v1396 = vadd.f32 0.0, %v1395
        %v1397 = vpop.f32.mrb[0].mxu0
        %1398 = vdwg.mxu0
        %s1399 = scalar_lea.vmem %s4, 168
        %v1400 = vld [vmem:[%s1399] sm:$0xff]
        %v1401 = vld [vmem:[%s1399 + $0x8] sm:$0xff]
        %v1402 = vld [vmem:[%s1399 + $0x10] sm:$0xff]
        %v1403 = vld [vmem:[%s1399 + $0x18] sm:$0xff]
        %v1404 = vld [vmem:[%s1399 + $0x20] sm:$0xff]
        %v1405 = vld [vmem:[%s1399 + $0x28] sm:$0xff]
        %v1406 = vld [vmem:[%s1399 + $0x30] sm:$0xff]
        %v1407 = vld [vmem:[%s1399 + $0x38] sm:$0xff]
        %v1408 = vld [vmem:[%s1399 + $0x40] sm:$0xff]
        %v1409 = vld [vmem:[%s1399 + $0x48] sm:$0xff]
        %v1410 = vld [vmem:[%s1399 + $0x50] sm:$0xff]
        %v1411 = vld [vmem:[%s1399 + $0x58] sm:$0xff]
        %v1412 = vld [vmem:[%s1399 + $0x60] sm:$0xff]
        %v1413 = vld [vmem:[%s1399 + $0x68] sm:$0xff]
        %v1414 = vld [vmem:[%s1399 + $0x70] sm:$0xff]
        %v1415 = vld [vmem:[%s1399 + $0x78] sm:$0xff]
        %v1416 = vld [vmem:[%s1399 + $0x80] sm:$0xff]
        %v1417 = vld [vmem:[%s1399 + $0x88] sm:$0xff]
        %v1418 = vld [vmem:[%s1399 + $0x90] sm:$0xff]
        %v1419 = vld [vmem:[%s1399 + $0x98] sm:$0xff]
        %v1420 = vld [vmem:[%s1399 + $0xa0] sm:$0xff]
        %1421 = vmatprep.subr.mxu0 0.0
        %1422 = vmatpush1.msra.mxu0 %v1400
        %1423 = vmatprep.subr.mxu0 0.0
        %1424 = vmatpush1.msra.mxu0 %v1401
        %1425 = vmatprep.subr.mxu0 0.0
        %1426 = vmatpush1.msra.mxu0 %v1402
        %1427 = vmatprep.subr.mxu0 0.0
        %1428 = vmatpush1.msra.mxu0 %v1403
        %1429 = vmatprep.subr.mxu0 0.0
        %1430 = vmatpush1.msra.mxu0 %v1404
        %1431 = vmatprep.subr.mxu0 0.0
        %1432 = vmatpush1.msra.mxu0 %v1405
        %1433 = vmatprep.subr.mxu0 0.0
        %1434 = vmatpush1.msra.mxu0 %v1406
        %1435 = vmatprep.subr.mxu0 0.0
        %1436 = vmatpush1.msra.mxu0 %v1407
        %1437 = vmatprep.subr.mxu0 0.0
        %1438 = vmatpush1.msra.mxu0 %v1408
        %1439 = vmatprep.subr.mxu0 0.0
        %1440 = vmatpush1.msra.mxu0 %v1409
        %1441 = vmatprep.subr.mxu0 0.0
        %1442 = vmatpush1.msra.mxu0 %v1410
        %1443 = vmatprep.subr.mxu0 0.0
        %1444 = vmatpush1.msra.mxu0 %v1411
        %1445 = vmatprep.subr.mxu0 0.0
        %1446 = vmatpush1.msra.mxu0 %v1412
        %1447 = vmatprep.subr.mxu0 0.0
        %1448 = vmatpush1.msra.mxu0 %v1413
        %1449 = vmatprep.subr.mxu0 0.0
        %1450 = vmatpush1.msra.mxu0 %v1414
        %1451 = vmatprep.subr.mxu0 0.0
        %1452 = vmatpush1.msra.mxu0 %v1415
        %1453 = vmatprep.subr.mxu0 0.0
        %1454 = vmatpush1.msra.mxu0 %v1416
        %1455 = vmatprep.subr.mxu0 0.0
        %1456 = vmatpush1.msra.mxu0 %v1417
        %1457 = vmatprep.subr.mxu0 0.0
        %1458 = vmatpush1.msra.mxu0 %v1418
        %1459 = vmatprep.subr.mxu0 0.0
        %1460 = vmatpush1.msra.mxu0 %v1419
        %1461 = vmatprep.subr.mxu0 0.0
        %1462 = vmatpush1.msra.mxu0 %v1420
        %1463 = vmatprep.subr.mxu0 0.0
        %1464 = vmatpush1.msra.mxu0 0.0
        %1465 = vmatprep.subr.mxu0 0.0
        %1466 = vmatpush1.msra.mxu0 0.0
        %1467 = vmatprep.subr.mxu0 0.0
        %1468 = vmatpush1.msra.mxu0 0.0
        %1469 = vmatprep.subr.mxu0 0.0
        %1470 = vmatpush1.msra.mxu0 0.0
        %1471 = vmatprep.subr.mxu0 0.0
        %1472 = vmatpush1.msra.mxu0 0.0
        %1473 = vmatprep.subr.mxu0 0.0
        %1474 = vmatpush1.msra.mxu0 0.0
        %1475 = vmatprep.subr.mxu0 0.0
        %1476 = vmatpush1.msra.mxu0 0.0
        %1477 = vmatprep.subr.mxu0 0.0
        %1478 = vmatpush1.msra.mxu0 0.0
        %1479 = vmatprep.subr.mxu0 0.0
        %1480 = vmatpush1.msra.mxu0 0.0
        %1481 = vmatprep.subr.mxu0 0.0
        %1482 = vmatpush1.msra.mxu0 0.0
        %1483 = vmatprep.subr.mxu0 0.0
        %1484 = vmatpush1.msra.mxu0 0.0
        %1485 = vmatprep.mubr.f32.mxu0 %v1319
        %1486 = vmatmul.mubr.f32.gmra.mrb[0].mxu0 %v1292
        %v1487 = vpop.f32.mrb[0].mxu0
        %v1488 = vadd.f32 0.0, %v1487
        %v1489 = vpop.f32.mrb[0].mxu0
        %1490 = vmatprep.mubr.f32.mxu0 %v1322
        %1491 = vmatmul.mubr.f32.gmra.mrb[0].mxu0 %v1294
        %v1492 = vpop.f32.mrb[0].mxu0
        %v1493 = vadd.f32 0.0, %v1492
        %v1494 = vpop.f32.mrb[0].mxu0
        %1495 = vdwg.mxu0
        %v1496 = vmax.f32 %v1391, %v1488
        %v1497 = vmax.f32 %v1396, %v1493
        %v1498 = vld [vmem:[%s5] sm:$0xff]
        %v1499 = vld [vmem:[%s5 + $0x8] sm:$0xff]
        %v1500 = vld [vmem:[%s5 + $0x10] sm:$0xff]
        %v1501 = vld [vmem:[%s5 + $0x18] sm:$0xff]
        %v1502 = vld [vmem:[%s5 + $0x20] sm:$0xff]
        %v1503 = vld [vmem:[%s5 + $0x28] sm:$0xff]
        %v1504 = vld [vmem:[%s5 + $0x30] sm:$0xff]
        %v1505 = vld [vmem:[%s5 + $0x38] sm:$0xff]
        %v1506 = vld [vmem:[%s5 + $0x40] sm:$0xff]
        %v1507 = vld [vmem:[%s5 + $0x48] sm:$0xff]
        %v1508 = vld [vmem:[%s5 + $0x50] sm:$0xff]
        %v1509 = vld [vmem:[%s5 + $0x58] sm:$0xff]
        %v1510 = vld [vmem:[%s5 + $0x60] sm:$0xff]
        %v1511 = vld [vmem:[%s5 + $0x68] sm:$0xff]
        %v1512 = vld [vmem:[%s5 + $0x70] sm:$0xff]
        %v1513 = vld [vmem:[%s5 + $0x78] sm:$0xff]
        %v1514 = vld [vmem:[%s5 + $0x80] sm:$0xff]
        %v1515 = vld [vmem:[%s5 + $0x88] sm:$0xff]
        %v1516 = vld [vmem:[%s5 + $0x90] sm:$0xff]
        %v1517 = vld [vmem:[%s5 + $0x98] sm:$0xff]
        %v1518 = vld [vmem:[%s5 + $0xa0] sm:$0xf]
        %v1519 = vld [vmem:[%s5 + $0xa8] sm:$0xf]
        %s1520 = scalar_lea.vmem %s5, 176
        %v1521 = vld [vmem:[%s1520] sm:$0xff]
        %v1522 = vld [vmem:[%s1520 + $0x8] sm:$0xff]
        %v1523 = vld [vmem:[%s1520 + $0x10] sm:$0xff]
        %v1524 = vld [vmem:[%s1520 + $0x18] sm:$0xff]
        %v1525 = vld [vmem:[%s1520 + $0x20] sm:$0xff]
        %v1526 = vld [vmem:[%s1520 + $0x28] sm:$0xff]
        %v1527 = vld [vmem:[%s1520 + $0x30] sm:$0xff]
        %v1528 = vld [vmem:[%s1520 + $0x38] sm:$0xff]
        %v1529 = vld [vmem:[%s1520 + $0x40] sm:$0xff]
        %v1530 = vld [vmem:[%s1520 + $0x48] sm:$0xff]
        %v1531 = vld [vmem:[%s1520 + $0x50] sm:$0xff]
        %v1532 = vld [vmem:[%s1520 + $0x58] sm:$0xff]
        %v1533 = vld [vmem:[%s1520 + $0x60] sm:$0xff]
        %v1534 = vld [vmem:[%s1520 + $0x68] sm:$0xff]
        %v1535 = vld [vmem:[%s1520 + $0x70] sm:$0xff]
        %v1536 = vld [vmem:[%s1520 + $0x78] sm:$0xff]
        %v1537 = vld [vmem:[%s1520 + $0x80] sm:$0xff]
        %v1538 = vld [vmem:[%s1520 + $0x88] sm:$0xff]
        %v1539 = vld [vmem:[%s1520 + $0x90] sm:$0xff]
        %v1540 = vld [vmem:[%s1520 + $0x98] sm:$0xff]
        %v1541 = vld [vmem:[%s1520 + $0xa0] sm:$0xf]
        %v1542 = vld [vmem:[%s1520 + $0xa8] sm:$0xf]
        %v1545 = vrot.slane %v1496, 1
        %v1546 = vrot.slane %v1497, 1
        %v1547 = vsel %vm517, %v1545, %v1546
        %vm1548 = vcmask 687104
        %v1549 = vsel %vm1548, %v1547, 0
        %v1551 = vsel %vm1548, %v1546, 0
        %v1554 = vsel %vm973, %v1541, 0
        %v1557 = vsel %vm973, %v1542, 0
        %1559 = vmatprep.subr.mxu0 %v1522
        %1560 = vmatpush1.msra.mxu0 %v1521
        %1561 = vmatprep.subr.mxu0 %v1524
        %1562 = vmatpush1.msra.mxu0 %v1523
        %1563 = vmatprep.subr.mxu0 %v1526
        %1564 = vmatpush1.msra.mxu0 %v1525
        %1565 = vmatprep.subr.mxu0 %v1528
        %1566 = vmatpush1.msra.mxu0 %v1527
        %1567 = vmatprep.subr.mxu0 %v1530
        %1568 = vmatpush1.msra.mxu0 %v1529
        %1569 = vmatprep.subr.mxu0 %v1532
        %1570 = vmatpush1.msra.mxu0 %v1531
        %1571 = vmatprep.subr.mxu0 %v1534
        %1572 = vmatpush1.msra.mxu0 %v1533
        %1573 = vmatprep.subr.mxu0 %v1536
        %1574 = vmatpush1.msra.mxu0 %v1535
        %1575 = vmatprep.subr.mxu0 %v1538
        %1576 = vmatpush1.msra.mxu0 %v1537
        %1577 = vmatprep.subr.mxu0 %v1540
        %1578 = vmatpush1.msra.mxu0 %v1539
        %1579 = vmatprep.subr.mxu0 %v1557
        %1580 = vmatpush1.msra.mxu0 %v1554
        %1581 = vmatprep.subr.mxu0 0.0
        %1582 = vmatpush1.msra.mxu0 0.0
        %1583 = vmatprep.subr.mxu0 0.0
        %1584 = vmatpush1.msra.mxu0 0.0
        %1585 = vmatprep.subr.mxu0 0.0
        %1586 = vmatpush1.msra.mxu0 0.0
        %1587 = vmatprep.subr.mxu0 0.0
        %1588 = vmatpush1.msra.mxu0 0.0
        %1589 = vmatprep.subr.mxu0 0.0
        %1590 = vmatpush1.msra.mxu0 0.0
        %1591 = vmatprep.subr.mxu0 0.0
        %1592 = vmatpush1.msra.mxu0 0.0
        %1593 = vmatprep.subr.mxu0 0.0
        %1594 = vmatpush1.msra.mxu0 0.0
        %1595 = vmatprep.subr.mxu0 0.0
        %1596 = vmatpush1.msra.mxu0 0.0
        %1597 = vmatprep.subr.mxu0 0.0
        %1598 = vmatpush1.msra.mxu0 0.0
        %1599 = vmatprep.subr.mxu0 0.0
        %1600 = vmatpush1.msra.mxu0 0.0
        %1601 = vmatprep.subr.mxu0 0.0
        %1602 = vmatpush1.msra.mxu0 0.0
        %1603 = vmatprep.subr.mxu0 0.0
        %1604 = vmatpush1.msra.mxu0 0.0
        %1605 = vmatprep.subr.mxu0 0.0
        %1606 = vmatpush1.msra.mxu0 0.0
        %1607 = vmatprep.subr.mxu0 0.0
        %1608 = vmatpush1.msra.mxu0 0.0
        %1609 = vmatprep.subr.mxu0 0.0
        %1610 = vmatpush1.msra.mxu0 0.0
        %1611 = vmatprep.subr.mxu0 0.0
        %1612 = vmatpush1.msra.mxu0 0.0
        %1613 = vmatprep.subr.mxu0 0.0
        %1614 = vmatpush1.msra.mxu0 0.0
        %1615 = vmatprep.subr.mxu0 0.0
        %1616 = vmatpush1.msra.mxu0 0.0
        %1617 = vmatprep.subr.mxu0 0.0
        %1618 = vmatpush1.msra.mxu0 0.0
        %1619 = vmatprep.subr.mxu0 0.0
        %1620 = vmatpush1.msra.mxu0 0.0
        %1621 = vmatprep.subr.mxu0 0.0
        %1622 = vmatpush1.msra.mxu0 0.0
        %1623 = vmatprep.mubr.f32.mxu0 0.0
        %1624 = vmatmul.mubr.f32.gmra.mrb[0].mxu0 %v1549
        %v1625 = vpop.f32.mrb[0].mxu0
        %v1626 = vadd.f32 0.0, %v1625
        %v1627 = vpop.f32.mrb[0].mxu0
        %v1628 = vadd.f32 0.0, %v1627
        %1629 = vmatprep.mubr.f32.mxu0 0.0
        %1630 = vmatmul.mubr.f32.gmra.mrb[0].mxu0 %v1551
        %v1631 = vpop.f32.mrb[0].mxu0
        %v1632 = vadd.f32 0.0, %v1631
        %v1633 = vpop.f32.mrb[0].mxu0
        %v1634 = vadd.f32 0.0, %v1633
        %1635 = vdwg.mxu0
        %v1636 = vsel %vm1548, %v1496, 0
        %v1638 = vsel %vm1548, %v1497, 0
        %v1641 = vsel %vm973, %v1518, 0
        %v1644 = vsel %vm973, %v1519, 0
        %1646 = vmatprep.subr.mxu0 %v1499
        %1647 = vmatpush1.msra.mxu0 %v1498
        %1648 = vmatprep.subr.mxu0 %v1501
        %1649 = vmatpush1.msra.mxu0 %v1500
        %1650 = vmatprep.subr.mxu0 %v1503
        %1651 = vmatpush1.msra.mxu0 %v1502
        %1652 = vmatprep.subr.mxu0 %v1505
        %1653 = vmatpush1.msra.mxu0 %v1504
        %1654 = vmatprep.subr.mxu0 %v1507
        %1655 = vmatpush1.msra.mxu0 %v1506
        %1656 = vmatprep.subr.mxu0 %v1509
        %1657 = vmatpush1.msra.mxu0 %v1508
        %1658 = vmatprep.subr.mxu0 %v1511
        %1659 = vmatpush1.msra.mxu0 %v1510
        %1660 = vmatprep.subr.mxu0 %v1513
        %1661 = vmatpush1.msra.mxu0 %v1512
        %1662 = vmatprep.subr.mxu0 %v1515
        %1663 = vmatpush1.msra.mxu0 %v1514
        %1664 = vmatprep.subr.mxu0 %v1517
        %1665 = vmatpush1.msra.mxu0 %v1516
        %1666 = vmatprep.subr.mxu0 %v1644
        %1667 = vmatpush1.msra.mxu0 %v1641
        %1668 = vmatprep.subr.mxu0 0.0
        %1669 = vmatpush1.msra.mxu0 0.0
        %1670 = vmatprep.subr.mxu0 0.0
        %1671 = vmatpush1.msra.mxu0 0.0
        %1672 = vmatprep.subr.mxu0 0.0
        %1673 = vmatpush1.msra.mxu0 0.0
        %1674 = vmatprep.subr.mxu0 0.0
        %1675 = vmatpush1.msra.mxu0 0.0
        %1676 = vmatprep.subr.mxu0 0.0
        %1677 = vmatpush1.msra.mxu0 0.0
        %1678 = vmatprep.subr.mxu0 0.0
        %1679 = vmatpush1.msra.mxu0 0.0
        %1680 = vmatprep.subr.mxu0 0.0
        %1681 = vmatpush1.msra.mxu0 0.0
        %1682 = vmatprep.subr.mxu0 0.0
        %1683 = vmatpush1.msra.mxu0 0.0
        %1684 = vmatprep.subr.mxu0 0.0
        %1685 = vmatpush1.msra.mxu0 0.0
        %1686 = vmatprep.subr.mxu0 0.0
        %1687 = vmatpush1.msra.mxu0 0.0
        %1688 = vmatprep.subr.mxu0 0.0
        %1689 = vmatpush1.msra.mxu0 0.0
        %1690 = vmatprep.subr.mxu0 0.0
        %1691 = vmatpush1.msra.mxu0 0.0
        %1692 = vmatprep.subr.mxu0 0.0
        %1693 = vmatpush1.msra.mxu0 0.0
        %1694 = vmatprep.subr.mxu0 0.0
        %1695 = vmatpush1.msra.mxu0 0.0
        %1696 = vmatprep.subr.mxu0 0.0
        %1697 = vmatpush1.msra.mxu0 0.0
        %1698 = vmatprep.subr.mxu0 0.0
        %1699 = vmatpush1.msra.mxu0 0.0
        %1700 = vmatprep.subr.mxu0 0.0
        %1701 = vmatpush1.msra.mxu0 0.0
        %1702 = vmatprep.subr.mxu0 0.0
        %1703 = vmatpush1.msra.mxu0 0.0
        %1704 = vmatprep.subr.mxu0 0.0
        %1705 = vmatpush1.msra.mxu0 0.0
        %1706 = vmatprep.subr.mxu0 0.0
        %1707 = vmatpush1.msra.mxu0 0.0
        %1708 = vmatprep.subr.mxu0 0.0
        %1709 = vmatpush1.msra.mxu0 0.0
        %1710 = vmatprep.mubr.f32.mxu0 0.0
        %1711 = vmatmul.mubr.f32.gmra.mrb[0].mxu0 %v1636
        %v1712 = vpop.f32.mrb[0].mxu0
        %v1713 = vadd.f32 %v1626, %v1712
        %v1714 = vpop.f32.mrb[0].mxu0
        %v1715 = vadd.f32 %v1628, %v1714
        %1716 = vmatprep.mubr.f32.mxu0 0.0
        %1717 = vmatmul.mubr.f32.gmra.mrb[0].mxu0 %v1638
        %v1718 = vpop.f32.mrb[0].mxu0
        %v1719 = vadd.f32 %v1632, %v1718
        %v1720 = vpop.f32.mrb[0].mxu0
        %v1721 = vadd.f32 %v1634, %v1720
        %1722 = vdwg.mxu0
        %s1723 = scalar_lea.vmem %s5, 352
        %v1724 = vld [vmem:[%s1723] sm:$0xff]
        %v1725 = vld [vmem:[%s1723 + $0x8] sm:$0xff]
        %v1726 = vld [vmem:[%s1723 + $0x10] sm:$0xff]
        %v1727 = vld [vmem:[%s1723 + $0x18] sm:$0xff]
        %v1728 = vld [vmem:[%s1723 + $0x20] sm:$0xff]
        %v1729 = vld [vmem:[%s1723 + $0x28] sm:$0xff]
        %v1730 = vld [vmem:[%s1723 + $0x30] sm:$0xff]
        %v1731 = vld [vmem:[%s1723 + $0x38] sm:$0xff]
        %v1732 = vld [vmem:[%s1723 + $0x40] sm:$0xff]
        %v1733 = vld [vmem:[%s1723 + $0x48] sm:$0xff]
        %v1734 = vld [vmem:[%s1723 + $0x50] sm:$0xff]
        %v1735 = vld [vmem:[%s1723 + $0x58] sm:$0xff]
        %v1736 = vld [vmem:[%s1723 + $0x60] sm:$0xff]
        %v1737 = vld [vmem:[%s1723 + $0x68] sm:$0xff]
        %v1738 = vld [vmem:[%s1723 + $0x70] sm:$0xff]
        %v1739 = vld [vmem:[%s1723 + $0x78] sm:$0xff]
        %v1740 = vld [vmem:[%s1723 + $0x80] sm:$0xff]
        %v1741 = vld [vmem:[%s1723 + $0x88] sm:$0xff]
        %v1742 = vld [vmem:[%s1723 + $0x90] sm:$0xff]
        %v1743 = vld [vmem:[%s1723 + $0x98] sm:$0xff]
        %v1744 = vld [vmem:[%s1723 + $0xa0] sm:$0xf]
        %v1745 = vld [vmem:[%s1723 + $0xa8] sm:$0xf]
        %v1746 = vrot.slane %v1496, 2
        %v1747 = vrot.slane %v1497, 2
        %v1748 = vsel %vm729, %v1746, %v1747
        %v1749 = vsel %vm1548, %v1748, 0
        %v1751 = vsel %vm1548, %v1747, 0
        %v1754 = vsel %vm973, %v1744, 0
        %v1757 = vsel %vm973, %v1745, 0
        %1759 = vmatprep.subr.mxu0 %v1725
        %1760 = vmatpush1.msra.mxu0 %v1724
        %1761 = vmatprep.subr.mxu0 %v1727
        %1762 = vmatpush1.msra.mxu0 %v1726
        %1763 = vmatprep.subr.mxu0 %v1729
        %1764 = vmatpush1.msra.mxu0 %v1728
        %1765 = vmatprep.subr.mxu0 %v1731
        %1766 = vmatpush1.msra.mxu0 %v1730
        %1767 = vmatprep.subr.mxu0 %v1733
        %1768 = vmatpush1.msra.mxu0 %v1732
        %1769 = vmatprep.subr.mxu0 %v1735
        %1770 = vmatpush1.msra.mxu0 %v1734
        %1771 = vmatprep.subr.mxu0 %v1737
        %1772 = vmatpush1.msra.mxu0 %v1736
        %1773 = vmatprep.subr.mxu0 %v1739
        %1774 = vmatpush1.msra.mxu0 %v1738
        %1775 = vmatprep.subr.mxu0 %v1741
        %1776 = vmatpush1.msra.mxu0 %v1740
        %1777 = vmatprep.subr.mxu0 %v1743
        %1778 = vmatpush1.msra.mxu0 %v1742
        %1779 = vmatprep.subr.mxu0 %v1757
        %1780 = vmatpush1.msra.mxu0 %v1754
        %1781 = vmatprep.subr.mxu0 0.0
        %1782 = vmatpush1.msra.mxu0 0.0
        %1783 = vmatprep.subr.mxu0 0.0
        %1784 = vmatpush1.msra.mxu0 0.0
        %1785 = vmatprep.subr.mxu0 0.0
        %1786 = vmatpush1.msra.mxu0 0.0
        %1787 = vmatprep.subr.mxu0 0.0
        %1788 = vmatpush1.msra.mxu0 0.0
        %1789 = vmatprep.subr.mxu0 0.0
        %1790 = vmatpush1.msra.mxu0 0.0
        %1791 = vmatprep.subr.mxu0 0.0
        %1792 = vmatpush1.msra.mxu0 0.0
        %1793 = vmatprep.subr.mxu0 0.0
        %1794 = vmatpush1.msra.mxu0 0.0
        %1795 = vmatprep.subr.mxu0 0.0
        %1796 = vmatpush1.msra.mxu0 0.0
        %1797 = vmatprep.subr.mxu0 0.0
        %1798 = vmatpush1.msra.mxu0 0.0
        %1799 = vmatprep.subr.mxu0 0.0
        %1800 = vmatpush1.msra.mxu0 0.0
        %1801 = vmatprep.subr.mxu0 0.0
        %1802 = vmatpush1.msra.mxu0 0.0
        %1803 = vmatprep.subr.mxu0 0.0
        %1804 = vmatpush1.msra.mxu0 0.0
        %1805 = vmatprep.subr.mxu0 0.0
        %1806 = vmatpush1.msra.mxu0 0.0
        %1807 = vmatprep.subr.mxu0 0.0
        %1808 = vmatpush1.msra.mxu0 0.0
        %1809 = vmatprep.subr.mxu0 0.0
        %1810 = vmatpush1.msra.mxu0 0.0
        %1811 = vmatprep.subr.mxu0 0.0
        %1812 = vmatpush1.msra.mxu0 0.0
        %1813 = vmatprep.subr.mxu0 0.0
        %1814 = vmatpush1.msra.mxu0 0.0
        %1815 = vmatprep.subr.mxu0 0.0
        %1816 = vmatpush1.msra.mxu0 0.0
        %1817 = vmatprep.subr.mxu0 0.0
        %1818 = vmatpush1.msra.mxu0 0.0
        %1819 = vmatprep.subr.mxu0 0.0
        %1820 = vmatpush1.msra.mxu0 0.0
        %1821 = vmatprep.subr.mxu0 0.0
        %1822 = vmatpush1.msra.mxu0 0.0
        %1823 = vmatprep.mubr.f32.mxu0 0.0
        %1824 = vmatmul.mubr.f32.gmra.mrb[0].mxu0 %v1749
        %v1825 = vpop.f32.mrb[0].mxu0
        %v1826 = vadd.f32 0.0, %v1825
        %v1827 = vpop.f32.mrb[0].mxu0
        %v1828 = vadd.f32 0.0, %v1827
        %1829 = vmatprep.mubr.f32.mxu0 0.0
        %1830 = vmatmul.mubr.f32.gmra.mrb[0].mxu0 %v1751
        %v1831 = vpop.f32.mrb[0].mxu0
        %v1832 = vadd.f32 0.0, %v1831
        %v1833 = vpop.f32.mrb[0].mxu0
        %v1834 = vadd.f32 0.0, %v1833
        %1835 = vdwg.mxu0
        %v1836 = vadd.f32 %v1713, %v1826
        %v1837 = vadd.f32 %v1715, %v1828
        %v1838 = vadd.f32 %v1719, %v1832
        %v1839 = vadd.f32 %v1721, %v1834
        %s1840 = scalar_lea.vmem %s5, 528
        %v1841 = vld [vmem:[%s1840] sm:$0xff]
        %v1842 = vld [vmem:[%s1840 + $0x8] sm:$0xff]
        %v1843 = vld [vmem:[%s1840 + $0x10] sm:$0xff]
        %v1844 = vld [vmem:[%s1840 + $0x18] sm:$0xff]
        %v1845 = vld [vmem:[%s1840 + $0x20] sm:$0xff]
        %v1846 = vld [vmem:[%s1840 + $0x28] sm:$0xff]
        %v1847 = vld [vmem:[%s1840 + $0x30] sm:$0xff]
        %v1848 = vld [vmem:[%s1840 + $0x38] sm:$0xff]
        %v1849 = vld [vmem:[%s1840 + $0x40] sm:$0xff]
        %v1850 = vld [vmem:[%s1840 + $0x48] sm:$0xff]
        %v1851 = vld [vmem:[%s1840 + $0x50] sm:$0xff]
        %v1852 = vld [vmem:[%s1840 + $0x58] sm:$0xff]
        %v1853 = vld [vmem:[%s1840 + $0x60] sm:$0xff]
        %v1854 = vld [vmem:[%s1840 + $0x68] sm:$0xff]
        %v1855 = vld [vmem:[%s1840 + $0x70] sm:$0xff]
        %v1856 = vld [vmem:[%s1840 + $0x78] sm:$0xff]
        %v1857 = vld [vmem:[%s1840 + $0x80] sm:$0xff]
        %v1858 = vld [vmem:[%s1840 + $0x88] sm:$0xff]
        %v1859 = vld [vmem:[%s1840 + $0x90] sm:$0xff]
        %v1860 = vld [vmem:[%s1840 + $0x98] sm:$0xff]
        %v1861 = vld [vmem:[%s1840 + $0xa0] sm:$0xf]
        %v1862 = vld [vmem:[%s1840 + $0xa8] sm:$0xf]
        %v1863 = vrot.slane %v1496, 3
        %v1864 = vrot.slane %v1497, 3
        %v1865 = vsel %vm851, %v1863, %v1864
        %v1866 = vsel %vm1548, %v1865, 0
        %v1868 = vsel %vm1548, %v1864, 0
        %v1871 = vsel %vm973, %v1861, 0
        %v1874 = vsel %vm973, %v1862, 0
        %1876 = vmatprep.subr.mxu0 %v1842
        %1877 = vmatpush1.msra.mxu0 %v1841
        %1878 = vmatprep.subr.mxu0 %v1844
        %1879 = vmatpush1.msra.mxu0 %v1843
        %1880 = vmatprep.subr.mxu0 %v1846
        %1881 = vmatpush1.msra.mxu0 %v1845
        %1882 = vmatprep.subr.mxu0 %v1848
        %1883 = vmatpush1.msra.mxu0 %v1847
        %1884 = vmatprep.subr.mxu0 %v1850
        %1885 = vmatpush1.msra.mxu0 %v1849
        %1886 = vmatprep.subr.mxu0 %v1852
        %1887 = vmatpush1.msra.mxu0 %v1851
        %1888 = vmatprep.subr.mxu0 %v1854
        %1889 = vmatpush1.msra.mxu0 %v1853
        %1890 = vmatprep.subr.mxu0 %v1856
        %1891 = vmatpush1.msra.mxu0 %v1855
        %1892 = vmatprep.subr.mxu0 %v1858
        %1893 = vmatpush1.msra.mxu0 %v1857
        %1894 = vmatprep.subr.mxu0 %v1860
        %1895 = vmatpush1.msra.mxu0 %v1859
        %1896 = vmatprep.subr.mxu0 %v1874
        %1897 = vmatpush1.msra.mxu0 %v1871
        %1898 = vmatprep.subr.mxu0 0.0
        %1899 = vmatpush1.msra.mxu0 0.0
        %1900 = vmatprep.subr.mxu0 0.0
        %1901 = vmatpush1.msra.mxu0 0.0
        %1902 = vmatprep.subr.mxu0 0.0
        %1903 = vmatpush1.msra.mxu0 0.0
        %1904 = vmatprep.subr.mxu0 0.0
        %1905 = vmatpush1.msra.mxu0 0.0
        %1906 = vmatprep.subr.mxu0 0.0
        %1907 = vmatpush1.msra.mxu0 0.0
        %1908 = vmatprep.subr.mxu0 0.0
        %1909 = vmatpush1.msra.mxu0 0.0
        %1910 = vmatprep.subr.mxu0 0.0
        %1911 = vmatpush1.msra.mxu0 0.0
        %1912 = vmatprep.subr.mxu0 0.0
        %1913 = vmatpush1.msra.mxu0 0.0
        %1914 = vmatprep.subr.mxu0 0.0
        %1915 = vmatpush1.msra.mxu0 0.0
        %1916 = vmatprep.subr.mxu0 0.0
        %1917 = vmatpush1.msra.mxu0 0.0
        %1918 = vmatprep.subr.mxu0 0.0
        %1919 = vmatpush1.msra.mxu0 0.0
        %1920 = vmatprep.subr.mxu0 0.0
        %1921 = vmatpush1.msra.mxu0 0.0
        %1922 = vmatprep.subr.mxu0 0.0
        %1923 = vmatpush1.msra.mxu0 0.0
        %1924 = vmatprep.subr.mxu0 0.0
        %1925 = vmatpush1.msra.mxu0 0.0
        %1926 = vmatprep.subr.mxu0 0.0
        %1927 = vmatpush1.msra.mxu0 0.0
        %1928 = vmatprep.subr.mxu0 0.0
        %1929 = vmatpush1.msra.mxu0 0.0
        %1930 = vmatprep.subr.mxu0 0.0
        %1931 = vmatpush1.msra.mxu0 0.0
        %1932 = vmatprep.subr.mxu0 0.0
        %1933 = vmatpush1.msra.mxu0 0.0
        %1934 = vmatprep.subr.mxu0 0.0
        %1935 = vmatpush1.msra.mxu0 0.0
        %1936 = vmatprep.subr.mxu0 0.0
        %1937 = vmatpush1.msra.mxu0 0.0
        %1938 = vmatprep.subr.mxu0 0.0
        %1939 = vmatpush1.msra.mxu0 0.0
        %1940 = vmatprep.mubr.f32.mxu0 0.0
        %1941 = vmatmul.mubr.f32.gmra.mrb[0].mxu0 %v1866
        %v1942 = vpop.f32.mrb[0].mxu0
        %v1943 = vadd.f32 0.0, %v1942
        %v1944 = vpop.f32.mrb[0].mxu0
        %v1945 = vadd.f32 0.0, %v1944
        %1946 = vmatprep.mubr.f32.mxu0 0.0
        %1947 = vmatmul.mubr.f32.gmra.mrb[0].mxu0 %v1868
        %v1948 = vpop.f32.mrb[0].mxu0
        %v1949 = vadd.f32 0.0, %v1948
        %v1950 = vpop.f32.mrb[0].mxu0
        %v1951 = vadd.f32 0.0, %v1950
        %1952 = vdwg.mxu0
        %v1953 = vadd.f32 %v1836, %v1943
        %v1954 = vadd.f32 %v1837, %v1945
        %v1955 = vadd.f32 %v1838, %v1949
        %v1956 = vadd.f32 %v1839, %v1951
        %s1957 = scalar_lea.vmem %s5, 704
        %v1958 = vld [vmem:[%s1957] sm:$0xff]
        %v1959 = vld [vmem:[%s1957 + $0x8] sm:$0xff]
        %v1960 = vld [vmem:[%s1957 + $0x10] sm:$0xff]
        %v1961 = vld [vmem:[%s1957 + $0x18] sm:$0xff]
        %v1962 = vld [vmem:[%s1957 + $0x20] sm:$0xff]
        %v1963 = vld [vmem:[%s1957 + $0x28] sm:$0xff]
        %v1964 = vld [vmem:[%s1957 + $0x30] sm:$0xff]
        %v1965 = vld [vmem:[%s1957 + $0x38] sm:$0xff]
        %v1966 = vld [vmem:[%s1957 + $0x40] sm:$0xff]
        %v1967 = vld [vmem:[%s1957 + $0x48] sm:$0xff]
        %v1968 = vld [vmem:[%s1957 + $0x50] sm:$0xff]
        %v1969 = vld [vmem:[%s1957 + $0x58] sm:$0xff]
        %v1970 = vld [vmem:[%s1957 + $0x60] sm:$0xff]
        %v1971 = vld [vmem:[%s1957 + $0x68] sm:$0xff]
        %v1972 = vld [vmem:[%s1957 + $0x70] sm:$0xff]
        %v1973 = vld [vmem:[%s1957 + $0x78] sm:$0xff]
        %v1974 = vld [vmem:[%s1957 + $0x80] sm:$0xff]
        %v1975 = vld [vmem:[%s1957 + $0x88] sm:$0xff]
        %v1976 = vld [vmem:[%s1957 + $0x90] sm:$0xff]
        %v1977 = vld [vmem:[%s1957 + $0x98] sm:$0xff]
        %v1978 = vld [vmem:[%s1957 + $0xa0] sm:$0xf]
        %v1979 = vld [vmem:[%s1957 + $0xa8] sm:$0xf]
        %v1980 = vrot.slane %v1496, 4
        %v1981 = vrot.slane %v1497, 4
        %v1982 = vsel %vm973, %v1980, %v1981
        %v1983 = vsel %vm1548, %v1982, 0
        %v1985 = vsel %vm1548, %v1981, 0
        %v1988 = vsel %vm973, %v1978, 0
        %v1991 = vsel %vm973, %v1979, 0
        %1993 = vmatprep.subr.mxu0 %v1959
        %1994 = vmatpush1.msra.mxu0 %v1958
        %1995 = vmatprep.subr.mxu0 %v1961
        %1996 = vmatpush1.msra.mxu0 %v1960
        %1997 = vmatprep.subr.mxu0 %v1963
        %1998 = vmatpush1.msra.mxu0 %v1962
        %1999 = vmatprep.subr.mxu0 %v1965
        %2000 = vmatpush1.msra.mxu0 %v1964
        %2001 = vmatprep.subr.mxu0 %v1967
        %2002 = vmatpush1.msra.mxu0 %v1966
        %2003 = vmatprep.subr.mxu0 %v1969
        %2004 = vmatpush1.msra.mxu0 %v1968
        %2005 = vmatprep.subr.mxu0 %v1971
        %2006 = vmatpush1.msra.mxu0 %v1970
        %2007 = vmatprep.subr.mxu0 %v1973
        %2008 = vmatpush1.msra.mxu0 %v1972
        %2009 = vmatprep.subr.mxu0 %v1975
        %2010 = vmatpush1.msra.mxu0 %v1974
        %2011 = vmatprep.subr.mxu0 %v1977
        %2012 = vmatpush1.msra.mxu0 %v1976
        %2013 = vmatprep.subr.mxu0 %v1991
        %2014 = vmatpush1.msra.mxu0 %v1988
        %2015 = vmatprep.subr.mxu0 0.0
        %2016 = vmatpush1.msra.mxu0 0.0
        %2017 = vmatprep.subr.mxu0 0.0
        %2018 = vmatpush1.msra.mxu0 0.0
        %2019 = vmatprep.subr.mxu0 0.0
        %2020 = vmatpush1.msra.mxu0 0.0
        %2021 = vmatprep.subr.mxu0 0.0
        %2022 = vmatpush1.msra.mxu0 0.0
        %2023 = vmatprep.subr.mxu0 0.0
        %2024 = vmatpush1.msra.mxu0 0.0
        %2025 = vmatprep.subr.mxu0 0.0
        %2026 = vmatpush1.msra.mxu0 0.0
        %2027 = vmatprep.subr.mxu0 0.0
        %2028 = vmatpush1.msra.mxu0 0.0
        %2029 = vmatprep.subr.mxu0 0.0
        %2030 = vmatpush1.msra.mxu0 0.0
        %2031 = vmatprep.subr.mxu0 0.0
        %2032 = vmatpush1.msra.mxu0 0.0
        %2033 = vmatprep.subr.mxu0 0.0
        %2034 = vmatpush1.msra.mxu0 0.0
        %2035 = vmatprep.subr.mxu0 0.0
        %2036 = vmatpush1.msra.mxu0 0.0
        %2037 = vmatprep.subr.mxu0 0.0
        %2038 = vmatpush1.msra.mxu0 0.0
        %2039 = vmatprep.subr.mxu0 0.0
        %2040 = vmatpush1.msra.mxu0 0.0
        %2041 = vmatprep.subr.mxu0 0.0
        %2042 = vmatpush1.msra.mxu0 0.0
        %2043 = vmatprep.subr.mxu0 0.0
        %2044 = vmatpush1.msra.mxu0 0.0
        %2045 = vmatprep.subr.mxu0 0.0
        %2046 = vmatpush1.msra.mxu0 0.0
        %2047 = vmatprep.subr.mxu0 0.0
        %2048 = vmatpush1.msra.mxu0 0.0
        %2049 = vmatprep.subr.mxu0 0.0
        %2050 = vmatpush1.msra.mxu0 0.0
        %2051 = vmatprep.subr.mxu0 0.0
        %2052 = vmatpush1.msra.mxu0 0.0
        %2053 = vmatprep.subr.mxu0 0.0
        %2054 = vmatpush1.msra.mxu0 0.0
        %2055 = vmatprep.subr.mxu0 0.0
        %2056 = vmatpush1.msra.mxu0 0.0
        %2057 = vmatprep.mubr.f32.mxu0 0.0
        %2058 = vmatmul.mubr.f32.gmra.mrb[0].mxu0 %v1983
        %v2059 = vpop.f32.mrb[0].mxu0
        %v2060 = vadd.f32 0.0, %v2059
        %v2061 = vpop.f32.mrb[0].mxu0
        %v2062 = vadd.f32 0.0, %v2061
        %2063 = vmatprep.mubr.f32.mxu0 0.0
        %2064 = vmatmul.mubr.f32.gmra.mrb[0].mxu0 %v1985
        %v2065 = vpop.f32.mrb[0].mxu0
        %v2066 = vadd.f32 0.0, %v2065
        %v2067 = vpop.f32.mrb[0].mxu0
        %v2068 = vadd.f32 0.0, %v2067
        %2069 = vdwg.mxu0
        %v2070 = vadd.f32 %v1953, %v2060
        %v2071 = vadd.f32 %v1954, %v2062
        %v2072 = vadd.f32 %v1955, %v2066
        %v2073 = vadd.f32 %v1956, %v2068
        %v2074 = vld [vmem:[%s6] sm:$0x3]
        %v2076 = vlaneseq
        %v2077 = vshrl.u32 %v2076, 7
        %v2078 = vsub.s32 0, %v2077
        %v2079 = vrot.slane %v2074, %v2078
        %v2080 = vlaneseq
        %v2081 = vshrl.u32 %v2080, 7
        %v2082 = vsub.s32 1, %v2081
        %v2083 = vrot.slane %v2074, %v2082
        %v2086 = vadd.f32 %v2070, %v2079
        %v2087 = vadd.f32 %v2071, %v2083
        %v2088 = vadd.f32 %v2072, %v2079
        %v2089 = vadd.f32 %v2073, %v2083
        %v2090 = vmax.f32 %v2086, 0.0
        %v2091 = vmax.f32 %v2087, 0.0
        %v2092 = vmax.f32 %v2088, 0.0
        %v2093 = vmax.f32 %v2089, 0.0
        %v2094 = vld [vmem:[%s7] sm:$0x1f]
        %vm2095 = vcmask 80896
        %v2097 = vsel %vm2095, %v2094, 0
        %vm2099 = vcmask 1041408
        %v2101 = vsel %vm2099, %v2092, 0
        %v2104 = vsel %vm2099, %v2093, 0
        %2106 = vmatprep.subr.mxu0 %v2091
        %2107 = vmatpush1.msra.mxu0 %v2090
        %2108 = vmatprep.subr.mxu0 %v2104
        %2109 = vmatpush1.msra.mxu0 %v2101
        %2110 = vmatprep.subr.mxu0 0.0
        %2111 = vmatpush1.msra.mxu0 0.0
        %2112 = vmatprep.subr.mxu0 0.0
        %2113 = vmatpush1.msra.mxu0 0.0
        %2114 = vmatprep.subr.mxu0 0.0
        %2115 = vmatpush1.msra.mxu0 0.0
        %2116 = vmatprep.subr.mxu0 0.0
        %2117 = vmatpush1.msra.mxu0 0.0
        %2118 = vmatprep.subr.mxu0 0.0
        %2119 = vmatpush1.msra.mxu0 0.0
        %2120 = vmatprep.subr.mxu0 0.0
        %2121 = vmatpush1.msra.mxu0 0.0
        %2122 = vmatprep.subr.mxu0 0.0
        %2123 = vmatpush1.msra.mxu0 0.0
        %2124 = vmatprep.subr.mxu0 0.0
        %2125 = vmatpush1.msra.mxu0 0.0
        %2126 = vmatprep.subr.mxu0 0.0
        %2127 = vmatpush1.msra.mxu0 0.0
        %2128 = vmatprep.subr.mxu0 0.0
        %2129 = vmatpush1.msra.mxu0 0.0
        %2130 = vmatprep.subr.mxu0 0.0
        %2131 = vmatpush1.msra.mxu0 0.0
        %2132 = vmatprep.subr.mxu0 0.0
        %2133 = vmatpush1.msra.mxu0 0.0
        %2134 = vmatprep.subr.mxu0 0.0
        %2135 = vmatpush1.msra.mxu0 0.0
        %2136 = vmatprep.subr.mxu0 0.0
        %2137 = vmatpush1.msra.mxu0 0.0
        %2138 = vmatprep.subr.mxu0 0.0
        %2139 = vmatpush1.msra.mxu0 0.0
        %2140 = vmatprep.subr.mxu0 0.0
        %2141 = vmatpush1.msra.mxu0 0.0
        %2142 = vmatprep.subr.mxu0 0.0
        %2143 = vmatpush1.msra.mxu0 0.0
        %2144 = vmatprep.subr.mxu0 0.0
        %2145 = vmatpush1.msra.mxu0 0.0
        %2146 = vmatprep.subr.mxu0 0.0
        %2147 = vmatpush1.msra.mxu0 0.0
        %2148 = vmatprep.subr.mxu0 0.0
        %2149 = vmatpush1.msra.mxu0 0.0
        %2150 = vmatprep.subr.mxu0 0.0
        %2151 = vmatpush1.msra.mxu0 0.0
        %2152 = vmatprep.subr.mxu0 0.0
        %2153 = vmatpush1.msra.mxu0 0.0
        %2154 = vmatprep.subr.mxu0 0.0
        %2155 = vmatpush1.msra.mxu0 0.0
        %2156 = vmatprep.subr.mxu0 0.0
        %2157 = vmatpush1.msra.mxu0 0.0
        %2158 = vmatprep.subr.mxu0 0.0
        %2159 = vmatpush1.msra.mxu0 0.0
        %2160 = vmatprep.subr.mxu0 0.0
        %2161 = vmatpush1.msra.mxu0 0.0
        %2162 = vmatprep.subr.mxu0 0.0
        %2163 = vmatpush1.msra.mxu0 0.0
        %2164 = vmatprep.subr.mxu0 0.0
        %2165 = vmatpush1.msra.mxu0 0.0
        %2166 = vmatprep.subr.mxu0 0.0
        %2167 = vmatpush1.msra.mxu0 0.0
        %2168 = vmatprep.subr.mxu0 0.0
        %2169 = vmatpush1.msra.mxu0 0.0
        %2170 = vmatprep.mubr.f32.mxu0 0.0
        %2171 = vmatmul.mubr.f32.gmra.mrb[0].mxu0 %v2097
        %v2172 = vpop.f32.mrb[0].mxu0
        %v2173 = vadd.f32 0.0, %v2172
        %v2174 = vpop.f32.mrb[0].mxu0
        %v2175 = vadd.f32 0.0, %v2174
        %2176 = vdwg.mxu0
        %s2177 = scalar_lea.vmem %s7, 8
        %v2178 = vld [vmem:[%s2177] sm:$0x1f]
        %v2180 = vsel %vm2095, %v2178, 0
        %2182 = vmatprep.subr.mxu0 %v2091
        %2183 = vmatpush1.msra.mxu0 %v2090
        %2184 = vmatprep.subr.mxu0 %v2104
        %2185 = vmatpush1.msra.mxu0 %v2101
        %2186 = vmatprep.subr.mxu0 0.0
        %2187 = vmatpush1.msra.mxu0 0.0
        %2188 = vmatprep.subr.mxu0 0.0
        %2189 = vmatpush1.msra.mxu0 0.0
        %2190 = vmatprep.subr.mxu0 0.0
        %2191 = vmatpush1.msra.mxu0 0.0
        %2192 = vmatprep.subr.mxu0 0.0
        %2193 = vmatpush1.msra.mxu0 0.0
        %2194 = vmatprep.subr.mxu0 0.0
        %2195 = vmatpush1.msra.mxu0 0.0
        %2196 = vmatprep.subr.mxu0 0.0
        %2197 = vmatpush1.msra.mxu0 0.0
        %2198 = vmatprep.subr.mxu0 0.0
        %2199 = vmatpush1.msra.mxu0 0.0
        %2200 = vmatprep.subr.mxu0 0.0
        %2201 = vmatpush1.msra.mxu0 0.0
        %2202 = vmatprep.subr.mxu0 0.0
        %2203 = vmatpush1.msra.mxu0 0.0
        %2204 = vmatprep.subr.mxu0 0.0
        %2205 = vmatpush1.msra.mxu0 0.0
        %2206 = vmatprep.subr.mxu0 0.0
        %2207 = vmatpush1.msra.mxu0 0.0
        %2208 = vmatprep.subr.mxu0 0.0
        %2209 = vmatpush1.msra.mxu0 0.0
        %2210 = vmatprep.subr.mxu0 0.0
        %2211 = vmatpush1.msra.mxu0 0.0
        %2212 = vmatprep.subr.mxu0 0.0
        %2213 = vmatpush1.msra.mxu0 0.0
        %2214 = vmatprep.subr.mxu0 0.0
        %2215 = vmatpush1.msra.mxu0 0.0
        %2216 = vmatprep.subr.mxu0 0.0
        %2217 = vmatpush1.msra.mxu0 0.0
        %2218 = vmatprep.subr.mxu0 0.0
        %2219 = vmatpush1.msra.mxu0 0.0
        %2220 = vmatprep.subr.mxu0 0.0
        %2221 = vmatpush1.msra.mxu0 0.0
        %2222 = vmatprep.subr.mxu0 0.0
        %2223 = vmatpush1.msra.mxu0 0.0
        %2224 = vmatprep.subr.mxu0 0.0
        %2225 = vmatpush1.msra.mxu0 0.0
        %2226 = vmatprep.subr.mxu0 0.0
        %2227 = vmatpush1.msra.mxu0 0.0
        %2228 = vmatprep.subr.mxu0 0.0
        %2229 = vmatpush1.msra.mxu0 0.0
        %2230 = vmatprep.subr.mxu0 0.0
        %2231 = vmatpush1.msra.mxu0 0.0
        %2232 = vmatprep.subr.mxu0 0.0
        %2233 = vmatpush1.msra.mxu0 0.0
        %2234 = vmatprep.subr.mxu0 0.0
        %2235 = vmatpush1.msra.mxu0 0.0
        %2236 = vmatprep.subr.mxu0 0.0
        %2237 = vmatpush1.msra.mxu0 0.0
        %2238 = vmatprep.subr.mxu0 0.0
        %2239 = vmatpush1.msra.mxu0 0.0
        %2240 = vmatprep.subr.mxu0 0.0
        %2241 = vmatpush1.msra.mxu0 0.0
        %2242 = vmatprep.subr.mxu0 0.0
        %2243 = vmatpush1.msra.mxu0 0.0
        %2244 = vmatprep.subr.mxu0 0.0
        %2245 = vmatpush1.msra.mxu0 0.0
        %2246 = vmatprep.mubr.f32.mxu0 0.0
        %2247 = vmatmul.mubr.f32.gmra.mrb[0].mxu0 %v2180
        %v2248 = vpop.f32.mrb[0].mxu0
        %v2249 = vadd.f32 0.0, %v2248
        %v2250 = vpop.f32.mrb[0].mxu0
        %v2251 = vadd.f32 0.0, %v2250
        %2252 = vdwg.mxu0
        %v2253 = vmax.f32 %v2173, %v2249
        %v2254 = vmax.f32 %v2175, %v2251
        %v2255 = vld [vmem:[%s8] sm:$0xff]
        %v2256 = vld [vmem:[%s8 + $0x8] sm:$0xff]
        %v2257 = vld [vmem:[%s8 + $0x10] sm:$0xff]
        %v2258 = vld [vmem:[%s8 + $0x18] sm:$0xff]
        %v2259 = vld [vmem:[%s8 + $0x20] sm:$0xff]
        %v2260 = vld [vmem:[%s8 + $0x28] sm:$0xff]
        %v2261 = vld [vmem:[%s8 + $0x30] sm:$0xff]
        %v2262 = vld [vmem:[%s8 + $0x38] sm:$0xff]
        %v2263 = vld [vmem:[%s8 + $0x40] sm:$0xff]
        %v2264 = vld [vmem:[%s8 + $0x48] sm:$0xff]
        %v2265 = vld [vmem:[%s8 + $0x50] sm:$0xff]
        %v2266 = vld [vmem:[%s8 + $0x58] sm:$0xff]
        %v2267 = vld [vmem:[%s8 + $0x60] sm:$0xff]
        %v2268 = vld [vmem:[%s8 + $0x68] sm:$0xff]
        %v2269 = vld [vmem:[%s8 + $0x70] sm:$0xff]
        %v2270 = vld [vmem:[%s8 + $0x78] sm:$0xff]
        %v2271 = vld [vmem:[%s8 + $0x80] sm:$0xff]
        %v2272 = vld [vmem:[%s8 + $0x88] sm:$0xff]
        %v2273 = vld [vmem:[%s8 + $0x90] sm:$0xff]
        %v2274 = vld [vmem:[%s8 + $0x98] sm:$0xff]
        %v2276 = vsel %vm525, %v2254, 0
        %2278 = vmatprep.subr.mxu0 0.0
        %2279 = vmatpush1.msra.mxu0 %v2255
        %2280 = vmatprep.subr.mxu0 0.0
        %2281 = vmatpush1.msra.mxu0 %v2256
        %2282 = vmatprep.subr.mxu0 0.0
        %2283 = vmatpush1.msra.mxu0 %v2257
        %2284 = vmatprep.subr.mxu0 0.0
        %2285 = vmatpush1.msra.mxu0 %v2258
        %2286 = vmatprep.subr.mxu0 0.0
        %2287 = vmatpush1.msra.mxu0 %v2259
        %2288 = vmatprep.subr.mxu0 0.0
        %2289 = vmatpush1.msra.mxu0 %v2260
        %2290 = vmatprep.subr.mxu0 0.0
        %2291 = vmatpush1.msra.mxu0 %v2261
        %2292 = vmatprep.subr.mxu0 0.0
        %2293 = vmatpush1.msra.mxu0 %v2262
        %2294 = vmatprep.subr.mxu0 0.0
        %2295 = vmatpush1.msra.mxu0 %v2263
        %2296 = vmatprep.subr.mxu0 0.0
        %2297 = vmatpush1.msra.mxu0 %v2264
        %2298 = vmatprep.subr.mxu0 0.0
        %2299 = vmatpush1.msra.mxu0 %v2265
        %2300 = vmatprep.subr.mxu0 0.0
        %2301 = vmatpush1.msra.mxu0 %v2266
        %2302 = vmatprep.subr.mxu0 0.0
        %2303 = vmatpush1.msra.mxu0 %v2267
        %2304 = vmatprep.subr.mxu0 0.0
        %2305 = vmatpush1.msra.mxu0 %v2268
        %2306 = vmatprep.subr.mxu0 0.0
        %2307 = vmatpush1.msra.mxu0 %v2269
        %2308 = vmatprep.subr.mxu0 0.0
        %2309 = vmatpush1.msra.mxu0 %v2270
        %2310 = vmatprep.subr.mxu0 0.0
        %2311 = vmatpush1.msra.mxu0 %v2271
        %2312 = vmatprep.subr.mxu0 0.0
        %2313 = vmatpush1.msra.mxu0 %v2272
        %2314 = vmatprep.subr.mxu0 0.0
        %2315 = vmatpush1.msra.mxu0 %v2273
        %2316 = vmatprep.subr.mxu0 0.0
        %2317 = vmatpush1.msra.mxu0 %v2274
        %2318 = vmatprep.subr.mxu0 0.0
        %2319 = vmatpush1.msra.mxu0 0.0
        %2320 = vmatprep.subr.mxu0 0.0
        %2321 = vmatpush1.msra.mxu0 0.0
        %2322 = vmatprep.subr.mxu0 0.0
        %2323 = vmatpush1.msra.mxu0 0.0
        %2324 = vmatprep.subr.mxu0 0.0
        %2325 = vmatpush1.msra.mxu0 0.0
        %2326 = vmatprep.subr.mxu0 0.0
        %2327 = vmatpush1.msra.mxu0 0.0
        %2328 = vmatprep.subr.mxu0 0.0
        %2329 = vmatpush1.msra.mxu0 0.0
        %2330 = vmatprep.subr.mxu0 0.0
        %2331 = vmatpush1.msra.mxu0 0.0
        %2332 = vmatprep.subr.mxu0 0.0
        %2333 = vmatpush1.msra.mxu0 0.0
        %2334 = vmatprep.subr.mxu0 0.0
        %2335 = vmatpush1.msra.mxu0 0.0
        %2336 = vmatprep.subr.mxu0 0.0
        %2337 = vmatpush1.msra.mxu0 0.0
        %2338 = vmatprep.subr.mxu0 0.0
        %2339 = vmatpush1.msra.mxu0 0.0
        %2340 = vmatprep.subr.mxu0 0.0
        %2341 = vmatpush1.msra.mxu0 0.0
        %2342 = vmatprep.mubr.f32.mxu0 %v2276
        %2343 = vmatmul.mubr.f32.gmra.mrb[0].mxu0 %v2253
        %v2344 = vpop.f32.mrb[0].mxu0
        %v2345 = vadd.f32 0.0, %v2344
        %v2346 = vpop.f32.mrb[0].mxu0
        %2347 = vdwg.mxu0
        %s2348 = scalar_lea.vmem %s8, 160
        %v2349 = vld [vmem:[%s2348] sm:$0xff]
        %v2350 = vld [vmem:[%s2348 + $0x8] sm:$0xff]
        %v2351 = vld [vmem:[%s2348 + $0x10] sm:$0xff]
        %v2352 = vld [vmem:[%s2348 + $0x18] sm:$0xff]
        %v2353 = vld [vmem:[%s2348 + $0x20] sm:$0xff]
        %v2354 = vld [vmem:[%s2348 + $0x28] sm:$0xff]
        %v2355 = vld [vmem:[%s2348 + $0x30] sm:$0xff]
        %v2356 = vld [vmem:[%s2348 + $0x38] sm:$0xff]
        %v2357 = vld [vmem:[%s2348 + $0x40] sm:$0xff]
        %v2358 = vld [vmem:[%s2348 + $0x48] sm:$0xff]
        %v2359 = vld [vmem:[%s2348 + $0x50] sm:$0xff]
        %v2360 = vld [vmem:[%s2348 + $0x58] sm:$0xff]
        %v2361 = vld [vmem:[%s2348 + $0x60] sm:$0xff]
        %v2362 = vld [vmem:[%s2348 + $0x68] sm:$0xff]
        %v2363 = vld [vmem:[%s2348 + $0x70] sm:$0xff]
        %v2364 = vld [vmem:[%s2348 + $0x78] sm:$0xff]
        %v2365 = vld [vmem:[%s2348 + $0x80] sm:$0xff]
        %v2366 = vld [vmem:[%s2348 + $0x88] sm:$0xff]
        %v2367 = vld [vmem:[%s2348 + $0x90] sm:$0xff]
        %v2368 = vld [vmem:[%s2348 + $0x98] sm:$0xff]
        %2369 = vmatprep.subr.mxu0 0.0
        %2370 = vmatpush1.msra.mxu0 %v2349
        %2371 = vmatprep.subr.mxu0 0.0
        %2372 = vmatpush1.msra.mxu0 %v2350
        %2373 = vmatprep.subr.mxu0 0.0
        %2374 = vmatpush1.msra.mxu0 %v2351
        %2375 = vmatprep.subr.mxu0 0.0
        %2376 = vmatpush1.msra.mxu0 %v2352
        %2377 = vmatprep.subr.mxu0 0.0
        %2378 = vmatpush1.msra.mxu0 %v2353
        %2379 = vmatprep.subr.mxu0 0.0
        %2380 = vmatpush1.msra.mxu0 %v2354
        %2381 = vmatprep.subr.mxu0 0.0
        %2382 = vmatpush1.msra.mxu0 %v2355
        %2383 = vmatprep.subr.mxu0 0.0
        %2384 = vmatpush1.msra.mxu0 %v2356
        %2385 = vmatprep.subr.mxu0 0.0
        %2386 = vmatpush1.msra.mxu0 %v2357
        %2387 = vmatprep.subr.mxu0 0.0
        %2388 = vmatpush1.msra.mxu0 %v2358
        %2389 = vmatprep.subr.mxu0 0.0
        %2390 = vmatpush1.msra.mxu0 %v2359
        %2391 = vmatprep.subr.mxu0 0.0
        %2392 = vmatpush1.msra.mxu0 %v2360
        %2393 = vmatprep.subr.mxu0 0.0
        %2394 = vmatpush1.msra.mxu0 %v2361
        %2395 = vmatprep.subr.mxu0 0.0
        %2396 = vmatpush1.msra.mxu0 %v2362
        %2397 = vmatprep.subr.mxu0 0.0
        %2398 = vmatpush1.msra.mxu0 %v2363
        %2399 = vmatprep.subr.mxu0 0.0
        %2400 = vmatpush1.msra.mxu0 %v2364
        %2401 = vmatprep.subr.mxu0 0.0
        %2402 = vmatpush1.msra.mxu0 %v2365
        %2403 = vmatprep.subr.mxu0 0.0
        %2404 = vmatpush1.msra.mxu0 %v2366
        %2405 = vmatprep.subr.mxu0 0.0
        %2406 = vmatpush1.msra.mxu0 %v2367
        %2407 = vmatprep.subr.mxu0 0.0
        %2408 = vmatpush1.msra.mxu0 %v2368
        %2409 = vmatprep.subr.mxu0 0.0
        %2410 = vmatpush1.msra.mxu0 0.0
        %2411 = vmatprep.subr.mxu0 0.0
        %2412 = vmatpush1.msra.mxu0 0.0
        %2413 = vmatprep.subr.mxu0 0.0
        %2414 = vmatpush1.msra.mxu0 0.0
        %2415 = vmatprep.subr.mxu0 0.0
        %2416 = vmatpush1.msra.mxu0 0.0
        %2417 = vmatprep.subr.mxu0 0.0
        %2418 = vmatpush1.msra.mxu0 0.0
        %2419 = vmatprep.subr.mxu0 0.0
        %2420 = vmatpush1.msra.mxu0 0.0
        %2421 = vmatprep.subr.mxu0 0.0
        %2422 = vmatpush1.msra.mxu0 0.0
        %2423 = vmatprep.subr.mxu0 0.0
        %2424 = vmatpush1.msra.mxu0 0.0
        %2425 = vmatprep.subr.mxu0 0.0
        %2426 = vmatpush1.msra.mxu0 0.0
        %2427 = vmatprep.subr.mxu0 0.0
        %2428 = vmatpush1.msra.mxu0 0.0
        %2429 = vmatprep.subr.mxu0 0.0
        %2430 = vmatpush1.msra.mxu0 0.0
        %2431 = vmatprep.subr.mxu0 0.0
        %2432 = vmatpush1.msra.mxu0 0.0
        %2433 = vmatprep.mubr.f32.mxu0 %v2276
        %2434 = vmatmul.mubr.f32.gmra.mrb[0].mxu0 %v2253
        %v2435 = vpop.f32.mrb[0].mxu0
        %v2436 = vadd.f32 0.0, %v2435
        %v2437 = vpop.f32.mrb[0].mxu0
        %2438 = vdwg.mxu0
        %v2439 = vmax.f32 %v2345, %v2436
        %v2440 = vld [vmem:[%s10] sm:$0x1]
        %v2441 = vld [vmem:[%s9] sm:$0xff]
        %v2442 = vld [vmem:[%s9 + $0x8] sm:$0xff]
        %v2443 = vld [vmem:[%s9 + $0x10] sm:$0xff]
        %v2444 = vld [vmem:[%s9 + $0x18] sm:$0xff]
        %v2445 = vld [vmem:[%s9 + $0x20] sm:$0xff]
        %v2446 = vld [vmem:[%s9 + $0x28] sm:$0xff]
        %v2447 = vld [vmem:[%s9 + $0x30] sm:$0xff]
        %v2448 = vld [vmem:[%s9 + $0x38] sm:$0xff]
        %v2449 = vld [vmem:[%s9 + $0x40] sm:$0xff]
        %v2450 = vld [vmem:[%s9 + $0x48] sm:$0xff]
        %vm2451 = vcmask 654336
        %v2453 = vsel %vm2451, %v2439, 0
        %2455 = vmatprep.subr.mxu0 0.0
        %2456 = vmatpush1.msra.mxu0 %v2441
        %2457 = vmatprep.subr.mxu0 0.0
        %2458 = vmatpush1.msra.mxu0 %v2442
        %2459 = vmatprep.subr.mxu0 0.0
        %2460 = vmatpush1.msra.mxu0 %v2443
        %2461 = vmatprep.subr.mxu0 0.0
        %2462 = vmatpush1.msra.mxu0 %v2444
        %2463 = vmatprep.subr.mxu0 0.0
        %2464 = vmatpush1.msra.mxu0 %v2445
        %2465 = vmatprep.subr.mxu0 0.0
        %2466 = vmatpush1.msra.mxu0 %v2446
        %2467 = vmatprep.subr.mxu0 0.0
        %2468 = vmatpush1.msra.mxu0 %v2447
        %2469 = vmatprep.subr.mxu0 0.0
        %2470 = vmatpush1.msra.mxu0 %v2448
        %2471 = vmatprep.subr.mxu0 0.0
        %2472 = vmatpush1.msra.mxu0 %v2449
        %2473 = vmatprep.subr.mxu0 0.0
        %2474 = vmatpush1.msra.mxu0 %v2450
        %2475 = vmatprep.subr.mxu0 0.0
        %2476 = vmatpush1.msra.mxu0 0.0
        %2477 = vmatprep.subr.mxu0 0.0
        %2478 = vmatpush1.msra.mxu0 0.0
        %2479 = vmatprep.subr.mxu0 0.0
        %2480 = vmatpush1.msra.mxu0 0.0
        %2481 = vmatprep.subr.mxu0 0.0
        %2482 = vmatpush1.msra.mxu0 0.0
        %2483 = vmatprep.subr.mxu0 0.0
        %2484 = vmatpush1.msra.mxu0 0.0
        %2485 = vmatprep.subr.mxu0 0.0
        %2486 = vmatpush1.msra.mxu0 0.0
        %2487 = vmatprep.subr.mxu0 0.0
        %2488 = vmatpush1.msra.mxu0 0.0
        %2489 = vmatprep.subr.mxu0 0.0
        %2490 = vmatpush1.msra.mxu0 0.0
        %2491 = vmatprep.subr.mxu0 0.0
        %2492 = vmatpush1.msra.mxu0 0.0
        %2493 = vmatprep.subr.mxu0 0.0
        %2494 = vmatpush1.msra.mxu0 0.0
        %2495 = vmatprep.subr.mxu0 0.0
        %2496 = vmatpush1.msra.mxu0 0.0
        %2497 = vmatprep.subr.mxu0 0.0
        %2498 = vmatpush1.msra.mxu0 0.0
        %2499 = vmatprep.subr.mxu0 0.0
        %2500 = vmatpush1.msra.mxu0 0.0
        %2501 = vmatprep.subr.mxu0 0.0
        %2502 = vmatpush1.msra.mxu0 0.0
        %2503 = vmatprep.subr.mxu0 0.0
        %2504 = vmatpush1.msra.mxu0 0.0
        %2505 = vmatprep.subr.mxu0 0.0
        %2506 = vmatpush1.msra.mxu0 0.0
        %2507 = vmatprep.subr.mxu0 0.0
        %2508 = vmatpush1.msra.mxu0 0.0
        %2509 = vmatprep.subr.mxu0 0.0
        %2510 = vmatpush1.msra.mxu0 0.0
        %2511 = vmatprep.subr.mxu0 0.0
        %2512 = vmatpush1.msra.mxu0 0.0
        %2513 = vmatprep.subr.mxu0 0.0
        %2514 = vmatpush1.msra.mxu0 0.0
        %2515 = vmatprep.subr.mxu0 0.0
        %2516 = vmatpush1.msra.mxu0 0.0
        %2517 = vmatprep.subr.mxu0 0.0
        %2518 = vmatpush1.msra.mxu0 0.0
        %2519 = vmatprep.mubr.f32.mxu0 0.0
        %2520 = vmatmul.mubr.f32.gmra.mrb[0].mxu0 %v2453
        %v2521 = vpop.f32.mrb[0].mxu0
        %v2522 = vadd.f32 0.0, %v2521
        %v2523 = vpop.f32.mrb[0].mxu0
        %2524 = vdwg.mxu0
        %v2525 = vadd.f32 %v2440, %v2522
        %s2526 = scalar_lea.vmem %s9, 80
        %v2527 = vld [vmem:[%s2526] sm:$0xff]
        %v2528 = vld [vmem:[%s2526 + $0x8] sm:$0xff]
        %v2529 = vld [vmem:[%s2526 + $0x10] sm:$0xff]
        %v2530 = vld [vmem:[%s2526 + $0x18] sm:$0xff]
        %v2531 = vld [vmem:[%s2526 + $0x20] sm:$0xff]
        %v2532 = vld [vmem:[%s2526 + $0x28] sm:$0xff]
        %v2533 = vld [vmem:[%s2526 + $0x30] sm:$0xff]
        %v2534 = vld [vmem:[%s2526 + $0x38] sm:$0xff]
        %v2535 = vld [vmem:[%s2526 + $0x40] sm:$0xff]
        %v2536 = vld [vmem:[%s2526 + $0x48] sm:$0xff]
        %v2537 = vrot.slane %v2439, 1
        %v2538 = vsel %vm2451, %v2537, 0
        %2540 = vmatprep.subr.mxu0 0.0
        %2541 = vmatpush1.msra.mxu0 %v2527
        %2542 = vmatprep.subr.mxu0 0.0
        %2543 = vmatpush1.msra.mxu0 %v2528
        %2544 = vmatprep.subr.mxu0 0.0
        %2545 = vmatpush1.msra.mxu0 %v2529
        %2546 = vmatprep.subr.mxu0 0.0
        %2547 = vmatpush1.msra.mxu0 %v2530
        %2548 = vmatprep.subr.mxu0 0.0
        %2549 = vmatpush1.msra.mxu0 %v2531
        %2550 = vmatprep.subr.mxu0 0.0
        %2551 = vmatpush1.msra.mxu0 %v2532
        %2552 = vmatprep.subr.mxu0 0.0
        %2553 = vmatpush1.msra.mxu0 %v2533
        %2554 = vmatprep.subr.mxu0 0.0
        %2555 = vmatpush1.msra.mxu0 %v2534
        %2556 = vmatprep.subr.mxu0 0.0
        %2557 = vmatpush1.msra.mxu0 %v2535
        %2558 = vmatprep.subr.mxu0 0.0
        %2559 = vmatpush1.msra.mxu0 %v2536
        %2560 = vmatprep.subr.mxu0 0.0
        %2561 = vmatpush1.msra.mxu0 0.0
        %2562 = vmatprep.subr.mxu0 0.0
        %2563 = vmatpush1.msra.mxu0 0.0
        %2564 = vmatprep.subr.mxu0 0.0
        %2565 = vmatpush1.msra.mxu0 0.0
        %2566 = vmatprep.subr.mxu0 0.0
        %2567 = vmatpush1.msra.mxu0 0.0
        %2568 = vmatprep.subr.mxu0 0.0
        %2569 = vmatpush1.msra.mxu0 0.0
        %2570 = vmatprep.subr.mxu0 0.0
        %2571 = vmatpush1.msra.mxu0 0.0
        %2572 = vmatprep.subr.mxu0 0.0
        %2573 = vmatpush1.msra.mxu0 0.0
        %2574 = vmatprep.subr.mxu0 0.0
        %2575 = vmatpush1.msra.mxu0 0.0
        %2576 = vmatprep.subr.mxu0 0.0
        %2577 = vmatpush1.msra.mxu0 0.0
        %2578 = vmatprep.subr.mxu0 0.0
        %2579 = vmatpush1.msra.mxu0 0.0
        %2580 = vmatprep.subr.mxu0 0.0
        %2581 = vmatpush1.msra.mxu0 0.0
        %2582 = vmatprep.subr.mxu0 0.0
        %2583 = vmatpush1.msra.mxu0 0.0
        %2584 = vmatprep.subr.mxu0 0.0
        %2585 = vmatpush1.msra.mxu0 0.0
        %2586 = vmatprep.subr.mxu0 0.0
        %2587 = vmatpush1.msra.mxu0 0.0
        %2588 = vmatprep.subr.mxu0 0.0
        %2589 = vmatpush1.msra.mxu0 0.0
        %2590 = vmatprep.subr.mxu0 0.0
        %2591 = vmatpush1.msra.mxu0 0.0
        %2592 = vmatprep.subr.mxu0 0.0
        %2593 = vmatpush1.msra.mxu0 0.0
        %2594 = vmatprep.subr.mxu0 0.0
        %2595 = vmatpush1.msra.mxu0 0.0
        %2596 = vmatprep.subr.mxu0 0.0
        %2597 = vmatpush1.msra.mxu0 0.0
        %2598 = vmatprep.subr.mxu0 0.0
        %2599 = vmatpush1.msra.mxu0 0.0
        %2600 = vmatprep.subr.mxu0 0.0
        %2601 = vmatpush1.msra.mxu0 0.0
        %2602 = vmatprep.subr.mxu0 0.0
        %2603 = vmatpush1.msra.mxu0 0.0
        %2604 = vmatprep.mubr.f32.mxu0 0.0
        %2605 = vmatmul.mubr.f32.gmra.mrb[0].mxu0 %v2538
        %v2606 = vpop.f32.mrb[0].mxu0
        %v2607 = vadd.f32 0.0, %v2606
        %v2608 = vpop.f32.mrb[0].mxu0
        %2609 = vdwg.mxu0
        %v2610 = vadd.f32 %v2525, %v2607
        %s2611 = scalar_lea.vmem %s9, 160
        %v2612 = vld [vmem:[%s2611] sm:$0xff]
        %v2613 = vld [vmem:[%s2611 + $0x8] sm:$0xff]
        %v2614 = vld [vmem:[%s2611 + $0x10] sm:$0xff]
        %v2615 = vld [vmem:[%s2611 + $0x18] sm:$0xff]
        %v2616 = vld [vmem:[%s2611 + $0x20] sm:$0xff]
        %v2617 = vld [vmem:[%s2611 + $0x28] sm:$0xff]
        %v2618 = vld [vmem:[%s2611 + $0x30] sm:$0xff]
        %v2619 = vld [vmem:[%s2611 + $0x38] sm:$0xff]
        %v2620 = vld [vmem:[%s2611 + $0x40] sm:$0xff]
        %v2621 = vld [vmem:[%s2611 + $0x48] sm:$0xff]
        %v2622 = vrot.slane %v2439, 2
        %v2623 = vsel %vm2451, %v2622, 0
        %2625 = vmatprep.subr.mxu0 0.0
        %2626 = vmatpush1.msra.mxu0 %v2612
        %2627 = vmatprep.subr.mxu0 0.0
        %2628 = vmatpush1.msra.mxu0 %v2613
        %2629 = vmatprep.subr.mxu0 0.0
        %2630 = vmatpush1.msra.mxu0 %v2614
        %2631 = vmatprep.subr.mxu0 0.0
        %2632 = vmatpush1.msra.mxu0 %v2615
        %2633 = vmatprep.subr.mxu0 0.0
        %2634 = vmatpush1.msra.mxu0 %v2616
        %2635 = vmatprep.subr.mxu0 0.0
        %2636 = vmatpush1.msra.mxu0 %v2617
        %2637 = vmatprep.subr.mxu0 0.0
        %2638 = vmatpush1.msra.mxu0 %v2618
        %2639 = vmatprep.subr.mxu0 0.0
        %2640 = vmatpush1.msra.mxu0 %v2619
        %2641 = vmatprep.subr.mxu0 0.0
        %2642 = vmatpush1.msra.mxu0 %v2620
        %2643 = vmatprep.subr.mxu0 0.0
        %2644 = vmatpush1.msra.mxu0 %v2621
        %2645 = vmatprep.subr.mxu0 0.0
        %2646 = vmatpush1.msra.mxu0 0.0
        %2647 = vmatprep.subr.mxu0 0.0
        %2648 = vmatpush1.msra.mxu0 0.0
        %2649 = vmatprep.subr.mxu0 0.0
        %2650 = vmatpush1.msra.mxu0 0.0
        %2651 = vmatprep.subr.mxu0 0.0
        %2652 = vmatpush1.msra.mxu0 0.0
        %2653 = vmatprep.subr.mxu0 0.0
        %2654 = vmatpush1.msra.mxu0 0.0
        %2655 = vmatprep.subr.mxu0 0.0
        %2656 = vmatpush1.msra.mxu0 0.0
        %2657 = vmatprep.subr.mxu0 0.0
        %2658 = vmatpush1.msra.mxu0 0.0
        %2659 = vmatprep.subr.mxu0 0.0
        %2660 = vmatpush1.msra.mxu0 0.0
        %2661 = vmatprep.subr.mxu0 0.0
        %2662 = vmatpush1.msra.mxu0 0.0
        %2663 = vmatprep.subr.mxu0 0.0
        %2664 = vmatpush1.msra.mxu0 0.0
        %2665 = vmatprep.subr.mxu0 0.0
        %2666 = vmatpush1.msra.mxu0 0.0
        %2667 = vmatprep.subr.mxu0 0.0
        %2668 = vmatpush1.msra.mxu0 0.0
        %2669 = vmatprep.subr.mxu0 0.0
        %2670 = vmatpush1.msra.mxu0 0.0
        %2671 = vmatprep.subr.mxu0 0.0
        %2672 = vmatpush1.msra.mxu0 0.0
        %2673 = vmatprep.subr.mxu0 0.0
        %2674 = vmatpush1.msra.mxu0 0.0
        %2675 = vmatprep.subr.mxu0 0.0
        %2676 = vmatpush1.msra.mxu0 0.0
        %2677 = vmatprep.subr.mxu0 0.0
        %2678 = vmatpush1.msra.mxu0 0.0
        %2679 = vmatprep.subr.mxu0 0.0
        %2680 = vmatpush1.msra.mxu0 0.0
        %2681 = vmatprep.subr.mxu0 0.0
        %2682 = vmatpush1.msra.mxu0 0.0
        %2683 = vmatprep.subr.mxu0 0.0
        %2684 = vmatpush1.msra.mxu0 0.0
        %2685 = vmatprep.subr.mxu0 0.0
        %2686 = vmatpush1.msra.mxu0 0.0
        %2687 = vmatprep.subr.mxu0 0.0
        %2688 = vmatpush1.msra.mxu0 0.0
        %2689 = vmatprep.mubr.f32.mxu0 0.0
        %2690 = vmatmul.mubr.f32.gmra.mrb[0].mxu0 %v2623
        %v2691 = vpop.f32.mrb[0].mxu0
        %v2692 = vadd.f32 0.0, %v2691
        %v2693 = vpop.f32.mrb[0].mxu0
        %2694 = vdwg.mxu0
        %v2695 = vadd.f32 %v2610, %v2692
        %s2696 = scalar_lea.vmem %s9, 240
        %v2697 = vld [vmem:[%s2696] sm:$0xff]
        %v2698 = vld [vmem:[%s2696 + $0x8] sm:$0xff]
        %v2699 = vld [vmem:[%s2696 + $0x10] sm:$0xff]
        %v2700 = vld [vmem:[%s2696 + $0x18] sm:$0xff]
        %v2701 = vld [vmem:[%s2696 + $0x20] sm:$0xff]
        %v2702 = vld [vmem:[%s2696 + $0x28] sm:$0xff]
        %v2703 = vld [vmem:[%s2696 + $0x30] sm:$0xff]
        %v2704 = vld [vmem:[%s2696 + $0x38] sm:$0xff]
        %v2705 = vld [vmem:[%s2696 + $0x40] sm:$0xff]
        %v2706 = vld [vmem:[%s2696 + $0x48] sm:$0xff]
        %v2707 = vrot.slane %v2439, 3
        %v2708 = vsel %vm2451, %v2707, 0
        %2710 = vmatprep.subr.mxu0 0.0
        %2711 = vmatpush1.msra.mxu0 %v2697
        %2712 = vmatprep.subr.mxu0 0.0
        %2713 = vmatpush1.msra.mxu0 %v2698
        %2714 = vmatprep.subr.mxu0 0.0
        %2715 = vmatpush1.msra.mxu0 %v2699
        %2716 = vmatprep.subr.mxu0 0.0
        %2717 = vmatpush1.msra.mxu0 %v2700
        %2718 = vmatprep.subr.mxu0 0.0
        %2719 = vmatpush1.msra.mxu0 %v2701
        %2720 = vmatprep.subr.mxu0 0.0
        %2721 = vmatpush1.msra.mxu0 %v2702
        %2722 = vmatprep.subr.mxu0 0.0
        %2723 = vmatpush1.msra.mxu0 %v2703
        %2724 = vmatprep.subr.mxu0 0.0
        %2725 = vmatpush1.msra.mxu0 %v2704
        %2726 = vmatprep.subr.mxu0 0.0
        %2727 = vmatpush1.msra.mxu0 %v2705
        %2728 = vmatprep.subr.mxu0 0.0
        %2729 = vmatpush1.msra.mxu0 %v2706
        %2730 = vmatprep.subr.mxu0 0.0
        %2731 = vmatpush1.msra.mxu0 0.0
        %2732 = vmatprep.subr.mxu0 0.0
        %2733 = vmatpush1.msra.mxu0 0.0
        %2734 = vmatprep.subr.mxu0 0.0
        %2735 = vmatpush1.msra.mxu0 0.0
        %2736 = vmatprep.subr.mxu0 0.0
        %2737 = vmatpush1.msra.mxu0 0.0
        %2738 = vmatprep.subr.mxu0 0.0
        %2739 = vmatpush1.msra.mxu0 0.0
        %2740 = vmatprep.subr.mxu0 0.0
        %2741 = vmatpush1.msra.mxu0 0.0
        %2742 = vmatprep.subr.mxu0 0.0
        %2743 = vmatpush1.msra.mxu0 0.0
        %2744 = vmatprep.subr.mxu0 0.0
        %2745 = vmatpush1.msra.mxu0 0.0
        %2746 = vmatprep.subr.mxu0 0.0
        %2747 = vmatpush1.msra.mxu0 0.0
        %2748 = vmatprep.subr.mxu0 0.0
        %2749 = vmatpush1.msra.mxu0 0.0
        %2750 = vmatprep.subr.mxu0 0.0
        %2751 = vmatpush1.msra.mxu0 0.0
        %2752 = vmatprep.subr.mxu0 0.0
        %2753 = vmatpush1.msra.mxu0 0.0
        %2754 = vmatprep.subr.mxu0 0.0
        %2755 = vmatpush1.msra.mxu0 0.0
        %2756 = vmatprep.subr.mxu0 0.0
        %2757 = vmatpush1.msra.mxu0 0.0
        %2758 = vmatprep.subr.mxu0 0.0
        %2759 = vmatpush1.msra.mxu0 0.0
        %2760 = vmatprep.subr.mxu0 0.0
        %2761 = vmatpush1.msra.mxu0 0.0
        %2762 = vmatprep.subr.mxu0 0.0
        %2763 = vmatpush1.msra.mxu0 0.0
        %2764 = vmatprep.subr.mxu0 0.0
        %2765 = vmatpush1.msra.mxu0 0.0
        %2766 = vmatprep.subr.mxu0 0.0
        %2767 = vmatpush1.msra.mxu0 0.0
        %2768 = vmatprep.subr.mxu0 0.0
        %2769 = vmatpush1.msra.mxu0 0.0
        %2770 = vmatprep.subr.mxu0 0.0
        %2771 = vmatpush1.msra.mxu0 0.0
        %2772 = vmatprep.subr.mxu0 0.0
        %2773 = vmatpush1.msra.mxu0 0.0
        %2774 = vmatprep.mubr.f32.mxu0 0.0
        %2775 = vmatmul.mubr.f32.gmra.mrb[0].mxu0 %v2708
        %v2776 = vpop.f32.mrb[0].mxu0
        %v2777 = vadd.f32 0.0, %v2776
        %v2778 = vpop.f32.mrb[0].mxu0
        %2779 = vdwg.mxu0
        %v2780 = vadd.f32 %v2695, %v2777
        %s2781 = scalar_lea.vmem %s9, 320
        %v2782 = vld [vmem:[%s2781] sm:$0xff]
        %v2783 = vld [vmem:[%s2781 + $0x8] sm:$0xff]
        %v2784 = vld [vmem:[%s2781 + $0x10] sm:$0xff]
        %v2785 = vld [vmem:[%s2781 + $0x18] sm:$0xff]
        %v2786 = vld [vmem:[%s2781 + $0x20] sm:$0xff]
        %v2787 = vld [vmem:[%s2781 + $0x28] sm:$0xff]
        %v2788 = vld [vmem:[%s2781 + $0x30] sm:$0xff]
        %v2789 = vld [vmem:[%s2781 + $0x38] sm:$0xff]
        %v2790 = vld [vmem:[%s2781 + $0x40] sm:$0xff]
        %v2791 = vld [vmem:[%s2781 + $0x48] sm:$0xff]
        %v2792 = vrot.slane %v2439, 4
        %v2793 = vsel %vm2451, %v2792, 0
        %2795 = vmatprep.subr.mxu0 0.0
        %2796 = vmatpush1.msra.mxu0 %v2782
        %2797 = vmatprep.subr.mxu0 0.0
        %2798 = vmatpush1.msra.mxu0 %v2783
        %2799 = vmatprep.subr.mxu0 0.0
        %2800 = vmatpush1.msra.mxu0 %v2784
        %2801 = vmatprep.subr.mxu0 0.0
        %2802 = vmatpush1.msra.mxu0 %v2785
        %2803 = vmatprep.subr.mxu0 0.0
        %2804 = vmatpush1.msra.mxu0 %v2786
        %2805 = vmatprep.subr.mxu0 0.0
        %2806 = vmatpush1.msra.mxu0 %v2787
        %2807 = vmatprep.subr.mxu0 0.0
        %2808 = vmatpush1.msra.mxu0 %v2788
        %2809 = vmatprep.subr.mxu0 0.0
        %2810 = vmatpush1.msra.mxu0 %v2789
        %2811 = vmatprep.subr.mxu0 0.0
        %2812 = vmatpush1.msra.mxu0 %v2790
        %2813 = vmatprep.subr.mxu0 0.0
        %2814 = vmatpush1.msra.mxu0 %v2791
        %2815 = vmatprep.subr.mxu0 0.0
        %2816 = vmatpush1.msra.mxu0 0.0
        %2817 = vmatprep.subr.mxu0 0.0
        %2818 = vmatpush1.msra.mxu0 0.0
        %2819 = vmatprep.subr.mxu0 0.0
        %2820 = vmatpush1.msra.mxu0 0.0
        %2821 = vmatprep.subr.mxu0 0.0
        %2822 = vmatpush1.msra.mxu0 0.0
        %2823 = vmatprep.subr.mxu0 0.0
        %2824 = vmatpush1.msra.mxu0 0.0
        %2825 = vmatprep.subr.mxu0 0.0
        %2826 = vmatpush1.msra.mxu0 0.0
        %2827 = vmatprep.subr.mxu0 0.0
        %2828 = vmatpush1.msra.mxu0 0.0
        %2829 = vmatprep.subr.mxu0 0.0
        %2830 = vmatpush1.msra.mxu0 0.0
        %2831 = vmatprep.subr.mxu0 0.0
        %2832 = vmatpush1.msra.mxu0 0.0
        %2833 = vmatprep.subr.mxu0 0.0
        %2834 = vmatpush1.msra.mxu0 0.0
        %2835 = vmatprep.subr.mxu0 0.0
        %2836 = vmatpush1.msra.mxu0 0.0
        %2837 = vmatprep.subr.mxu0 0.0
        %2838 = vmatpush1.msra.mxu0 0.0
        %2839 = vmatprep.subr.mxu0 0.0
        %2840 = vmatpush1.msra.mxu0 0.0
        %2841 = vmatprep.subr.mxu0 0.0
        %2842 = vmatpush1.msra.mxu0 0.0
        %2843 = vmatprep.subr.mxu0 0.0
        %2844 = vmatpush1.msra.mxu0 0.0
        %2845 = vmatprep.subr.mxu0 0.0
        %2846 = vmatpush1.msra.mxu0 0.0
        %2847 = vmatprep.subr.mxu0 0.0
        %2848 = vmatpush1.msra.mxu0 0.0
        %2849 = vmatprep.subr.mxu0 0.0
        %2850 = vmatpush1.msra.mxu0 0.0
        %2851 = vmatprep.subr.mxu0 0.0
        %2852 = vmatpush1.msra.mxu0 0.0
        %2853 = vmatprep.subr.mxu0 0.0
        %2854 = vmatpush1.msra.mxu0 0.0
        %2855 = vmatprep.subr.mxu0 0.0
        %2856 = vmatpush1.msra.mxu0 0.0
        %2857 = vmatprep.subr.mxu0 0.0
        %2858 = vmatpush1.msra.mxu0 0.0
        %2859 = vmatprep.mubr.f32.mxu0 0.0
        %2860 = vmatmul.mubr.f32.gmra.mrb[0].mxu0 %v2793
        %v2861 = vpop.f32.mrb[0].mxu0
        %v2862 = vadd.f32 0.0, %v2861
        %v2863 = vpop.f32.mrb[0].mxu0
        %2864 = vdwg.mxu0
        %v2865 = vadd.f32 %v2780, %v2862
        %v2866 = vmax.f32 %v2865, 0.0
        %v2867 = vld [vmem:[%s11] sm:$0xff]
        %v2868 = vld [vmem:[%s11 + $0x8] sm:$0xff]
        %v2869 = vld [vmem:[%s11 + $0x10] sm:$0xff]
        %v2870 = vld [vmem:[%s11 + $0x18] sm:$0xff]
        %v2871 = vld [vmem:[%s11 + $0x20] sm:$0xff]
        %v2872 = vld [vmem:[%s11 + $0x28] sm:$0xff]
        %v2873 = vld [vmem:[%s11 + $0x30] sm:$0xff]
        %v2874 = vld [vmem:[%s11 + $0x38] sm:$0xff]
        %v2875 = vld [vmem:[%s11 + $0x40] sm:$0xff]
        %v2876 = vld [vmem:[%s11 + $0x48] sm:$0xff]
        %v2877 = vld [vmem:[%s11 + $0x50] sm:$0xff]
        %v2878 = vld [vmem:[%s11 + $0x58] sm:$0xff]
        %v2879 = vld [vmem:[%s11 + $0x60] sm:$0xff]
        %v2880 = vld [vmem:[%s11 + $0x68] sm:$0xff]
        %v2881 = vld [vmem:[%s11 + $0x70] sm:$0xff]
        %v2882 = vld [vmem:[%s12] sm:$0x1]
        %vm2883 = vcmask 982016
        %v2885 = vsel %vm2883, %v2866, 0
        %2887 = vmatprep.subr.mxu0 0.0
        %2888 = vmatpush1.msra.mxu0 %v2867
        %2889 = vmatprep.subr.mxu0 0.0
        %2890 = vmatpush1.msra.mxu0 %v2868
        %2891 = vmatprep.subr.mxu0 0.0
        %2892 = vmatpush1.msra.mxu0 %v2869
        %2893 = vmatprep.subr.mxu0 0.0
        %2894 = vmatpush1.msra.mxu0 %v2870
        %2895 = vmatprep.subr.mxu0 0.0
        %2896 = vmatpush1.msra.mxu0 %v2871
        %2897 = vmatprep.subr.mxu0 0.0
        %2898 = vmatpush1.msra.mxu0 %v2872
        %2899 = vmatprep.subr.mxu0 0.0
        %2900 = vmatpush1.msra.mxu0 %v2873
        %2901 = vmatprep.subr.mxu0 0.0
        %2902 = vmatpush1.msra.mxu0 %v2874
        %2903 = vmatprep.subr.mxu0 0.0
        %2904 = vmatpush1.msra.mxu0 %v2875
        %2905 = vmatprep.subr.mxu0 0.0
        %2906 = vmatpush1.msra.mxu0 %v2876
        %2907 = vmatprep.subr.mxu0 0.0
        %2908 = vmatpush1.msra.mxu0 %v2877
        %2909 = vmatprep.subr.mxu0 0.0
        %2910 = vmatpush1.msra.mxu0 %v2878
        %2911 = vmatprep.subr.mxu0 0.0
        %2912 = vmatpush1.msra.mxu0 %v2879
        %2913 = vmatprep.subr.mxu0 0.0
        %2914 = vmatpush1.msra.mxu0 %v2880
        %2915 = vmatprep.subr.mxu0 0.0
        %2916 = vmatpush1.msra.mxu0 %v2881
        %2917 = vmatprep.subr.mxu0 0.0
        %2918 = vmatpush1.msra.mxu0 0.0
        %2919 = vmatprep.subr.mxu0 0.0
        %2920 = vmatpush1.msra.mxu0 0.0
        %2921 = vmatprep.subr.mxu0 0.0
        %2922 = vmatpush1.msra.mxu0 0.0
        %2923 = vmatprep.subr.mxu0 0.0
        %2924 = vmatpush1.msra.mxu0 0.0
        %2925 = vmatprep.subr.mxu0 0.0
        %2926 = vmatpush1.msra.mxu0 0.0
        %2927 = vmatprep.subr.mxu0 0.0
        %2928 = vmatpush1.msra.mxu0 0.0
        %2929 = vmatprep.subr.mxu0 0.0
        %2930 = vmatpush1.msra.mxu0 0.0
        %2931 = vmatprep.subr.mxu0 0.0
        %2932 = vmatpush1.msra.mxu0 0.0
        %2933 = vmatprep.subr.mxu0 0.0
        %2934 = vmatpush1.msra.mxu0 0.0
        %2935 = vmatprep.subr.mxu0 0.0
        %2936 = vmatpush1.msra.mxu0 0.0
        %2937 = vmatprep.subr.mxu0 0.0
        %2938 = vmatpush1.msra.mxu0 0.0
        %2939 = vmatprep.subr.mxu0 0.0
        %2940 = vmatpush1.msra.mxu0 0.0
        %2941 = vmatprep.subr.mxu0 0.0
        %2942 = vmatpush1.msra.mxu0 0.0
        %2943 = vmatprep.subr.mxu0 0.0
        %2944 = vmatpush1.msra.mxu0 0.0
        %2945 = vmatprep.subr.mxu0 0.0
        %2946 = vmatpush1.msra.mxu0 0.0
        %2947 = vmatprep.subr.mxu0 0.0
        %2948 = vmatpush1.msra.mxu0 0.0
        %2949 = vmatprep.subr.mxu0 0.0
        %2950 = vmatpush1.msra.mxu0 0.0
        %2951 = vmatprep.mubr.f32.mxu0 0.0
        %2952 = vmatmul.mubr.f32.gmra.mrb[0].mxu0 %v2885
        %v2953 = vpop.f32.mrb[0].mxu0
        %v2954 = vadd.f32 %v2882, %v2953
        %v2955 = vpop.f32.mrb[0].mxu0
        %2956 = vdwg.mxu0
        %v2957 = vmax.f32 %v2954, 0.0
        %v2958 = vld [vmem:[%s13] sm:$0xff]
        %v2959 = vld [vmem:[%s13 + $0x8] sm:$0xff]
        %v2960 = vld [vmem:[%s13 + $0x10] sm:$0xff]
        %v2961 = vld [vmem:[%s13 + $0x18] sm:$0xff]
        %v2962 = vld [vmem:[%s13 + $0x20] sm:$0xff]
        %v2963 = vld [vmem:[%s13 + $0x28] sm:$0xff]
        %v2964 = vld [vmem:[%s13 + $0x30] sm:$0xff]
        %v2965 = vld [vmem:[%s13 + $0x38] sm:$0xff]
        %v2966 = vld [vmem:[%s13 + $0x40] sm:$0xff]
        %v2967 = vld [vmem:[%s13 + $0x48] sm:$0xff]
        %v2968 = vld [vmem:[%s13 + $0x50] sm:$0xf]
        %v2969 = vld [vmem:[%s14] sm:$0x1]
        %v2971 = vsel %vm1548, %v2957, 0
        %v2974 = vsel %vm973, %v2968, 0
        %2976 = vmatprep.subr.mxu0 0.0
        %2977 = vmatpush1.msra.mxu0 %v2958
        %2978 = vmatprep.subr.mxu0 0.0
        %2979 = vmatpush1.msra.mxu0 %v2959
        %2980 = vmatprep.subr.mxu0 0.0
        %2981 = vmatpush1.msra.mxu0 %v2960
        %2982 = vmatprep.subr.mxu0 0.0
        %2983 = vmatpush1.msra.mxu0 %v2961
        %2984 = vmatprep.subr.mxu0 0.0
        %2985 = vmatpush1.msra.mxu0 %v2962
        %2986 = vmatprep.subr.mxu0 0.0
        %2987 = vmatpush1.msra.mxu0 %v2963
        %2988 = vmatprep.subr.mxu0 0.0
        %2989 = vmatpush1.msra.mxu0 %v2964
        %2990 = vmatprep.subr.mxu0 0.0
        %2991 = vmatpush1.msra.mxu0 %v2965
        %2992 = vmatprep.subr.mxu0 0.0
        %2993 = vmatpush1.msra.mxu0 %v2966
        %2994 = vmatprep.subr.mxu0 0.0
        %2995 = vmatpush1.msra.mxu0 %v2967
        %2996 = vmatprep.subr.mxu0 0.0
        %2997 = vmatpush1.msra.mxu0 %v2974
        %2998 = vmatprep.subr.mxu0 0.0
        %2999 = vmatpush1.msra.mxu0 0.0
        %3000 = vmatprep.subr.mxu0 0.0
        %3001 = vmatpush1.msra.mxu0 0.0
        %3002 = vmatprep.subr.mxu0 0.0
        %3003 = vmatpush1.msra.mxu0 0.0
        %3004 = vmatprep.subr.mxu0 0.0
        %3005 = vmatpush1.msra.mxu0 0.0
        %3006 = vmatprep.subr.mxu0 0.0
        %3007 = vmatpush1.msra.mxu0 0.0
        %3008 = vmatprep.subr.mxu0 0.0
        %3009 = vmatpush1.msra.mxu0 0.0
        %3010 = vmatprep.subr.mxu0 0.0
        %3011 = vmatpush1.msra.mxu0 0.0
        %3012 = vmatprep.subr.mxu0 0.0
        %3013 = vmatpush1.msra.mxu0 0.0
        %3014 = vmatprep.subr.mxu0 0.0
        %3015 = vmatpush1.msra.mxu0 0.0
        %3016 = vmatprep.subr.mxu0 0.0
        %3017 = vmatpush1.msra.mxu0 0.0
        %3018 = vmatprep.subr.mxu0 0.0
        %3019 = vmatpush1.msra.mxu0 0.0
        %3020 = vmatprep.subr.mxu0 0.0
        %3021 = vmatpush1.msra.mxu0 0.0
        %3022 = vmatprep.subr.mxu0 0.0
        %3023 = vmatpush1.msra.mxu0 0.0
        %3024 = vmatprep.subr.mxu0 0.0
        %3025 = vmatpush1.msra.mxu0 0.0
        %3026 = vmatprep.subr.mxu0 0.0
        %3027 = vmatpush1.msra.mxu0 0.0
        %3028 = vmatprep.subr.mxu0 0.0
        %3029 = vmatpush1.msra.mxu0 0.0
        %3030 = vmatprep.subr.mxu0 0.0
        %3031 = vmatpush1.msra.mxu0 0.0
        %3032 = vmatprep.subr.mxu0 0.0
        %3033 = vmatpush1.msra.mxu0 0.0
        %3034 = vmatprep.subr.mxu0 0.0
        %3035 = vmatpush1.msra.mxu0 0.0
        %3036 = vmatprep.subr.mxu0 0.0
        %3037 = vmatpush1.msra.mxu0 0.0
        %3038 = vmatprep.subr.mxu0 0.0
        %3039 = vmatpush1.msra.mxu0 0.0
        %3040 = vmatprep.mubr.f32.mxu0 0.0
        %3041 = vmatmul.mubr.f32.gmra.mrb[0].mxu0 %v2971
        %v3042 = vpop.f32.mrb[0].mxu0
        %v3043 = vadd.f32 %v2969, %v3042
        %v3044 = vpop.f32.mrb[0].mxu0
        %3045 = vdwg.mxu0
        %vm3046 = vcmask 73728
        %3047 = vst.msk [vmem:[%s486] sm:$0x1] %vm3046, %v3043
        %s3048 = sand.u32 %s357, 1
        %s3049 = scalar_lea.sflag [#allocation3], %s3048
        %s3050 = sand.u32 %s357, 1
        %s3051 = scalar_lea.vmem [#allocation2], %s3050
        // Predicated region
        $region81: #{net_forward.1} parent=79 // pred_check
          %p3052 = pneg %p367
        $region82: #{net_forward.1} parent=79 // pred_check_branch
          %3054 = sbr.rel (%p3052) target = $region84
        $region83: #{net_forward.1} parent=79 // pred_region
          %s3056 = ssub.s32 16, 16
          %3057 = vsyncadd %s3049, %s3056
          %s3058 = smul.addr %s29, 16
          %s3059 = scalar_lea.hbm %s15, %s3058
          %s3061 = sshll.u32 %s3051, 4
          %s3062 = int_to_ptr.vmem [resolvable:$true] %s3061
          %3064 = dma.vmem_to_hbm [thread:$0]  %s3062, 16, %s3059, %s3049
        $region84: #{net_forward.1} parent=79 // pred_fallthru
          _
      $region80: #{net_forward.1} parent=5 // pred_fallthru
        _
      %p3065 = scmp.le.s32.totalorder 2, %s24
      // Predicated region
      $region85: #{net_forward.1} parent=5 // pred_check
        %p3066 = pneg %p3065
      $region86: #{net_forward.1} parent=5 // pred_check_branch
        %3068 = sbr.rel (%p3066) target = $region88
      $region87: #{net_forward.1} parent=5 // pred_region
        %s3069 = ssub.s32 %s24, 2
        // Predicated region
        $region89: #{net_forward.1} parent=87 // pred_check
          %p3070 = pneg %p373
        $region90: #{net_forward.1} parent=87 // pred_check_branch
          %3072 = sbr.rel (%p3070) target = $region92
        $region91: #{net_forward.1} parent=87 // pred_region
          %s3073 = sand.u32 %s358, 1
          %s3074 = scalar_lea.sflag [#allocation3], %s3073
          %s3075 = sand.u32 %s358, 1
          %s3076 = scalar_lea.vmem [#allocation2], %s3075
          %3077 = dma.done %s3074, 16
        $region92: #{net_forward.1} parent=87 // pred_fallthru
          _
      $region88: #{net_forward.1} parent=5 // pred_fallthru
        _
    $region6: #{net_forward.1} parent=1 // loop_footer
      %s28 = sadd.s32 1, %s24
    $region7: #{net_forward.1} parent=1 // loop_footer_branch
      %23 = sbr.rel target = $region3
    $region8: #{net_forward.1} parent=1 // loop_exit
      _
    %3078 = vsyncpa [#allocation3], 1
    %s3079 = scalar_lea.sflag [#allocation3], 1
    %3080 = vsyncpa %s3079, 1

</llo_original>
